<compile_context>
chip_gen: v6e
topology: v6e:2x2x1
jax: 0.10.0
libtpu: 0.0.40
codegen_flags: <defaults>
</compile_context>

<pallas_src>
import functools

import jax
import jax.numpy as jnp
from jax import lax
from jax.experimental import pallas as pl
from jax.experimental.pallas import tpu as pltpu


# ---------------------------------------------------------------------------
# Fused Pallas kernel: conv3x3+BN+ReLU -> conv3x3+BN+ReLU -> maxpool 2x2
# ---------------------------------------------------------------------------
def _down_block_kernel(x_ref, w1_ref, w2_ref, aff_ref, of_ref, op_ref,
                       xpad, hpad, hflat, rmax,
                       *, H, W, Cin, Cout, padl):
    HW = H * W

    def im2col(pad_ref, C):
        # Build the (H*W, 9*C) patch matrix: 9 shifted windows concatenated
        # along the channel (lane) dim -> one big-K matmul per conv.
        cols = []
        for dh in range(3):
            for dw in range(3):
                win = pad_ref[pl.ds(dh, H), pl.ds(padl - 1 + dw, W), :]
                cols.append(win.reshape(HW, C))      # sublane relabel (W % 8 == 0)
        return jnp.concatenate(cols, axis=-1)

    # --- zero the padded scratch buffers (halo must be zero every image) ----
    xpad[...] = jnp.zeros(xpad.shape, jnp.float32)
    hpad[...] = jnp.zeros(hpad.shape, jnp.float32)

    # --- in-kernel zero padding of the input (interior at aligned col padl) -
    for i in range(H):
        xpad[i + 1, pl.ds(padl, W), :] = x_ref[0, i]

    # --- conv1 (3x3, pad 1) + fused bias/BatchNorm affine + ReLU ------------
    acc1 = jnp.dot(im2col(xpad, Cin), w1_ref[...],
                   preferred_element_type=jnp.float32)
    y1 = jnp.maximum(acc1 * aff_ref[0:1, :] + aff_ref[1:2, :], 0.0)

    # --- stage `h` in VMEM only and re-pad it for conv2 ---------------------
    hflat[...] = y1
    for i in range(H):
        hpad[i + 1, pl.ds(padl, W), :] = hflat[pl.ds(i * W, W), :]

    # --- conv2 (3x3, pad 1) + fused bias/BatchNorm affine + ReLU ------------
    acc2 = jnp.dot(im2col(hpad, Cout), w2_ref[...],
                   preferred_element_type=jnp.float32)
    y2 = jnp.maximum(acc2 * aff_ref[2:3, :] + aff_ref[3:4, :], 0.0)

    of_ref[...] = y2.reshape(1, HW, Cout).astype(of_ref.dtype)

    # --- fused 2x2 max-pool (stride 2), reading the conv output from VMEM ---
    for r in range(H // 2):
        top = of_ref[0, pl.ds((2 * r) * W, W), :]
        bot = of_ref[0, pl.ds((2 * r + 1) * W, W), :]
        rmax[r] = jnp.maximum(top, bot)              # (W, Cout) per pooled row
    for j in range(W // 2):
        c0 = rmax[:, pl.ds(2 * j, 1), :]
        c1 = rmax[:, pl.ds(2 * j + 1, 1), :]
        op_ref[0, :, pl.ds(j, 1), :] = jnp.maximum(c0, c1).astype(op_ref.dtype)


# ---------------------------------------------------------------------------
# Parameter helpers (PyTorch layouts) + BatchNorm fusion
# ---------------------------------------------------------------------------
def fuse_bn(conv_bias, gamma, beta, mean, var, eps=1e-5):
    scale = gamma / jnp.sqrt(var + eps)
    shift = (conv_bias - mean) * scale + beta
    return scale, shift


def _oihw_to_hwio(w):
    return jnp.transpose(w, (2, 3, 1, 0))


def init_params(key, ch_in, ch_out):
    ks = jax.random.split(key, 12)

    def nrm(k, shape, s=0.1):
        return s * jax.random.normal(k, shape, jnp.float32)

    return dict(
        # Conv2d(ch_in, ch_out, 3, padding=1, bias=True) + BatchNorm2d(ch_out)
        c1_w=nrm(ks[0], (ch_out, ch_in, 3, 3)),
        c1_b=nrm(ks[1], (ch_out,)),
        bn1_gamma=1.0 + nrm(ks[2], (ch_out,)),
        bn1_beta=nrm(ks[3], (ch_out,)),
        bn1_mean=nrm(ks[4], (ch_out,)),
        bn1_var=jnp.abs(1.0 + nrm(ks[5], (ch_out,))),
        # Conv2d(ch_out, ch_out, 3, padding=1, bias=True) + BatchNorm2d(ch_out)
        c2_w=nrm(ks[6], (ch_out, ch_out, 3, 3)),
        c2_b=nrm(ks[7], (ch_out,)),
        bn2_gamma=1.0 + nrm(ks[8], (ch_out,)),
        bn2_beta=nrm(ks[9], (ch_out,)),
        bn2_mean=nrm(ks[10], (ch_out,)),
        bn2_var=jnp.abs(1.0 + nrm(ks[11], (ch_out,))),
    )


# ---------------------------------------------------------------------------
# DownBlock forward (Pallas path)
# ---------------------------------------------------------------------------
def down_block_forward(x_nchw, p):
    N, Cin, H, W = x_nchw.shape
    Cout = p["c1_w"].shape[0]
    assert H % 2 == 0 and W % 2 == 0, "MaxPool2d(2) requires even H, W"
    assert W % 8 == 0, "W must be a multiple of 8 (TPU sublane relabel)"

    x = jnp.transpose(x_nchw, (0, 2, 3, 1)).astype(jnp.float32)   # NHWC

    # Fold the 3x3 weights for the im2col matmul and fuse bias+BN per conv.
    w1 = _oihw_to_hwio(p["c1_w"]).reshape(9 * Cin, Cout)
    w2 = _oihw_to_hwio(p["c2_w"]).reshape(9 * Cout, Cout)
    s1, t1 = fuse_bn(p["c1_b"], p["bn1_gamma"], p["bn1_beta"],
                     p["bn1_mean"], p["bn1_var"])
    s2, t2 = fuse_bn(p["c2_b"], p["bn2_gamma"], p["bn2_beta"],
                     p["bn2_mean"], p["bn2_var"])
    aff = jnp.stack([s1, t1, s2, t2], axis=0)                     # (4, Cout)

    padl = 8                       # sublane-aligned interior column offset
    wp = W + 2 * padl              # padded scratch width

    kern = functools.partial(_down_block_kernel,
                             H=H, W=W, Cin=Cin, Cout=Cout, padl=padl)
    of, op = pl.pallas_call(
        kern,
        out_shape=(
            jax.ShapeDtypeStruct((N, H * W, Cout), jnp.float32),
            jax.ShapeDtypeStruct((N, H // 2, W // 2, Cout), jnp.float32),
        ),
        grid=(N,),
        in_specs=[
            pl.BlockSpec((1, H, W, Cin), lambda n: (n, 0, 0, 0)),
            pl.BlockSpec((9 * Cin, Cout), lambda n: (0, 0)),
            pl.BlockSpec((9 * Cout, Cout), lambda n: (0, 0)),
            pl.BlockSpec((4, Cout), lambda n: (0, 0)),
        ],
        out_specs=(
            pl.BlockSpec((1, H * W, Cout), lambda n: (n, 0, 0)),
            pl.BlockSpec((1, H // 2, W // 2, Cout), lambda n: (n, 0, 0, 0)),
        ),
        scratch_shapes=[
            pltpu.VMEM((H + 2, wp, Cin), jnp.float32),    # padded input
            pltpu.VMEM((H + 2, wp, Cout), jnp.float32),   # padded hidden act
            pltpu.VMEM((H * W, Cout), jnp.float32),       # flat hidden act
            pltpu.VMEM((H // 2, W, Cout), jnp.float32),   # row-pooled rows
        ],
        compiler_params=pltpu.CompilerParams(
            dimension_semantics=("parallel",)),
    )(x, w1, w2, aff)

    full = jnp.transpose(of.reshape(N, H, W, Cout), (0, 3, 1, 2))   # NCHW
    pooled = jnp.transpose(op, (0, 3, 1, 2))                        # NCHW
    return pooled, full


# ---------------------------------------------------------------------------
# Pure-JAX reference (for correctness check)
# ---------------------------------------------------------------------------
def _conv3x3_bn_relu_ref(x, w_hwio, scale, shift):
    y = lax.conv_general_dilated(
        x, w_hwio, window_strides=(1, 1), padding=((1, 1), (1, 1)),
        dimension_numbers=("NHWC", "HWIO", "NHWC"),
        precision=lax.Precision.HIGHEST)
    y = y * scale.reshape(1, 1, 1, -1) + shift.reshape(1, 1, 1, -1)
    return jnp.maximum(y, 0.0)


def reference_forward(x_nchw, p):
    x = jnp.transpose(x_nchw, (0, 2, 3, 1)).astype(jnp.float32)
    s1, t1 = fuse_bn(p["c1_b"], p["bn1_gamma"], p["bn1_beta"],
                     p["bn1_mean"], p["bn1_var"])
    h = _conv3x3_bn_relu_ref(x, _oihw_to_hwio(p["c1_w"]), s1, t1)
    s2, t2 = fuse_bn(p["c2_b"], p["bn2_gamma"], p["bn2_beta"],
                     p["bn2_mean"], p["bn2_var"])
    h = _conv3x3_bn_relu_ref(h, _oihw_to_hwio(p["c2_w"]), s2, t2)
    N, H, W, C = h.shape
    pooled = h.reshape(N, H // 2, 2, W // 2, 2, C).max(axis=(2, 4))
    return (jnp.transpose(pooled, (0, 3, 1, 2)),
            jnp.transpose(h, (0, 3, 1, 2)))


# ---------------------------------------------------------------------------
if __name__ == "__main__":
    key = jax.random.PRNGKey(0)
    N, ch_in, ch_out = 2, 4, 8
    H = W = 16

    k_x, k_p = jax.random.split(key)
    x = jax.random.normal(k_x, (N, ch_in, H, W), jnp.float32)
    params = init_params(k_p, ch_in, ch_out)

    fwd = jax.jit(down_block_forward)
    pooled, full = fwd(x, params)
    jax.block_until_ready((pooled, full))

    assert pooled.shape == (N, ch_out, H // 2, W // 2), pooled.shape
    assert full.shape == (N, ch_out, H, W), full.shape

    ref_pooled, ref_full = reference_forward(x, params)
    err_f = float(jnp.max(jnp.abs(full - ref_full)))
    err_p = float(jnp.max(jnp.abs(pooled - ref_pooled)))
    if not jnp.allclose(full, ref_full, atol=2e-3, rtol=2e-3):
        raise AssertionError(f"full-res output mismatch, max abs err = {err_f}")
    if not jnp.allclose(pooled, ref_pooled, atol=2e-3, rtol=2e-3):
        raise AssertionError(f"pooled output mismatch, max abs err = {err_p}")

    print("KERNEL_OK")
</pallas_src>

<mosaic_0001>
module attributes {stable_mosaic.version = 11 : i64} {
  func.func @_down_block_kernel(%arg0: i32, %arg1: memref<1x16x16x4xf32, #tpu.memory_space<vmem>>, %arg2: memref<36x8xf32, #tpu.memory_space<vmem>>, %arg3: memref<72x8xf32, #tpu.memory_space<vmem>>, %arg4: memref<4x8xf32, #tpu.memory_space<vmem>>, %arg5: memref<1x256x8xf32, #tpu.memory_space<vmem>>, %arg6: memref<1x8x8x8xf32, #tpu.memory_space<vmem>>, %arg7: memref<18x32x4xf32, #tpu.memory_space<vmem>>, %arg8: memref<18x32x8xf32, #tpu.memory_space<vmem>>, %arg9: memref<256x8xf32, #tpu.memory_space<vmem>>, %arg10: memref<8x16x8xf32, #tpu.memory_space<vmem>>) attributes {dimension_semantics = [#tpu.dimension_semantics<parallel>], iteration_bounds = array<i64: 2>, scalar_prefetch = 0 : i64, scratch_operands = 4 : i64, tpu.core_type = #tpu.core_type<tc>, window_params = [{transform_indices = @transform_0, window_bounds = array<i64: 1, 16, 16, 4>}, {pipeline_mode = #tpu.pipeline_mode<synchronous>, transform_indices = @transform_1, window_bounds = array<i64: 36, 8>}, {pipeline_mode = #tpu.pipeline_mode<synchronous>, transform_indices = @transform_2, window_bounds = array<i64: 72, 8>}, {pipeline_mode = #tpu.pipeline_mode<synchronous>, transform_indices = @transform_3, window_bounds = array<i64: 4, 8>}, {transform_indices = @transform_4, window_bounds = array<i64: 1, 256, 8>}, {transform_indices = @transform_5, window_bounds = array<i64: 1, 8, 8, 8>}]} {
    %cst = arith.constant 0.000000e+00 : f32
    %0 = vector.broadcast %cst : f32 to vector<18x32x4xf32>
    %c0 = arith.constant 0 : index
    %c0_0 = arith.constant 0 : index
    %c0_1 = arith.constant 0 : index
    %1 = vector.load %arg7[%c0, %c0_0, %c0_1] : memref<18x32x4xf32, #tpu.memory_space<vmem>>, vector<18x32x4xf32>
    tpu.vector_store %arg7[%c0, %c0_0, %c0_1], %0 {strides = array<i32>} : memref<18x32x4xf32, #tpu.memory_space<vmem>>, vector<18x32x4xf32>,
    %cst_2 = arith.constant 0.000000e+00 : f32
    %2 = vector.broadcast %cst_2 : f32 to vector<18x32x8xf32>
    %c0_3 = arith.constant 0 : index
    %c0_4 = arith.constant 0 : index
    %c0_5 = arith.constant 0 : index
    %3 = vector.load %arg8[%c0_3, %c0_4, %c0_5] : memref<18x32x8xf32, #tpu.memory_space<vmem>>, vector<18x32x8xf32>
    tpu.vector_store %arg8[%c0_3, %c0_4, %c0_5], %2 {strides = array<i32>} : memref<18x32x8xf32, #tpu.memory_space<vmem>>, vector<18x32x8xf32>,
    %c0_6 = arith.constant 0 : index
    %c0_7 = arith.constant 0 : index
    %c0_8 = arith.constant 0 : index
    %c0_9 = arith.constant 0 : index
    %4 = vector.load %arg1[%c0_6, %c0_7, %c0_8, %c0_9] : memref<1x16x16x4xf32, #tpu.memory_space<vmem>>, vector<1x1x16x4xf32>
    %5 = vector.shape_cast %4 : vector<1x1x16x4xf32> to vector<16x4xf32>
    %c1 = arith.constant 1 : index
    %c8 = arith.constant 8 : index
    %c0_10 = arith.constant 0 : index
    %6 = vector.load %arg7[%c1, %c8, %c0_10] : memref<18x32x4xf32, #tpu.memory_space<vmem>>, vector<1x16x4xf32>
    %7 = vector.shape_cast %6 : vector<1x16x4xf32> to vector<16x4xf32>
    %8 = vector.shape_cast %5 : vector<16x4xf32> to vector<1x16x4xf32>
    tpu.vector_store %arg7[%c1, %c8, %c0_10], %8 {strides = array<i32>} : memref<18x32x4xf32, #tpu.memory_space<vmem>>, vector<1x16x4xf32>,
    %c0_11 = arith.constant 0 : index
    %c1_12 = arith.constant 1 : index
    %c0_13 = arith.constant 0 : index
    %c0_14 = arith.constant 0 : index
    %9 = vector.load %arg1[%c0_11, %c1_12, %c0_13, %c0_14] : memref<1x16x16x4xf32, #tpu.memory_space<vmem>>, vector<1x1x16x4xf32>
    %10 = vector.shape_cast %9 : vector<1x1x16x4xf32> to vector<16x4xf32>
    %c2 = arith.constant 2 : index
    %c8_15 = arith.constant 8 : index
    %c0_16 = arith.constant 0 : index
    %11 = vector.load %arg7[%c2, %c8_15, %c0_16] : memref<18x32x4xf32, #tpu.memory_space<vmem>>, vector<1x16x4xf32>
    %12 = vector.shape_cast %11 : vector<1x16x4xf32> to vector<16x4xf32>
    %13 = vector.shape_cast %10 : vector<16x4xf32> to vector<1x16x4xf32>
    tpu.vector_store %arg7[%c2, %c8_15, %c0_16], %13 {strides = array<i32>} : memref<18x32x4xf32, #tpu.memory_space<vmem>>, vector<1x16x4xf32>,
    %c0_17 = arith.constant 0 : index
    %c2_18 = arith.constant 2 : index
    %c0_19 = arith.constant 0 : index
    %c0_20 = arith.constant 0 : index
    %14 = vector.load %arg1[%c0_17, %c2_18, %c0_19, %c0_20] : memref<1x16x16x4xf32, #tpu.memory_space<vmem>>, vector<1x1x16x4xf32>
    %15 = vector.shape_cast %14 : vector<1x1x16x4xf32> to vector<16x4xf32>
    %c3 = arith.constant 3 : index
    %c8_21 = arith.constant 8 : index
    %c0_22 = arith.constant 0 : index
    %16 = vector.load %arg7[%c3, %c8_21, %c0_22] : memref<18x32x4xf32, #tpu.memory_space<vmem>>, vector<1x16x4xf32>
    %17 = vector.shape_cast %16 : vector<1x16x4xf32> to vector<16x4xf32>
    %18 = vector.shape_cast %15 : vector<16x4xf32> to vector<1x16x4xf32>
    tpu.vector_store %arg7[%c3, %c8_21, %c0_22], %18 {strides = array<i32>} : memref<18x32x4xf32, #tpu.memory_space<vmem>>, vector<1x16x4xf32>,
    %c0_23 = arith.constant 0 : index
    %c3_24 = arith.constant 3 : index
    %c0_25 = arith.constant 0 : index
    %c0_26 = arith.constant 0 : index
    %19 = vector.load %arg1[%c0_23, %c3_24, %c0_25, %c0_26] : memref<1x16x16x4xf32, #tpu.memory_space<vmem>>, vector<1x1x16x4xf32>
    %20 = vector.shape_cast %19 : vector<1x1x16x4xf32> to vector<16x4xf32>
    %c4 = arith.constant 4 : index
    %c8_27 = arith.constant 8 : index
    %c0_28 = arith.constant 0 : index
    %21 = vector.load %arg7[%c4, %c8_27, %c0_28] : memref<18x32x4xf32, #tpu.memory_space<vmem>>, vector<1x16x4xf32>
    %22 = vector.shape_cast %21 : vector<1x16x4xf32> to vector<16x4xf32>
    %23 = vector.shape_cast %20 : vector<16x4xf32> to vector<1x16x4xf32>
    tpu.vector_store %arg7[%c4, %c8_27, %c0_28], %23 {strides = array<i32>} : memref<18x32x4xf32, #tpu.memory_space<vmem>>, vector<1x16x4xf32>,
    %c0_29 = arith.constant 0 : index
    %c4_30 = arith.constant 4 : index
    %c0_31 = arith.constant 0 : index
    %c0_32 = arith.constant 0 : index
    %24 = vector.load %arg1[%c0_29, %c4_30, %c0_31, %c0_32] : memref<1x16x16x4xf32, #tpu.memory_space<vmem>>, vector<1x1x16x4xf32>
    %25 = vector.shape_cast %24 : vector<1x1x16x4xf32> to vector<16x4xf32>
    %c5 = arith.constant 5 : index
    %c8_33 = arith.constant 8 : index
    %c0_34 = arith.constant 0 : index
    %26 = vector.load %arg7[%c5, %c8_33, %c0_34] : memref<18x32x4xf32, #tpu.memory_space<vmem>>, vector<1x16x4xf32>
    %27 = vector.shape_cast %26 : vector<1x16x4xf32> to vector<16x4xf32>
    %28 = vector.shape_cast %25 : vector<16x4xf32> to vector<1x16x4xf32>
    tpu.vector_store %arg7[%c5, %c8_33, %c0_34], %28 {strides = array<i32>} : memref<18x32x4xf32, #tpu.memory_space<vmem>>, vector<1x16x4xf32>,
    %c0_35 = arith.constant 0 : index
    %c5_36 = arith.constant 5 : index
    %c0_37 = arith.constant 0 : index
    %c0_38 = arith.constant 0 : index
    %29 = vector.load %arg1[%c0_35, %c5_36, %c0_37, %c0_38] : memref<1x16x16x4xf32, #tpu.memory_space<vmem>>, vector<1x1x16x4xf32>
    %30 = vector.shape_cast %29 : vector<1x1x16x4xf32> to vector<16x4xf32>
    %c6 = arith.constant 6 : index
    %c8_39 = arith.constant 8 : index
    %c0_40 = arith.constant 0 : index
    %31 = vector.load %arg7[%c6, %c8_39, %c0_40] : memref<18x32x4xf32, #tpu.memory_space<vmem>>, vector<1x16x4xf32>
    %32 = vector.shape_cast %31 : vector<1x16x4xf32> to vector<16x4xf32>
    %33 = vector.shape_cast %30 : vector<16x4xf32> to vector<1x16x4xf32>
    tpu.vector_store %arg7[%c6, %c8_39, %c0_40], %33 {strides = array<i32>} : memref<18x32x4xf32, #tpu.memory_space<vmem>>, vector<1x16x4xf32>,
    %c0_41 = arith.constant 0 : index
    %c6_42 = arith.constant 6 : index
    %c0_43 = arith.constant 0 : index
    %c0_44 = arith.constant 0 : index
    %34 = vector.load %arg1[%c0_41, %c6_42, %c0_43, %c0_44] : memref<1x16x16x4xf32, #tpu.memory_space<vmem>>, vector<1x1x16x4xf32>
    %35 = vector.shape_cast %34 : vector<1x1x16x4xf32> to vector<16x4xf32>
    %c7 = arith.constant 7 : index
    %c8_45 = arith.constant 8 : index
    %c0_46 = arith.constant 0 : index
    %36 = vector.load %arg7[%c7, %c8_45, %c0_46] : memref<18x32x4xf32, #tpu.memory_space<vmem>>, vector<1x16x4xf32>
    %37 = vector.shape_cast %36 : vector<1x16x4xf32> to vector<16x4xf32>
    %38 = vector.shape_cast %35 : vector<16x4xf32> to vector<1x16x4xf32>
    tpu.vector_store %arg7[%c7, %c8_45, %c0_46], %38 {strides = array<i32>} : memref<18x32x4xf32, #tpu.memory_space<vmem>>, vector<1x16x4xf32>,
    %c0_47 = arith.constant 0 : index
    %c7_48 = arith.constant 7 : index
    %c0_49 = arith.constant 0 : index
    %c0_50 = arith.constant 0 : index
    %39 = vector.load %arg1[%c0_47, %c7_48, %c0_49, %c0_50] : memref<1x16x16x4xf32, #tpu.memory_space<vmem>>, vector<1x1x16x4xf32>
    %40 = vector.shape_cast %39 : vector<1x1x16x4xf32> to vector<16x4xf32>
    %c8_51 = arith.constant 8 : index
    %c8_52 = arith.constant 8 : index
    %c0_53 = arith.constant 0 : index
    %41 = vector.load %arg7[%c8_51, %c8_52, %c0_53] : memref<18x32x4xf32, #tpu.memory_space<vmem>>, vector<1x16x4xf32>
    %42 = vector.shape_cast %41 : vector<1x16x4xf32> to vector<16x4xf32>
    %43 = vector.shape_cast %40 : vector<16x4xf32> to vector<1x16x4xf32>
    tpu.vector_store %arg7[%c8_51, %c8_52, %c0_53], %43 {strides = array<i32>} : memref<18x32x4xf32, #tpu.memory_space<vmem>>, vector<1x16x4xf32>,
    %c0_54 = arith.constant 0 : index
    %c8_55 = arith.constant 8 : index
    %c0_56 = arith.constant 0 : index
    %c0_57 = arith.constant 0 : index
    %44 = vector.load %arg1[%c0_54, %c8_55, %c0_56, %c0_57] : memref<1x16x16x4xf32, #tpu.memory_space<vmem>>, vector<1x1x16x4xf32>
    %45 = vector.shape_cast %44 : vector<1x1x16x4xf32> to vector<16x4xf32>
    %c9 = arith.constant 9 : index
    %c8_58 = arith.constant 8 : index
    %c0_59 = arith.constant 0 : index
    %46 = vector.load %arg7[%c9, %c8_58, %c0_59] : memref<18x32x4xf32, #tpu.memory_space<vmem>>, vector<1x16x4xf32>
    %47 = vector.shape_cast %46 : vector<1x16x4xf32> to vector<16x4xf32>
    %48 = vector.shape_cast %45 : vector<16x4xf32> to vector<1x16x4xf32>
    tpu.vector_store %arg7[%c9, %c8_58, %c0_59], %48 {strides = array<i32>} : memref<18x32x4xf32, #tpu.memory_space<vmem>>, vector<1x16x4xf32>,
    %c0_60 = arith.constant 0 : index
    %c9_61 = arith.constant 9 : index
    %c0_62 = arith.constant 0 : index
    %c0_63 = arith.constant 0 : index
    %49 = vector.load %arg1[%c0_60, %c9_61, %c0_62, %c0_63] : memref<1x16x16x4xf32, #tpu.memory_space<vmem>>, vector<1x1x16x4xf32>
    %50 = vector.shape_cast %49 : vector<1x1x16x4xf32> to vector<16x4xf32>
    %c10 = arith.constant 10 : index
    %c8_64 = arith.constant 8 : index
    %c0_65 = arith.constant 0 : index
    %51 = vector.load %arg7[%c10, %c8_64, %c0_65] : memref<18x32x4xf32, #tpu.memory_space<vmem>>, vector<1x16x4xf32>
    %52 = vector.shape_cast %51 : vector<1x16x4xf32> to vector<16x4xf32>
    %53 = vector.shape_cast %50 : vector<16x4xf32> to vector<1x16x4xf32>
    tpu.vector_store %arg7[%c10, %c8_64, %c0_65], %53 {strides = array<i32>} : memref<18x32x4xf32, #tpu.memory_space<vmem>>, vector<1x16x4xf32>,
    %c0_66 = arith.constant 0 : index
    %c10_67 = arith.constant 10 : index
    %c0_68 = arith.constant 0 : index
    %c0_69 = arith.constant 0 : index
    %54 = vector.load %arg1[%c0_66, %c10_67, %c0_68, %c0_69] : memref<1x16x16x4xf32, #tpu.memory_space<vmem>>, vector<1x1x16x4xf32>
    %55 = vector.shape_cast %54 : vector<1x1x16x4xf32> to vector<16x4xf32>
    %c11 = arith.constant 11 : index
    %c8_70 = arith.constant 8 : index
    %c0_71 = arith.constant 0 : index
    %56 = vector.load %arg7[%c11, %c8_70, %c0_71] : memref<18x32x4xf32, #tpu.memory_space<vmem>>, vector<1x16x4xf32>
    %57 = vector.shape_cast %56 : vector<1x16x4xf32> to vector<16x4xf32>
    %58 = vector.shape_cast %55 : vector<16x4xf32> to vector<1x16x4xf32>
    tpu.vector_store %arg7[%c11, %c8_70, %c0_71], %58 {strides = array<i32>} : memref<18x32x4xf32, #tpu.memory_space<vmem>>, vector<1x16x4xf32>,
    %c0_72 = arith.constant 0 : index
    %c11_73 = arith.constant 11 : index
    %c0_74 = arith.constant 0 : index
    %c0_75 = arith.constant 0 : index
    %59 = vector.load %arg1[%c0_72, %c11_73, %c0_74, %c0_75] : memref<1x16x16x4xf32, #tpu.memory_space<vmem>>, vector<1x1x16x4xf32>
    %60 = vector.shape_cast %59 : vector<1x1x16x4xf32> to vector<16x4xf32>
    %c12 = arith.constant 12 : index
    %c8_76 = arith.constant 8 : index
    %c0_77 = arith.constant 0 : index
    %61 = vector.load %arg7[%c12, %c8_76, %c0_77] : memref<18x32x4xf32, #tpu.memory_space<vmem>>, vector<1x16x4xf32>
    %62 = vector.shape_cast %61 : vector<1x16x4xf32> to vector<16x4xf32>
    %63 = vector.shape_cast %60 : vector<16x4xf32> to vector<1x16x4xf32>
    tpu.vector_store %arg7[%c12, %c8_76, %c0_77], %63 {strides = array<i32>} : memref<18x32x4xf32, #tpu.memory_space<vmem>>, vector<1x16x4xf32>,
    %c0_78 = arith.constant 0 : index
    %c12_79 = arith.constant 12 : index
    %c0_80 = arith.constant 0 : index
    %c0_81 = arith.constant 0 : index
    %64 = vector.load %arg1[%c0_78, %c12_79, %c0_80, %c0_81] : memref<1x16x16x4xf32, #tpu.memory_space<vmem>>, vector<1x1x16x4xf32>
    %65 = vector.shape_cast %64 : vector<1x1x16x4xf32> to vector<16x4xf32>
    %c13 = arith.constant 13 : index
    %c8_82 = arith.constant 8 : index
    %c0_83 = arith.constant 0 : index
    %66 = vector.load %arg7[%c13, %c8_82, %c0_83] : memref<18x32x4xf32, #tpu.memory_space<vmem>>, vector<1x16x4xf32>
    %67 = vector.shape_cast %66 : vector<1x16x4xf32> to vector<16x4xf32>
    %68 = vector.shape_cast %65 : vector<16x4xf32> to vector<1x16x4xf32>
    tpu.vector_store %arg7[%c13, %c8_82, %c0_83], %68 {strides = array<i32>} : memref<18x32x4xf32, #tpu.memory_space<vmem>>, vector<1x16x4xf32>,
    %c0_84 = arith.constant 0 : index
    %c13_85 = arith.constant 13 : index
    %c0_86 = arith.constant 0 : index
    %c0_87 = arith.constant 0 : index
    %69 = vector.load %arg1[%c0_84, %c13_85, %c0_86, %c0_87] : memref<1x16x16x4xf32, #tpu.memory_space<vmem>>, vector<1x1x16x4xf32>
    %70 = vector.shape_cast %69 : vector<1x1x16x4xf32> to vector<16x4xf32>
    %c14 = arith.constant 14 : index
    %c8_88 = arith.constant 8 : index
    %c0_89 = arith.constant 0 : index
    %71 = vector.load %arg7[%c14, %c8_88, %c0_89] : memref<18x32x4xf32, #tpu.memory_space<vmem>>, vector<1x16x4xf32>
    %72 = vector.shape_cast %71 : vector<1x16x4xf32> to vector<16x4xf32>
    %73 = vector.shape_cast %70 : vector<16x4xf32> to vector<1x16x4xf32>
    tpu.vector_store %arg7[%c14, %c8_88, %c0_89], %73 {strides = array<i32>} : memref<18x32x4xf32, #tpu.memory_space<vmem>>, vector<1x16x4xf32>,
    %c0_90 = arith.constant 0 : index
    %c14_91 = arith.constant 14 : index
    %c0_92 = arith.constant 0 : index
    %c0_93 = arith.constant 0 : index
    %74 = vector.load %arg1[%c0_90, %c14_91, %c0_92, %c0_93] : memref<1x16x16x4xf32, #tpu.memory_space<vmem>>, vector<1x1x16x4xf32>
    %75 = vector.shape_cast %74 : vector<1x1x16x4xf32> to vector<16x4xf32>
    %c15 = arith.constant 15 : index
    %c8_94 = arith.constant 8 : index
    %c0_95 = arith.constant 0 : index
    %76 = vector.load %arg7[%c15, %c8_94, %c0_95] : memref<18x32x4xf32, #tpu.memory_space<vmem>>, vector<1x16x4xf32>
    %77 = vector.shape_cast %76 : vector<1x16x4xf32> to vector<16x4xf32>
    %78 = vector.shape_cast %75 : vector<16x4xf32> to vector<1x16x4xf32>
    tpu.vector_store %arg7[%c15, %c8_94, %c0_95], %78 {strides = array<i32>} : memref<18x32x4xf32, #tpu.memory_space<vmem>>, vector<1x16x4xf32>,
    %c0_96 = arith.constant 0 : index
    %c15_97 = arith.constant 15 : index
    %c0_98 = arith.constant 0 : index
    %c0_99 = arith.constant 0 : index
    %79 = vector.load %arg1[%c0_96, %c15_97, %c0_98, %c0_99] : memref<1x16x16x4xf32, #tpu.memory_space<vmem>>, vector<1x1x16x4xf32>
    %80 = vector.shape_cast %79 : vector<1x1x16x4xf32> to vector<16x4xf32>
    %c16 = arith.constant 16 : index
    %c8_100 = arith.constant 8 : index
    %c0_101 = arith.constant 0 : index
    %81 = vector.load %arg7[%c16, %c8_100, %c0_101] : memref<18x32x4xf32, #tpu.memory_space<vmem>>, vector<1x16x4xf32>
    %82 = vector.shape_cast %81 : vector<1x16x4xf32> to vector<16x4xf32>
    %83 = vector.shape_cast %80 : vector<16x4xf32> to vector<1x16x4xf32>
    tpu.vector_store %arg7[%c16, %c8_100, %c0_101], %83 {strides = array<i32>} : memref<18x32x4xf32, #tpu.memory_space<vmem>>, vector<1x16x4xf32>,
    %c0_102 = arith.constant 0 : index
    %c7_103 = arith.constant 7 : index
    %c0_104 = arith.constant 0 : index
    %84 = vector.load %arg7[%c0_102, %c7_103, %c0_104] : memref<18x32x4xf32, #tpu.memory_space<vmem>>, vector<16x16x4xf32>
    %85 = vector.shape_cast %84 : vector<16x16x4xf32> to vector<256x4xf32>
    %c0_105 = arith.constant 0 : index
    %c8_106 = arith.constant 8 : index
    %c0_107 = arith.constant 0 : index
    %86 = vector.load %arg7[%c0_105, %c8_106, %c0_107] : memref<18x32x4xf32, #tpu.memory_space<vmem>>, vector<16x16x4xf32>
    %87 = vector.shape_cast %86 : vector<16x16x4xf32> to vector<256x4xf32>
    %c0_108 = arith.constant 0 : index
    %c9_109 = arith.constant 9 : index
    %c0_110 = arith.constant 0 : index
    %88 = vector.load %arg7[%c0_108, %c9_109, %c0_110] : memref<18x32x4xf32, #tpu.memory_space<vmem>>, vector<16x16x4xf32>
    %89 = vector.shape_cast %88 : vector<16x16x4xf32> to vector<256x4xf32>
    %c1_111 = arith.constant 1 : index
    %c7_112 = arith.constant 7 : index
    %c0_113 = arith.constant 0 : index
    %90 = vector.load %arg7[%c1_111, %c7_112, %c0_113] : memref<18x32x4xf32, #tpu.memory_space<vmem>>, vector<16x16x4xf32>
    %91 = vector.shape_cast %90 : vector<16x16x4xf32> to vector<256x4xf32>
    %c1_114 = arith.constant 1 : index
    %c8_115 = arith.constant 8 : index
    %c0_116 = arith.constant 0 : index
    %92 = vector.load %arg7[%c1_114, %c8_115, %c0_116] : memref<18x32x4xf32, #tpu.memory_space<vmem>>, vector<16x16x4xf32>
    %93 = vector.shape_cast %92 : vector<16x16x4xf32> to vector<256x4xf32>
    %c1_117 = arith.constant 1 : index
    %c9_118 = arith.constant 9 : index
    %c0_119 = arith.constant 0 : index
    %94 = vector.load %arg7[%c1_117, %c9_118, %c0_119] : memref<18x32x4xf32, #tpu.memory_space<vmem>>, vector<16x16x4xf32>
    %95 = vector.shape_cast %94 : vector<16x16x4xf32> to vector<256x4xf32>
    %c2_120 = arith.constant 2 : index
    %c7_121 = arith.constant 7 : index
    %c0_122 = arith.constant 0 : index
    %96 = vector.load %arg7[%c2_120, %c7_121, %c0_122] : memref<18x32x4xf32, #tpu.memory_space<vmem>>, vector<16x16x4xf32>
    %97 = vector.shape_cast %96 : vector<16x16x4xf32> to vector<256x4xf32>
    %c2_123 = arith.constant 2 : index
    %c8_124 = arith.constant 8 : index
    %c0_125 = arith.constant 0 : index
    %98 = vector.load %arg7[%c2_123, %c8_124, %c0_125] : memref<18x32x4xf32, #tpu.memory_space<vmem>>, vector<16x16x4xf32>
    %99 = vector.shape_cast %98 : vector<16x16x4xf32> to vector<256x4xf32>
    %c2_126 = arith.constant 2 : index
    %c9_127 = arith.constant 9 : index
    %c0_128 = arith.constant 0 : index
    %100 = vector.load %arg7[%c2_126, %c9_127, %c0_128] : memref<18x32x4xf32, #tpu.memory_space<vmem>>, vector<16x16x4xf32>
    %101 = vector.shape_cast %100 : vector<16x16x4xf32> to vector<256x4xf32>
    %102 = tpu.concatenate %85, %87, %89, %91, %93, %95, %97, %99, %101 in 1 : vector<256x4xf32>, vector<256x4xf32>, vector<256x4xf32>, vector<256x4xf32>, vector<256x4xf32>, vector<256x4xf32>, vector<256x4xf32>, vector<256x4xf32>, vector<256x4xf32> -> vector<256x36xf32>
    %c0_129 = arith.constant 0 : index
    %c0_130 = arith.constant 0 : index
    %103 = vector.load %arg2[%c0_129, %c0_130] : memref<36x8xf32, #tpu.memory_space<vmem>>, vector<36x8xf32>
    %cst_131 = arith.constant dense<0.000000e+00> : vector<256x8xf32>
    %104 = tpu.matmul %102, %103, %cst_131 {dimension_numbers = #tpu.dot_dimension_numbers<[1], [0], [0], [1], [0, 0, 1, 1], [], []>} : vector<256x36xf32>, vector<36x8xf32>, vector<256x8xf32> -> vector<256x8xf32>
    %c0_132 = arith.constant 0 : index
    %c0_133 = arith.constant 0 : index
    %105 = vector.load %arg4[%c0_132, %c0_133] : memref<4x8xf32, #tpu.memory_space<vmem>>, vector<1x8xf32>
    %106 = vector.broadcast %105 : vector<1x8xf32> to vector<256x8xf32>
    %107 = arith.mulf %104, %106 : vector<256x8xf32>
    %c1_134 = arith.constant 1 : index
    %c0_135 = arith.constant 0 : index
    %108 = vector.load %arg4[%c1_134, %c0_135] : memref<4x8xf32, #tpu.memory_space<vmem>>, vector<1x8xf32>
    %109 = vector.broadcast %108 : vector<1x8xf32> to vector<256x8xf32>
    %110 = arith.addf %107, %109 : vector<256x8xf32>
    %cst_136 = arith.constant 0.000000e+00 : f32
    %111 = vector.broadcast %cst_136 : f32 to vector<256x8xf32>
    %112 = arith.maximumf %110, %111 : vector<256x8xf32>
    %c0_137 = arith.constant 0 : index
    %c0_138 = arith.constant 0 : index
    %113 = vector.load %arg9[%c0_137, %c0_138] : memref<256x8xf32, #tpu.memory_space<vmem>>, vector<256x8xf32>
    tpu.vector_store %arg9[%c0_137, %c0_138], %112 {strides = array<i32>} : memref<256x8xf32, #tpu.memory_space<vmem>>, vector<256x8xf32>,
    %c0_139 = arith.constant 0 : index
    %c0_140 = arith.constant 0 : index
    %114 = vector.load %arg9[%c0_139, %c0_140] : memref<256x8xf32, #tpu.memory_space<vmem>>, vector<16x8xf32>
    %c1_141 = arith.constant 1 : index
    %c8_142 = arith.constant 8 : index
    %c0_143 = arith.constant 0 : index
    %115 = vector.load %arg8[%c1_141, %c8_142, %c0_143] : memref<18x32x8xf32, #tpu.memory_space<vmem>>, vector<1x16x8xf32>
    %116 = vector.shape_cast %115 : vector<1x16x8xf32> to vector<16x8xf32>
    %117 = vector.shape_cast %114 : vector<16x8xf32> to vector<1x16x8xf32>
    tpu.vector_store %arg8[%c1_141, %c8_142, %c0_143], %117 {strides = array<i32>} : memref<18x32x8xf32, #tpu.memory_space<vmem>>, vector<1x16x8xf32>,
    %c16_144 = arith.constant 16 : index
    %c0_145 = arith.constant 0 : index
    %118 = vector.load %arg9[%c16_144, %c0_145] : memref<256x8xf32, #tpu.memory_space<vmem>>, vector<16x8xf32>
    %c2_146 = arith.constant 2 : index
    %c8_147 = arith.constant 8 : index
    %c0_148 = arith.constant 0 : index
    %119 = vector.load %arg8[%c2_146, %c8_147, %c0_148] : memref<18x32x8xf32, #tpu.memory_space<vmem>>, vector<1x16x8xf32>
    %120 = vector.shape_cast %119 : vector<1x16x8xf32> to vector<16x8xf32>
    %121 = vector.shape_cast %118 : vector<16x8xf32> to vector<1x16x8xf32>
    tpu.vector_store %arg8[%c2_146, %c8_147, %c0_148], %121 {strides = array<i32>} : memref<18x32x8xf32, #tpu.memory_space<vmem>>, vector<1x16x8xf32>,
    %c32 = arith.constant 32 : index
    %c0_149 = arith.constant 0 : index
    %122 = vector.load %arg9[%c32, %c0_149] : memref<256x8xf32, #tpu.memory_space<vmem>>, vector<16x8xf32>
    %c3_150 = arith.constant 3 : index
    %c8_151 = arith.constant 8 : index
    %c0_152 = arith.constant 0 : index
    %123 = vector.load %arg8[%c3_150, %c8_151, %c0_152] : memref<18x32x8xf32, #tpu.memory_space<vmem>>, vector<1x16x8xf32>
    %124 = vector.shape_cast %123 : vector<1x16x8xf32> to vector<16x8xf32>
    %125 = vector.shape_cast %122 : vector<16x8xf32> to vector<1x16x8xf32>
    tpu.vector_store %arg8[%c3_150, %c8_151, %c0_152], %125 {strides = array<i32>} : memref<18x32x8xf32, #tpu.memory_space<vmem>>, vector<1x16x8xf32>,
    %c48 = arith.constant 48 : index
    %c0_153 = arith.constant 0 : index
    %126 = vector.load %arg9[%c48, %c0_153] : memref<256x8xf32, #tpu.memory_space<vmem>>, vector<16x8xf32>
    %c4_154 = arith.constant 4 : index
    %c8_155 = arith.constant 8 : index
    %c0_156 = arith.constant 0 : index
    %127 = vector.load %arg8[%c4_154, %c8_155, %c0_156] : memref<18x32x8xf32, #tpu.memory_space<vmem>>, vector<1x16x8xf32>
    %128 = vector.shape_cast %127 : vector<1x16x8xf32> to vector<16x8xf32>
    %129 = vector.shape_cast %126 : vector<16x8xf32> to vector<1x16x8xf32>
    tpu.vector_store %arg8[%c4_154, %c8_155, %c0_156], %129 {strides = array<i32>} : memref<18x32x8xf32, #tpu.memory_space<vmem>>, vector<1x16x8xf32>,
    %c64 = arith.constant 64 : index
    %c0_157 = arith.constant 0 : index
    %130 = vector.load %arg9[%c64, %c0_157] : memref<256x8xf32, #tpu.memory_space<vmem>>, vector<16x8xf32>
    %c5_158 = arith.constant 5 : index
    %c8_159 = arith.constant 8 : index
    %c0_160 = arith.constant 0 : index
    %131 = vector.load %arg8[%c5_158, %c8_159, %c0_160] : memref<18x32x8xf32, #tpu.memory_space<vmem>>, vector<1x16x8xf32>
    %132 = vector.shape_cast %131 : vector<1x16x8xf32> to vector<16x8xf32>
    %133 = vector.shape_cast %130 : vector<16x8xf32> to vector<1x16x8xf32>
    tpu.vector_store %arg8[%c5_158, %c8_159, %c0_160], %133 {strides = array<i32>} : memref<18x32x8xf32, #tpu.memory_space<vmem>>, vector<1x16x8xf32>,
    %c80 = arith.constant 80 : index
    %c0_161 = arith.constant 0 : index
    %134 = vector.load %arg9[%c80, %c0_161] : memref<256x8xf32, #tpu.memory_space<vmem>>, vector<16x8xf32>
    %c6_162 = arith.constant 6 : index
    %c8_163 = arith.constant 8 : index
    %c0_164 = arith.constant 0 : index
    %135 = vector.load %arg8[%c6_162, %c8_163, %c0_164] : memref<18x32x8xf32, #tpu.memory_space<vmem>>, vector<1x16x8xf32>
    %136 = vector.shape_cast %135 : vector<1x16x8xf32> to vector<16x8xf32>
    %137 = vector.shape_cast %134 : vector<16x8xf32> to vector<1x16x8xf32>
    tpu.vector_store %arg8[%c6_162, %c8_163, %c0_164], %137 {strides = array<i32>} : memref<18x32x8xf32, #tpu.memory_space<vmem>>, vector<1x16x8xf32>,
    %c96 = arith.constant 96 : index
    %c0_165 = arith.constant 0 : index
    %138 = vector.load %arg9[%c96, %c0_165] : memref<256x8xf32, #tpu.memory_space<vmem>>, vector<16x8xf32>
    %c7_166 = arith.constant 7 : index
    %c8_167 = arith.constant 8 : index
    %c0_168 = arith.constant 0 : index
    %139 = vector.load %arg8[%c7_166, %c8_167, %c0_168] : memref<18x32x8xf32, #tpu.memory_space<vmem>>, vector<1x16x8xf32>
    %140 = vector.shape_cast %139 : vector<1x16x8xf32> to vector<16x8xf32>
    %141 = vector.shape_cast %138 : vector<16x8xf32> to vector<1x16x8xf32>
    tpu.vector_store %arg8[%c7_166, %c8_167, %c0_168], %141 {strides = array<i32>} : memref<18x32x8xf32, #tpu.memory_space<vmem>>, vector<1x16x8xf32>,
    %c112 = arith.constant 112 : index
    %c0_169 = arith.constant 0 : index
    %142 = vector.load %arg9[%c112, %c0_169] : memref<256x8xf32, #tpu.memory_space<vmem>>, vector<16x8xf32>
    %c8_170 = arith.constant 8 : index
    %c8_171 = arith.constant 8 : index
    %c0_172 = arith.constant 0 : index
    %143 = vector.load %arg8[%c8_170, %c8_171, %c0_172] : memref<18x32x8xf32, #tpu.memory_space<vmem>>, vector<1x16x8xf32>
    %144 = vector.shape_cast %143 : vector<1x16x8xf32> to vector<16x8xf32>
    %145 = vector.shape_cast %142 : vector<16x8xf32> to vector<1x16x8xf32>
    tpu.vector_store %arg8[%c8_170, %c8_171, %c0_172], %145 {strides = array<i32>} : memref<18x32x8xf32, #tpu.memory_space<vmem>>, vector<1x16x8xf32>,
    %c128 = arith.constant 128 : index
    %c0_173 = arith.constant 0 : index
    %146 = vector.load %arg9[%c128, %c0_173] : memref<256x8xf32, #tpu.memory_space<vmem>>, vector<16x8xf32>
    %c9_174 = arith.constant 9 : index
    %c8_175 = arith.constant 8 : index
    %c0_176 = arith.constant 0 : index
    %147 = vector.load %arg8[%c9_174, %c8_175, %c0_176] : memref<18x32x8xf32, #tpu.memory_space<vmem>>, vector<1x16x8xf32>
    %148 = vector.shape_cast %147 : vector<1x16x8xf32> to vector<16x8xf32>
    %149 = vector.shape_cast %146 : vector<16x8xf32> to vector<1x16x8xf32>
    tpu.vector_store %arg8[%c9_174, %c8_175, %c0_176], %149 {strides = array<i32>} : memref<18x32x8xf32, #tpu.memory_space<vmem>>, vector<1x16x8xf32>,
    %c144 = arith.constant 144 : index
    %c0_177 = arith.constant 0 : index
    %150 = vector.load %arg9[%c144, %c0_177] : memref<256x8xf32, #tpu.memory_space<vmem>>, vector<16x8xf32>
    %c10_178 = arith.constant 10 : index
    %c8_179 = arith.constant 8 : index
    %c0_180 = arith.constant 0 : index
    %151 = vector.load %arg8[%c10_178, %c8_179, %c0_180] : memref<18x32x8xf32, #tpu.memory_space<vmem>>, vector<1x16x8xf32>
    %152 = vector.shape_cast %151 : vector<1x16x8xf32> to vector<16x8xf32>
    %153 = vector.shape_cast %150 : vector<16x8xf32> to vector<1x16x8xf32>
    tpu.vector_store %arg8[%c10_178, %c8_179, %c0_180], %153 {strides = array<i32>} : memref<18x32x8xf32, #tpu.memory_space<vmem>>, vector<1x16x8xf32>,
    %c160 = arith.constant 160 : index
    %c0_181 = arith.constant 0 : index
    %154 = vector.load %arg9[%c160, %c0_181] : memref<256x8xf32, #tpu.memory_space<vmem>>, vector<16x8xf32>
    %c11_182 = arith.constant 11 : index
    %c8_183 = arith.constant 8 : index
    %c0_184 = arith.constant 0 : index
    %155 = vector.load %arg8[%c11_182, %c8_183, %c0_184] : memref<18x32x8xf32, #tpu.memory_space<vmem>>, vector<1x16x8xf32>
    %156 = vector.shape_cast %155 : vector<1x16x8xf32> to vector<16x8xf32>
    %157 = vector.shape_cast %154 : vector<16x8xf32> to vector<1x16x8xf32>
    tpu.vector_store %arg8[%c11_182, %c8_183, %c0_184], %157 {strides = array<i32>} : memref<18x32x8xf32, #tpu.memory_space<vmem>>, vector<1x16x8xf32>,
    %c176 = arith.constant 176 : index
    %c0_185 = arith.constant 0 : index
    %158 = vector.load %arg9[%c176, %c0_185] : memref<256x8xf32, #tpu.memory_space<vmem>>, vector<16x8xf32>
    %c12_186 = arith.constant 12 : index
    %c8_187 = arith.constant 8 : index
    %c0_188 = arith.constant 0 : index
    %159 = vector.load %arg8[%c12_186, %c8_187, %c0_188] : memref<18x32x8xf32, #tpu.memory_space<vmem>>, vector<1x16x8xf32>
    %160 = vector.shape_cast %159 : vector<1x16x8xf32> to vector<16x8xf32>
    %161 = vector.shape_cast %158 : vector<16x8xf32> to vector<1x16x8xf32>
    tpu.vector_store %arg8[%c12_186, %c8_187, %c0_188], %161 {strides = array<i32>} : memref<18x32x8xf32, #tpu.memory_space<vmem>>, vector<1x16x8xf32>,
    %c192 = arith.constant 192 : index
    %c0_189 = arith.constant 0 : index
    %162 = vector.load %arg9[%c192, %c0_189] : memref<256x8xf32, #tpu.memory_space<vmem>>, vector<16x8xf32>
    %c13_190 = arith.constant 13 : index
    %c8_191 = arith.constant 8 : index
    %c0_192 = arith.constant 0 : index
    %163 = vector.load %arg8[%c13_190, %c8_191, %c0_192] : memref<18x32x8xf32, #tpu.memory_space<vmem>>, vector<1x16x8xf32>
    %164 = vector.shape_cast %163 : vector<1x16x8xf32> to vector<16x8xf32>
    %165 = vector.shape_cast %162 : vector<16x8xf32> to vector<1x16x8xf32>
    tpu.vector_store %arg8[%c13_190, %c8_191, %c0_192], %165 {strides = array<i32>} : memref<18x32x8xf32, #tpu.memory_space<vmem>>, vector<1x16x8xf32>,
    %c208 = arith.constant 208 : index
    %c0_193 = arith.constant 0 : index
    %166 = vector.load %arg9[%c208, %c0_193] : memref<256x8xf32, #tpu.memory_space<vmem>>, vector<16x8xf32>
    %c14_194 = arith.constant 14 : index
    %c8_195 = arith.constant 8 : index
    %c0_196 = arith.constant 0 : index
    %167 = vector.load %arg8[%c14_194, %c8_195, %c0_196] : memref<18x32x8xf32, #tpu.memory_space<vmem>>, vector<1x16x8xf32>
    %168 = vector.shape_cast %167 : vector<1x16x8xf32> to vector<16x8xf32>
    %169 = vector.shape_cast %166 : vector<16x8xf32> to vector<1x16x8xf32>
    tpu.vector_store %arg8[%c14_194, %c8_195, %c0_196], %169 {strides = array<i32>} : memref<18x32x8xf32, #tpu.memory_space<vmem>>, vector<1x16x8xf32>,
    %c224 = arith.constant 224 : index
    %c0_197 = arith.constant 0 : index
    %170 = vector.load %arg9[%c224, %c0_197] : memref<256x8xf32, #tpu.memory_space<vmem>>, vector<16x8xf32>
    %c15_198 = arith.constant 15 : index
    %c8_199 = arith.constant 8 : index
    %c0_200 = arith.constant 0 : index
    %171 = vector.load %arg8[%c15_198, %c8_199, %c0_200] : memref<18x32x8xf32, #tpu.memory_space<vmem>>, vector<1x16x8xf32>
    %172 = vector.shape_cast %171 : vector<1x16x8xf32> to vector<16x8xf32>
    %173 = vector.shape_cast %170 : vector<16x8xf32> to vector<1x16x8xf32>
    tpu.vector_store %arg8[%c15_198, %c8_199, %c0_200], %173 {strides = array<i32>} : memref<18x32x8xf32, #tpu.memory_space<vmem>>, vector<1x16x8xf32>,
    %c240 = arith.constant 240 : index
    %c0_201 = arith.constant 0 : index
    %174 = vector.load %arg9[%c240, %c0_201] : memref<256x8xf32, #tpu.memory_space<vmem>>, vector<16x8xf32>
    %c16_202 = arith.constant 16 : index
    %c8_203 = arith.constant 8 : index
    %c0_204 = arith.constant 0 : index
    %175 = vector.load %arg8[%c16_202, %c8_203, %c0_204] : memref<18x32x8xf32, #tpu.memory_space<vmem>>, vector<1x16x8xf32>
    %176 = vector.shape_cast %175 : vector<1x16x8xf32> to vector<16x8xf32>
    %177 = vector.shape_cast %174 : vector<16x8xf32> to vector<1x16x8xf32>
    tpu.vector_store %arg8[%c16_202, %c8_203, %c0_204], %177 {strides = array<i32>} : memref<18x32x8xf32, #tpu.memory_space<vmem>>, vector<1x16x8xf32>,
    %c0_205 = arith.constant 0 : index
    %c7_206 = arith.constant 7 : index
    %c0_207 = arith.constant 0 : index
    %178 = vector.load %arg8[%c0_205, %c7_206, %c0_207] : memref<18x32x8xf32, #tpu.memory_space<vmem>>, vector<16x16x8xf32>
    %179 = vector.shape_cast %178 : vector<16x16x8xf32> to vector<256x8xf32>
    %c0_208 = arith.constant 0 : index
    %c8_209 = arith.constant 8 : index
    %c0_210 = arith.constant 0 : index
    %180 = vector.load %arg8[%c0_208, %c8_209, %c0_210] : memref<18x32x8xf32, #tpu.memory_space<vmem>>, vector<16x16x8xf32>
    %181 = vector.shape_cast %180 : vector<16x16x8xf32> to vector<256x8xf32>
    %c0_211 = arith.constant 0 : index
    %c9_212 = arith.constant 9 : index
    %c0_213 = arith.constant 0 : index
    %182 = vector.load %arg8[%c0_211, %c9_212, %c0_213] : memref<18x32x8xf32, #tpu.memory_space<vmem>>, vector<16x16x8xf32>
    %183 = vector.shape_cast %182 : vector<16x16x8xf32> to vector<256x8xf32>
    %c1_214 = arith.constant 1 : index
    %c7_215 = arith.constant 7 : index
    %c0_216 = arith.constant 0 : index
    %184 = vector.load %arg8[%c1_214, %c7_215, %c0_216] : memref<18x32x8xf32, #tpu.memory_space<vmem>>, vector<16x16x8xf32>
    %185 = vector.shape_cast %184 : vector<16x16x8xf32> to vector<256x8xf32>
    %c1_217 = arith.constant 1 : index
    %c8_218 = arith.constant 8 : index
    %c0_219 = arith.constant 0 : index
    %186 = vector.load %arg8[%c1_217, %c8_218, %c0_219] : memref<18x32x8xf32, #tpu.memory_space<vmem>>, vector<16x16x8xf32>
    %187 = vector.shape_cast %186 : vector<16x16x8xf32> to vector<256x8xf32>
    %c1_220 = arith.constant 1 : index
    %c9_221 = arith.constant 9 : index
    %c0_222 = arith.constant 0 : index
    %188 = vector.load %arg8[%c1_220, %c9_221, %c0_222] : memref<18x32x8xf32, #tpu.memory_space<vmem>>, vector<16x16x8xf32>
    %189 = vector.shape_cast %188 : vector<16x16x8xf32> to vector<256x8xf32>
    %c2_223 = arith.constant 2 : index
    %c7_224 = arith.constant 7 : index
    %c0_225 = arith.constant 0 : index
    %190 = vector.load %arg8[%c2_223, %c7_224, %c0_225] : memref<18x32x8xf32, #tpu.memory_space<vmem>>, vector<16x16x8xf32>
    %191 = vector.shape_cast %190 : vector<16x16x8xf32> to vector<256x8xf32>
    %c2_226 = arith.constant 2 : index
    %c8_227 = arith.constant 8 : index
    %c0_228 = arith.constant 0 : index
    %192 = vector.load %arg8[%c2_226, %c8_227, %c0_228] : memref<18x32x8xf32, #tpu.memory_space<vmem>>, vector<16x16x8xf32>
    %193 = vector.shape_cast %192 : vector<16x16x8xf32> to vector<256x8xf32>
    %c2_229 = arith.constant 2 : index
    %c9_230 = arith.constant 9 : index
    %c0_231 = arith.constant 0 : index
    %194 = vector.load %arg8[%c2_229, %c9_230, %c0_231] : memref<18x32x8xf32, #tpu.memory_space<vmem>>, vector<16x16x8xf32>
    %195 = vector.shape_cast %194 : vector<16x16x8xf32> to vector<256x8xf32>
    %196 = tpu.concatenate %179, %181, %183, %185, %187, %189, %191, %193, %195 in 1 : vector<256x8xf32>, vector<256x8xf32>, vector<256x8xf32>, vector<256x8xf32>, vector<256x8xf32>, vector<256x8xf32>, vector<256x8xf32>, vector<256x8xf32>, vector<256x8xf32> -> vector<256x72xf32>
    %c0_232 = arith.constant 0 : index
    %c0_233 = arith.constant 0 : index
    %197 = vector.load %arg3[%c0_232, %c0_233] : memref<72x8xf32, #tpu.memory_space<vmem>>, vector<72x8xf32>
    %cst_234 = arith.constant dense<0.000000e+00> : vector<256x8xf32>
    %198 = tpu.matmul %196, %197, %cst_234 {dimension_numbers = #tpu.dot_dimension_numbers<[1], [0], [0], [1], [0, 0, 1, 1], [], []>} : vector<256x72xf32>, vector<72x8xf32>, vector<256x8xf32> -> vector<256x8xf32>
    %c2_235 = arith.constant 2 : index
    %c0_236 = arith.constant 0 : index
    %199 = vector.load %arg4[%c2_235, %c0_236] : memref<4x8xf32, #tpu.memory_space<vmem>>, vector<1x8xf32>
    %200 = vector.broadcast %199 : vector<1x8xf32> to vector<256x8xf32>
    %201 = arith.mulf %198, %200 : vector<256x8xf32>
    %c3_237 = arith.constant 3 : index
    %c0_238 = arith.constant 0 : index
    %202 = vector.load %arg4[%c3_237, %c0_238] : memref<4x8xf32, #tpu.memory_space<vmem>>, vector<1x8xf32>
    %203 = vector.broadcast %202 : vector<1x8xf32> to vector<256x8xf32>
    %204 = arith.addf %201, %203 : vector<256x8xf32>
    %cst_239 = arith.constant 0.000000e+00 : f32
    %205 = vector.broadcast %cst_239 : f32 to vector<256x8xf32>
    %206 = arith.maximumf %204, %205 : vector<256x8xf32>
    %207 = vector.shape_cast %206 : vector<256x8xf32> to vector<1x256x8xf32>
    %c0_240 = arith.constant 0 : index
    %c0_241 = arith.constant 0 : index
    %c0_242 = arith.constant 0 : index
    %208 = vector.load %arg5[%c0_240, %c0_241, %c0_242] : memref<1x256x8xf32, #tpu.memory_space<vmem>>, vector<1x256x8xf32>
    tpu.vector_store %arg5[%c0_240, %c0_241, %c0_242], %207 {strides = array<i32>} : memref<1x256x8xf32, #tpu.memory_space<vmem>>, vector<1x256x8xf32>,
    %c0_243 = arith.constant 0 : index
    %c0_244 = arith.constant 0 : index
    %c0_245 = arith.constant 0 : index
    %209 = vector.load %arg5[%c0_243, %c0_244, %c0_245] : memref<1x256x8xf32, #tpu.memory_space<vmem>>, vector<1x16x8xf32>
    %210 = vector.shape_cast %209 : vector<1x16x8xf32> to vector<16x8xf32>
    %c0_246 = arith.constant 0 : index
    %c16_247 = arith.constant 16 : index
    %c0_248 = arith.constant 0 : index
    %211 = vector.load %arg5[%c0_246, %c16_247, %c0_248] : memref<1x256x8xf32, #tpu.memory_space<vmem>>, vector<1x16x8xf32>
    %212 = vector.shape_cast %211 : vector<1x16x8xf32> to vector<16x8xf32>
    %213 = arith.maximumf %210, %212 : vector<16x8xf32>
    %c0_249 = arith.constant 0 : index
    %c0_250 = arith.constant 0 : index
    %c0_251 = arith.constant 0 : index
    %214 = vector.load %arg10[%c0_249, %c0_250, %c0_251] : memref<8x16x8xf32, #tpu.memory_space<vmem>>, vector<1x16x8xf32>
    %215 = vector.shape_cast %214 : vector<1x16x8xf32> to vector<16x8xf32>
    %216 = vector.shape_cast %213 : vector<16x8xf32> to vector<1x16x8xf32>
    tpu.vector_store %arg10[%c0_249, %c0_250, %c0_251], %216 {strides = array<i32>} : memref<8x16x8xf32, #tpu.memory_space<vmem>>, vector<1x16x8xf32>,
    %c0_252 = arith.constant 0 : index
    %c32_253 = arith.constant 32 : index
    %c0_254 = arith.constant 0 : index
    %217 = vector.load %arg5[%c0_252, %c32_253, %c0_254] : memref<1x256x8xf32, #tpu.memory_space<vmem>>, vector<1x16x8xf32>
    %218 = vector.shape_cast %217 : vector<1x16x8xf32> to vector<16x8xf32>
    %c0_255 = arith.constant 0 : index
    %c48_256 = arith.constant 48 : index
    %c0_257 = arith.constant 0 : index
    %219 = vector.load %arg5[%c0_255, %c48_256, %c0_257] : memref<1x256x8xf32, #tpu.memory_space<vmem>>, vector<1x16x8xf32>
    %220 = vector.shape_cast %219 : vector<1x16x8xf32> to vector<16x8xf32>
    %221 = arith.maximumf %218, %220 : vector<16x8xf32>
    %c1_258 = arith.constant 1 : index
    %c0_259 = arith.constant 0 : index
    %c0_260 = arith.constant 0 : index
    %222 = vector.load %arg10[%c1_258, %c0_259, %c0_260] : memref<8x16x8xf32, #tpu.memory_space<vmem>>, vector<1x16x8xf32>
    %223 = vector.shape_cast %222 : vector<1x16x8xf32> to vector<16x8xf32>
    %224 = vector.shape_cast %221 : vector<16x8xf32> to vector<1x16x8xf32>
    tpu.vector_store %arg10[%c1_258, %c0_259, %c0_260], %224 {strides = array<i32>} : memref<8x16x8xf32, #tpu.memory_space<vmem>>, vector<1x16x8xf32>,
    %c0_261 = arith.constant 0 : index
    %c64_262 = arith.constant 64 : index
    %c0_263 = arith.constant 0 : index
    %225 = vector.load %arg5[%c0_261, %c64_262, %c0_263] : memref<1x256x8xf32, #tpu.memory_space<vmem>>, vector<1x16x8xf32>
    %226 = vector.shape_cast %225 : vector<1x16x8xf32> to vector<16x8xf32>
    %c0_264 = arith.constant 0 : index
    %c80_265 = arith.constant 80 : index
    %c0_266 = arith.constant 0 : index
    %227 = vector.load %arg5[%c0_264, %c80_265, %c0_266] : memref<1x256x8xf32, #tpu.memory_space<vmem>>, vector<1x16x8xf32>
    %228 = vector.shape_cast %227 : vector<1x16x8xf32> to vector<16x8xf32>
    %229 = arith.maximumf %226, %228 : vector<16x8xf32>
    %c2_267 = arith.constant 2 : index
    %c0_268 = arith.constant 0 : index
    %c0_269 = arith.constant 0 : index
    %230 = vector.load %arg10[%c2_267, %c0_268, %c0_269] : memref<8x16x8xf32, #tpu.memory_space<vmem>>, vector<1x16x8xf32>
    %231 = vector.shape_cast %230 : vector<1x16x8xf32> to vector<16x8xf32>
    %232 = vector.shape_cast %229 : vector<16x8xf32> to vector<1x16x8xf32>
    tpu.vector_store %arg10[%c2_267, %c0_268, %c0_269], %232 {strides = array<i32>} : memref<8x16x8xf32, #tpu.memory_space<vmem>>, vector<1x16x8xf32>,
    %c0_270 = arith.constant 0 : index
    %c96_271 = arith.constant 96 : index
    %c0_272 = arith.constant 0 : index
    %233 = vector.load %arg5[%c0_270, %c96_271, %c0_272] : memref<1x256x8xf32, #tpu.memory_space<vmem>>, vector<1x16x8xf32>
    %234 = vector.shape_cast %233 : vector<1x16x8xf32> to vector<16x8xf32>
    %c0_273 = arith.constant 0 : index
    %c112_274 = arith.constant 112 : index
    %c0_275 = arith.constant 0 : index
    %235 = vector.load %arg5[%c0_273, %c112_274, %c0_275] : memref<1x256x8xf32, #tpu.memory_space<vmem>>, vector<1x16x8xf32>
    %236 = vector.shape_cast %235 : vector<1x16x8xf32> to vector<16x8xf32>
    %237 = arith.maximumf %234, %236 : vector<16x8xf32>
    %c3_276 = arith.constant 3 : index
    %c0_277 = arith.constant 0 : index
    %c0_278 = arith.constant 0 : index
    %238 = vector.load %arg10[%c3_276, %c0_277, %c0_278] : memref<8x16x8xf32, #tpu.memory_space<vmem>>, vector<1x16x8xf32>
    %239 = vector.shape_cast %238 : vector<1x16x8xf32> to vector<16x8xf32>
    %240 = vector.shape_cast %237 : vector<16x8xf32> to vector<1x16x8xf32>
    tpu.vector_store %arg10[%c3_276, %c0_277, %c0_278], %240 {strides = array<i32>} : memref<8x16x8xf32, #tpu.memory_space<vmem>>, vector<1x16x8xf32>,
    %c0_279 = arith.constant 0 : index
    %c128_280 = arith.constant 128 : index
    %c0_281 = arith.constant 0 : index
    %241 = vector.load %arg5[%c0_279, %c128_280, %c0_281] : memref<1x256x8xf32, #tpu.memory_space<vmem>>, vector<1x16x8xf32>
    %242 = vector.shape_cast %241 : vector<1x16x8xf32> to vector<16x8xf32>
    %c0_282 = arith.constant 0 : index
    %c144_283 = arith.constant 144 : index
    %c0_284 = arith.constant 0 : index
    %243 = vector.load %arg5[%c0_282, %c144_283, %c0_284] : memref<1x256x8xf32, #tpu.memory_space<vmem>>, vector<1x16x8xf32>
    %244 = vector.shape_cast %243 : vector<1x16x8xf32> to vector<16x8xf32>
    %245 = arith.maximumf %242, %244 : vector<16x8xf32>
    %c4_285 = arith.constant 4 : index
    %c0_286 = arith.constant 0 : index
    %c0_287 = arith.constant 0 : index
    %246 = vector.load %arg10[%c4_285, %c0_286, %c0_287] : memref<8x16x8xf32, #tpu.memory_space<vmem>>, vector<1x16x8xf32>
    %247 = vector.shape_cast %246 : vector<1x16x8xf32> to vector<16x8xf32>
    %248 = vector.shape_cast %245 : vector<16x8xf32> to vector<1x16x8xf32>
    tpu.vector_store %arg10[%c4_285, %c0_286, %c0_287], %248 {strides = array<i32>} : memref<8x16x8xf32, #tpu.memory_space<vmem>>, vector<1x16x8xf32>,
    %c0_288 = arith.constant 0 : index
    %c160_289 = arith.constant 160 : index
    %c0_290 = arith.constant 0 : index
    %249 = vector.load %arg5[%c0_288, %c160_289, %c0_290] : memref<1x256x8xf32, #tpu.memory_space<vmem>>, vector<1x16x8xf32>
    %250 = vector.shape_cast %249 : vector<1x16x8xf32> to vector<16x8xf32>
    %c0_291 = arith.constant 0 : index
    %c176_292 = arith.constant 176 : index
    %c0_293 = arith.constant 0 : index
    %251 = vector.load %arg5[%c0_291, %c176_292, %c0_293] : memref<1x256x8xf32, #tpu.memory_space<vmem>>, vector<1x16x8xf32>
    %252 = vector.shape_cast %251 : vector<1x16x8xf32> to vector<16x8xf32>
    %253 = arith.maximumf %250, %252 : vector<16x8xf32>
    %c5_294 = arith.constant 5 : index
    %c0_295 = arith.constant 0 : index
    %c0_296 = arith.constant 0 : index
    %254 = vector.load %arg10[%c5_294, %c0_295, %c0_296] : memref<8x16x8xf32, #tpu.memory_space<vmem>>, vector<1x16x8xf32>
    %255 = vector.shape_cast %254 : vector<1x16x8xf32> to vector<16x8xf32>
    %256 = vector.shape_cast %253 : vector<16x8xf32> to vector<1x16x8xf32>
    tpu.vector_store %arg10[%c5_294, %c0_295, %c0_296], %256 {strides = array<i32>} : memref<8x16x8xf32, #tpu.memory_space<vmem>>, vector<1x16x8xf32>,
    %c0_297 = arith.constant 0 : index
    %c192_298 = arith.constant 192 : index
    %c0_299 = arith.constant 0 : index
    %257 = vector.load %arg5[%c0_297, %c192_298, %c0_299] : memref<1x256x8xf32, #tpu.memory_space<vmem>>, vector<1x16x8xf32>
    %258 = vector.shape_cast %257 : vector<1x16x8xf32> to vector<16x8xf32>
    %c0_300 = arith.constant 0 : index
    %c208_301 = arith.constant 208 : index
    %c0_302 = arith.constant 0 : index
    %259 = vector.load %arg5[%c0_300, %c208_301, %c0_302] : memref<1x256x8xf32, #tpu.memory_space<vmem>>, vector<1x16x8xf32>
    %260 = vector.shape_cast %259 : vector<1x16x8xf32> to vector<16x8xf32>
    %261 = arith.maximumf %258, %260 : vector<16x8xf32>
    %c6_303 = arith.constant 6 : index
    %c0_304 = arith.constant 0 : index
    %c0_305 = arith.constant 0 : index
    %262 = vector.load %arg10[%c6_303, %c0_304, %c0_305] : memref<8x16x8xf32, #tpu.memory_space<vmem>>, vector<1x16x8xf32>
    %263 = vector.shape_cast %262 : vector<1x16x8xf32> to vector<16x8xf32>
    %264 = vector.shape_cast %261 : vector<16x8xf32> to vector<1x16x8xf32>
    tpu.vector_store %arg10[%c6_303, %c0_304, %c0_305], %264 {strides = array<i32>} : memref<8x16x8xf32, #tpu.memory_space<vmem>>, vector<1x16x8xf32>,
    %c0_306 = arith.constant 0 : index
    %c224_307 = arith.constant 224 : index
    %c0_308 = arith.constant 0 : index
    %265 = vector.load %arg5[%c0_306, %c224_307, %c0_308] : memref<1x256x8xf32, #tpu.memory_space<vmem>>, vector<1x16x8xf32>
    %266 = vector.shape_cast %265 : vector<1x16x8xf32> to vector<16x8xf32>
    %c0_309 = arith.constant 0 : index
    %c240_310 = arith.constant 240 : index
    %c0_311 = arith.constant 0 : index
    %267 = vector.load %arg5[%c0_309, %c240_310, %c0_311] : memref<1x256x8xf32, #tpu.memory_space<vmem>>, vector<1x16x8xf32>
    %268 = vector.shape_cast %267 : vector<1x16x8xf32> to vector<16x8xf32>
    %269 = arith.maximumf %266, %268 : vector<16x8xf32>
    %c7_312 = arith.constant 7 : index
    %c0_313 = arith.constant 0 : index
    %c0_314 = arith.constant 0 : index
    %270 = vector.load %arg10[%c7_312, %c0_313, %c0_314] : memref<8x16x8xf32, #tpu.memory_space<vmem>>, vector<1x16x8xf32>
    %271 = vector.shape_cast %270 : vector<1x16x8xf32> to vector<16x8xf32>
    %272 = vector.shape_cast %269 : vector<16x8xf32> to vector<1x16x8xf32>
    tpu.vector_store %arg10[%c7_312, %c0_313, %c0_314], %272 {strides = array<i32>} : memref<8x16x8xf32, #tpu.memory_space<vmem>>, vector<1x16x8xf32>,
    %c0_315 = arith.constant 0 : index
    %c0_316 = arith.constant 0 : index
    %c0_317 = arith.constant 0 : index
    %273 = vector.load %arg10[%c0_315, %c0_316, %c0_317] : memref<8x16x8xf32, #tpu.memory_space<vmem>>, vector<8x1x8xf32>
    %c0_318 = arith.constant 0 : index
    %c1_319 = arith.constant 1 : index
    %c0_320 = arith.constant 0 : index
    %274 = vector.load %arg10[%c0_318, %c1_319, %c0_320] : memref<8x16x8xf32, #tpu.memory_space<vmem>>, vector<8x1x8xf32>
    %275 = arith.maximumf %273, %274 : vector<8x1x8xf32>
    %c0_321 = arith.constant 0 : index
    %c0_322 = arith.constant 0 : index
    %c0_323 = arith.constant 0 : index
    %c0_324 = arith.constant 0 : index
    %276 = vector.load %arg6[%c0_321, %c0_322, %c0_323, %c0_324] : memref<1x8x8x8xf32, #tpu.memory_space<vmem>>, vector<1x8x1x8xf32>
    %277 = vector.shape_cast %276 : vector<1x8x1x8xf32> to vector<8x1x8xf32>
    %278 = vector.shape_cast %275 : vector<8x1x8xf32> to vector<1x8x1x8xf32>
    tpu.vector_store %arg6[%c0_321, %c0_322, %c0_323, %c0_324], %278 {strides = array<i32>} : memref<1x8x8x8xf32, #tpu.memory_space<vmem>>, vector<1x8x1x8xf32>,
    %c0_325 = arith.constant 0 : index
    %c2_326 = arith.constant 2 : index
    %c0_327 = arith.constant 0 : index
    %279 = vector.load %arg10[%c0_325, %c2_326, %c0_327] : memref<8x16x8xf32, #tpu.memory_space<vmem>>, vector<8x1x8xf32>
    %c0_328 = arith.constant 0 : index
    %c3_329 = arith.constant 3 : index
    %c0_330 = arith.constant 0 : index
    %280 = vector.load %arg10[%c0_328, %c3_329, %c0_330] : memref<8x16x8xf32, #tpu.memory_space<vmem>>, vector<8x1x8xf32>
    %281 = arith.maximumf %279, %280 : vector<8x1x8xf32>
    %c0_331 = arith.constant 0 : index
    %c0_332 = arith.constant 0 : index
    %c1_333 = arith.constant 1 : index
    %c0_334 = arith.constant 0 : index
    %282 = vector.load %arg6[%c0_331, %c0_332, %c1_333, %c0_334] : memref<1x8x8x8xf32, #tpu.memory_space<vmem>>, vector<1x8x1x8xf32>
    %283 = vector.shape_cast %282 : vector<1x8x1x8xf32> to vector<8x1x8xf32>
    %284 = vector.shape_cast %281 : vector<8x1x8xf32> to vector<1x8x1x8xf32>
    tpu.vector_store %arg6[%c0_331, %c0_332, %c1_333, %c0_334], %284 {strides = array<i32>} : memref<1x8x8x8xf32, #tpu.memory_space<vmem>>, vector<1x8x1x8xf32>,
    %c0_335 = arith.constant 0 : index
    %c4_336 = arith.constant 4 : index
    %c0_337 = arith.constant 0 : index
    %285 = vector.load %arg10[%c0_335, %c4_336, %c0_337] : memref<8x16x8xf32, #tpu.memory_space<vmem>>, vector<8x1x8xf32>
    %c0_338 = arith.constant 0 : index
    %c5_339 = arith.constant 5 : index
    %c0_340 = arith.constant 0 : index
    %286 = vector.load %arg10[%c0_338, %c5_339, %c0_340] : memref<8x16x8xf32, #tpu.memory_space<vmem>>, vector<8x1x8xf32>
    %287 = arith.maximumf %285, %286 : vector<8x1x8xf32>
    %c0_341 = arith.constant 0 : index
    %c0_342 = arith.constant 0 : index
    %c2_343 = arith.constant 2 : index
    %c0_344 = arith.constant 0 : index
    %288 = vector.load %arg6[%c0_341, %c0_342, %c2_343, %c0_344] : memref<1x8x8x8xf32, #tpu.memory_space<vmem>>, vector<1x8x1x8xf32>
    %289 = vector.shape_cast %288 : vector<1x8x1x8xf32> to vector<8x1x8xf32>
    %290 = vector.shape_cast %287 : vector<8x1x8xf32> to vector<1x8x1x8xf32>
    tpu.vector_store %arg6[%c0_341, %c0_342, %c2_343, %c0_344], %290 {strides = array<i32>} : memref<1x8x8x8xf32, #tpu.memory_space<vmem>>, vector<1x8x1x8xf32>,
    %c0_345 = arith.constant 0 : index
    %c6_346 = arith.constant 6 : index
    %c0_347 = arith.constant 0 : index
    %291 = vector.load %arg10[%c0_345, %c6_346, %c0_347] : memref<8x16x8xf32, #tpu.memory_space<vmem>>, vector<8x1x8xf32>
    %c0_348 = arith.constant 0 : index
    %c7_349 = arith.constant 7 : index
    %c0_350 = arith.constant 0 : index
    %292 = vector.load %arg10[%c0_348, %c7_349, %c0_350] : memref<8x16x8xf32, #tpu.memory_space<vmem>>, vector<8x1x8xf32>
    %293 = arith.maximumf %291, %292 : vector<8x1x8xf32>
    %c0_351 = arith.constant 0 : index
    %c0_352 = arith.constant 0 : index
    %c3_353 = arith.constant 3 : index
    %c0_354 = arith.constant 0 : index
    %294 = vector.load %arg6[%c0_351, %c0_352, %c3_353, %c0_354] : memref<1x8x8x8xf32, #tpu.memory_space<vmem>>, vector<1x8x1x8xf32>
    %295 = vector.shape_cast %294 : vector<1x8x1x8xf32> to vector<8x1x8xf32>
    %296 = vector.shape_cast %293 : vector<8x1x8xf32> to vector<1x8x1x8xf32>
    tpu.vector_store %arg6[%c0_351, %c0_352, %c3_353, %c0_354], %296 {strides = array<i32>} : memref<1x8x8x8xf32, #tpu.memory_space<vmem>>, vector<1x8x1x8xf32>,
    %c0_355 = arith.constant 0 : index
    %c8_356 = arith.constant 8 : index
    %c0_357 = arith.constant 0 : index
    %297 = vector.load %arg10[%c0_355, %c8_356, %c0_357] : memref<8x16x8xf32, #tpu.memory_space<vmem>>, vector<8x1x8xf32>
    %c0_358 = arith.constant 0 : index
    %c9_359 = arith.constant 9 : index
    %c0_360 = arith.constant 0 : index
    %298 = vector.load %arg10[%c0_358, %c9_359, %c0_360] : memref<8x16x8xf32, #tpu.memory_space<vmem>>, vector<8x1x8xf32>
    %299 = arith.maximumf %297, %298 : vector<8x1x8xf32>
    %c0_361 = arith.constant 0 : index
    %c0_362 = arith.constant 0 : index
    %c4_363 = arith.constant 4 : index
    %c0_364 = arith.constant 0 : index
    %300 = vector.load %arg6[%c0_361, %c0_362, %c4_363, %c0_364] : memref<1x8x8x8xf32, #tpu.memory_space<vmem>>, vector<1x8x1x8xf32>
    %301 = vector.shape_cast %300 : vector<1x8x1x8xf32> to vector<8x1x8xf32>
    %302 = vector.shape_cast %299 : vector<8x1x8xf32> to vector<1x8x1x8xf32>
    tpu.vector_store %arg6[%c0_361, %c0_362, %c4_363, %c0_364], %302 {strides = array<i32>} : memref<1x8x8x8xf32, #tpu.memory_space<vmem>>, vector<1x8x1x8xf32>,
    %c0_365 = arith.constant 0 : index
    %c10_366 = arith.constant 10 : index
    %c0_367 = arith.constant 0 : index
    %303 = vector.load %arg10[%c0_365, %c10_366, %c0_367] : memref<8x16x8xf32, #tpu.memory_space<vmem>>, vector<8x1x8xf32>
    %c0_368 = arith.constant 0 : index
    %c11_369 = arith.constant 11 : index
    %c0_370 = arith.constant 0 : index
    %304 = vector.load %arg10[%c0_368, %c11_369, %c0_370] : memref<8x16x8xf32, #tpu.memory_space<vmem>>, vector<8x1x8xf32>
    %305 = arith.maximumf %303, %304 : vector<8x1x8xf32>
    %c0_371 = arith.constant 0 : index
    %c0_372 = arith.constant 0 : index
    %c5_373 = arith.constant 5 : index
    %c0_374 = arith.constant 0 : index
    %306 = vector.load %arg6[%c0_371, %c0_372, %c5_373, %c0_374] : memref<1x8x8x8xf32, #tpu.memory_space<vmem>>, vector<1x8x1x8xf32>
    %307 = vector.shape_cast %306 : vector<1x8x1x8xf32> to vector<8x1x8xf32>
    %308 = vector.shape_cast %305 : vector<8x1x8xf32> to vector<1x8x1x8xf32>
    tpu.vector_store %arg6[%c0_371, %c0_372, %c5_373, %c0_374], %308 {strides = array<i32>} : memref<1x8x8x8xf32, #tpu.memory_space<vmem>>, vector<1x8x1x8xf32>,
    %c0_375 = arith.constant 0 : index
    %c12_376 = arith.constant 12 : index
    %c0_377 = arith.constant 0 : index
    %309 = vector.load %arg10[%c0_375, %c12_376, %c0_377] : memref<8x16x8xf32, #tpu.memory_space<vmem>>, vector<8x1x8xf32>
    %c0_378 = arith.constant 0 : index
    %c13_379 = arith.constant 13 : index
    %c0_380 = arith.constant 0 : index
    %310 = vector.load %arg10[%c0_378, %c13_379, %c0_380] : memref<8x16x8xf32, #tpu.memory_space<vmem>>, vector<8x1x8xf32>
    %311 = arith.maximumf %309, %310 : vector<8x1x8xf32>
    %c0_381 = arith.constant 0 : index
    %c0_382 = arith.constant 0 : index
    %c6_383 = arith.constant 6 : index
    %c0_384 = arith.constant 0 : index
    %312 = vector.load %arg6[%c0_381, %c0_382, %c6_383, %c0_384] : memref<1x8x8x8xf32, #tpu.memory_space<vmem>>, vector<1x8x1x8xf32>
    %313 = vector.shape_cast %312 : vector<1x8x1x8xf32> to vector<8x1x8xf32>
    %314 = vector.shape_cast %311 : vector<8x1x8xf32> to vector<1x8x1x8xf32>
    tpu.vector_store %arg6[%c0_381, %c0_382, %c6_383, %c0_384], %314 {strides = array<i32>} : memref<1x8x8x8xf32, #tpu.memory_space<vmem>>, vector<1x8x1x8xf32>,
    %c0_385 = arith.constant 0 : index
    %c14_386 = arith.constant 14 : index
    %c0_387 = arith.constant 0 : index
    %315 = vector.load %arg10[%c0_385, %c14_386, %c0_387] : memref<8x16x8xf32, #tpu.memory_space<vmem>>, vector<8x1x8xf32>
    %c0_388 = arith.constant 0 : index
    %c15_389 = arith.constant 15 : index
    %c0_390 = arith.constant 0 : index
    %316 = vector.load %arg10[%c0_388, %c15_389, %c0_390] : memref<8x16x8xf32, #tpu.memory_space<vmem>>, vector<8x1x8xf32>
    %317 = arith.maximumf %315, %316 : vector<8x1x8xf32>
    %c0_391 = arith.constant 0 : index
    %c0_392 = arith.constant 0 : index
    %c7_393 = arith.constant 7 : index
    %c0_394 = arith.constant 0 : index
    %318 = vector.load %arg6[%c0_391, %c0_392, %c7_393, %c0_394] : memref<1x8x8x8xf32, #tpu.memory_space<vmem>>, vector<1x8x1x8xf32>
    %319 = vector.shape_cast %318 : vector<1x8x1x8xf32> to vector<8x1x8xf32>
    %320 = vector.shape_cast %317 : vector<8x1x8xf32> to vector<1x8x1x8xf32>
    tpu.vector_store %arg6[%c0_391, %c0_392, %c7_393, %c0_394], %320 {strides = array<i32>} : memref<1x8x8x8xf32, #tpu.memory_space<vmem>>, vector<1x8x1x8xf32>,
    return
  }
  func.func @transform_0(%arg0: i32) -> (i32, i32, i32, i32) {
    %c0_i32 = arith.constant 0 : i32
    %c0_i32_0 = arith.constant 0 : i32
    %c0_i32_1 = arith.constant 0 : i32
    %c0_i32_2 = arith.constant 0 : i32
    return %arg0, %c0_i32, %c0_i32_0, %c0_i32_1 : i32, i32, i32, i32
  }
  func.func @transform_1(%arg0: i32) -> (i32, i32) {
    %c0_i32 = arith.constant 0 : i32
    %c0_i32_0 = arith.constant 0 : i32
    %c0_i32_1 = arith.constant 0 : i32
    return %c0_i32, %c0_i32_0 : i32, i32
  }
  func.func @transform_2(%arg0: i32) -> (i32, i32) {
    %c0_i32 = arith.constant 0 : i32
    %c0_i32_0 = arith.constant 0 : i32
    %c0_i32_1 = arith.constant 0 : i32
    return %c0_i32, %c0_i32_0 : i32, i32
  }
  func.func @transform_3(%arg0: i32) -> (i32, i32) {
    %c0_i32 = arith.constant 0 : i32
    %c0_i32_0 = arith.constant 0 : i32
    %c0_i32_1 = arith.constant 0 : i32
    return %c0_i32, %c0_i32_0 : i32, i32
  }
  func.func @transform_4(%arg0: i32) -> (i32, i32, i32) {
    %c0_i32 = arith.constant 0 : i32
    %c0_i32_0 = arith.constant 0 : i32
    %c0_i32_1 = arith.constant 0 : i32
    return %arg0, %c0_i32, %c0_i32_0 : i32, i32, i32
  }
  func.func @transform_5(%arg0: i32) -> (i32, i32, i32, i32) {
    %c0_i32 = arith.constant 0 : i32
    %c0_i32_0 = arith.constant 0 : i32
    %c0_i32_1 = arith.constant 0 : i32
    %c0_i32_2 = arith.constant 0 : i32
    return %arg0, %c0_i32, %c0_i32_0, %c0_i32_1 : i32, i32, i32, i32
  }
}

</mosaic_0001>

<llo_original>
// kernel: down_block_forward.1
$region0: #{down_block_forward.1}
  #allocation0 [shape = 'u32[]', space=smem, size = 0x4, offset = 0x4, fixed_abs, tag = 'smem constant byte address 0x4 - core index']
  #allocation1 [shape = 'u32[144,128]{1,0:T(1,128)}', space=vmem, size = 0x12000, scoped, tag = 'internal scratch']
  #allocation2 [shape = 'f32[18,32,4]{2,1,0:T(8,128)}', space=vmem, size = 0x48000, scoped, tag = 'scratch operand']
  #allocation3 [shape = 'f32[18,32,8]{2,1,0:T(8,128)}', space=vmem, size = 0x48000, scoped, tag = 'scratch operand']
  #allocation4 [shape = 'f32[256,8]{1,0:T(8,128)}', space=vmem, size = 0x20000, scoped, tag = 'scratch operand']
  #allocation5 [shape = 'f32[8,16,8]{2,1,0:T(8,128)}', space=vmem, size = 0x10000, scoped, tag = 'scratch operand']
  %s0 = inlined_call_operand.vmem [shape: f32[2,16,16,4], index: 0, kind: input, shape index: {}]
  %s1 = inlined_call_operand.vmem [shape: f32[36,8], index: 1, kind: input, shape index: {}]
  %s2 = inlined_call_operand.vmem [shape: f32[72,8], index: 2, kind: input, shape index: {}]
  %s3 = inlined_call_operand.vmem [shape: f32[4,8], index: 3, kind: input, shape index: {}]
  %s4 = inlined_call_operand.vmem [shape: f32[2,256,8], index: 4, kind: output, shape index: {0}]
  %s5 = inlined_call_operand.vmem [shape: f32[2,8,8,8], index: 5, kind: output, shape index: {1}]
  %6 = xla_tuple %s4, %s5
  %s7 = sld [smem:[#allocation0]]
  $region57: #{down_block_forward.1} parent=0
    _
  %s9 = ssub.s32 1, %s7
  %s10 = scalar_select 0, %s9, %s7
  loop: start=0, step=1, limit=4
  $region2: #{down_block_forward.1} parent=0 // loop_pre_header
    _
  $region3: #{down_block_forward.1} parent=0 // loop_header
    %s12 = sphi 0, %s16
    %p13 = scmp.ge.s32.totalorder %s12, 4
    %s22 = sphi 0, %s24
    %s25 = sphi 0, %s22
    %s26 = sphi 0, %s25
    %s42 = sphi 0, %s26
    %s46 = sphi 0, %s46
    %s48 = sphi 0, %s46
    %s49 = sphi 0, %s48
    %s63 = sphi 0, %s49
    %s67 = sphi 0, %s67
    %s69 = sphi 0, %s67
    %s70 = sphi 0, %s69
    %s84 = sphi 0, %s70
    %s88 = sphi 0, %s88
    %s90 = sphi 0, %s88
    %s91 = sphi 0, %s90
    %s105 = sphi 0, %s91
    %s111 = sphi 0, %s113
    %s114 = sphi 0, %s111
    %s115 = sphi 0, %s114
    %s131 = sphi 0, %s115
    %s137 = sphi 0, %s139
    %s140 = sphi 0, %s137
    %s141 = sphi 0, %s140
    %s157 = sphi 0, %s141
  $region4: #{down_block_forward.1} parent=0 // loop_header_branch
    %15 = sbr.rel (%p13) target = $region8
  $region5: #{down_block_forward.1} parent=0 // loop_body
    %s17 = ssub.s32 %s12, 1
    %s18 = ssub.s32 %s12, 2
    %s19 = sadd.s32 %s12, 1
    %s20 = ssub.s32 %s12, %s19
    %p21 = scmp.eq.s32.totalorder %s20, 0
    %s23 = sadd.s32 %s22, 1
    %s24 = scalar_select %p21, %s22, %s23
    %p27 = pneg %p21
    %p28 = scmp.eq.s32.totalorder %s12, 1
    %p29 = por %p27, %p28
    %p30 = scmp.ne.s32.totalorder %s22, %s25
    %p31 = scmp.eq.s32.totalorder %s12, 0
    %p32 = por %p30, %p31
    %p33 = scmp.ne.s32.totalorder %s22, %s25
    %p34 = scmp.eq.s32.totalorder %s17, 1
    %p35 = por %p33, %p34
    %p36 = scmp.ne.s32.totalorder %s25, %s26
    %p37 = scmp.eq.s32.totalorder %s17, 0
    %p38 = por %p36, %p37
    %p39 = scmp.ne.s32.totalorder %s25, %s26
    %p40 = scmp.eq.s32.totalorder %s18, 1
    %p41 = por %p39, %p40
    %p43 = scmp.ne.s32.totalorder %s26, %s42
    %p44 = scmp.eq.s32.totalorder %s18, 0
    %p45 = por %p43, %p44
    %s47 = sadd.s32 %s46, 1
    %p50 = scmp.eq.s32.totalorder %s12, 1
    %p51 = scmp.ne.s32.totalorder %s46, %s48
    %p52 = scmp.eq.s32.totalorder %s12, 0
    %p53 = por %p51, %p52
    %p54 = scmp.ne.s32.totalorder %s46, %s48
    %p55 = scmp.eq.s32.totalorder %s17, 1
    %p56 = por %p54, %p55
    %p57 = scmp.ne.s32.totalorder %s48, %s49
    %p58 = scmp.eq.s32.totalorder %s17, 0
    %p59 = por %p57, %p58
    %p60 = scmp.ne.s32.totalorder %s48, %s49
    %p61 = scmp.eq.s32.totalorder %s18, 1
    %p62 = por %p60, %p61
    %p64 = scmp.ne.s32.totalorder %s49, %s63
    %p65 = scmp.eq.s32.totalorder %s18, 0
    %p66 = por %p64, %p65
    %s68 = sadd.s32 %s67, 1
    %p71 = scmp.eq.s32.totalorder %s12, 1
    %p72 = scmp.ne.s32.totalorder %s67, %s69
    %p73 = scmp.eq.s32.totalorder %s12, 0
    %p74 = por %p72, %p73
    %p75 = scmp.ne.s32.totalorder %s67, %s69
    %p76 = scmp.eq.s32.totalorder %s17, 1
    %p77 = por %p75, %p76
    %p78 = scmp.ne.s32.totalorder %s69, %s70
    %p79 = scmp.eq.s32.totalorder %s17, 0
    %p80 = por %p78, %p79
    %p81 = scmp.ne.s32.totalorder %s69, %s70
    %p82 = scmp.eq.s32.totalorder %s18, 1
    %p83 = por %p81, %p82
    %p85 = scmp.ne.s32.totalorder %s70, %s84
    %p86 = scmp.eq.s32.totalorder %s18, 0
    %p87 = por %p85, %p86
    %s89 = sadd.s32 %s88, 1
    %p92 = scmp.eq.s32.totalorder %s12, 1
    %p93 = scmp.ne.s32.totalorder %s88, %s90
    %p94 = scmp.eq.s32.totalorder %s12, 0
    %p95 = por %p93, %p94
    %p96 = scmp.ne.s32.totalorder %s88, %s90
    %p97 = scmp.eq.s32.totalorder %s17, 1
    %p98 = por %p96, %p97
    %p99 = scmp.ne.s32.totalorder %s90, %s91
    %p100 = scmp.eq.s32.totalorder %s17, 0
    %p101 = por %p99, %p100
    %p102 = scmp.ne.s32.totalorder %s90, %s91
    %p103 = scmp.eq.s32.totalorder %s18, 1
    %p104 = por %p102, %p103
    %p106 = scmp.ne.s32.totalorder %s91, %s105
    %p107 = scmp.eq.s32.totalorder %s18, 0
    %p108 = por %p106, %p107
    %s109 = ssub.s32 %s12, %s19
    %p110 = scmp.eq.s32.totalorder %s109, 0
    %s112 = sadd.s32 %s111, 1
    %s113 = scalar_select %p110, %s111, %s112
    %p116 = pneg %p110
    %p117 = scmp.eq.s32.totalorder %s12, 1
    %p118 = por %p116, %p117
    %p119 = scmp.ne.s32.totalorder %s111, %s114
    %p120 = scmp.eq.s32.totalorder %s12, 0
    %p121 = por %p119, %p120
    %p122 = scmp.ne.s32.totalorder %s111, %s114
    %p123 = scmp.eq.s32.totalorder %s17, 1
    %p124 = por %p122, %p123
    %p125 = scmp.ne.s32.totalorder %s114, %s115
    %p126 = scmp.eq.s32.totalorder %s17, 0
    %p127 = por %p125, %p126
    %p128 = scmp.ne.s32.totalorder %s114, %s115
    %p129 = scmp.eq.s32.totalorder %s18, 1
    %p130 = por %p128, %p129
    %p132 = scmp.ne.s32.totalorder %s115, %s131
    %p133 = scmp.eq.s32.totalorder %s18, 0
    %p134 = por %p132, %p133
    %s135 = ssub.s32 %s12, %s19
    %p136 = scmp.eq.s32.totalorder %s135, 0
    %s138 = sadd.s32 %s137, 1
    %s139 = scalar_select %p136, %s137, %s138
    %p142 = pneg %p136
    %p143 = scmp.eq.s32.totalorder %s12, 1
    %p144 = por %p142, %p143
    %p145 = scmp.ne.s32.totalorder %s137, %s140
    %p146 = scmp.eq.s32.totalorder %s12, 0
    %p147 = por %p145, %p146
    %p148 = scmp.ne.s32.totalorder %s137, %s140
    %p149 = scmp.eq.s32.totalorder %s17, 1
    %p150 = por %p148, %p149
    %p151 = scmp.ne.s32.totalorder %s140, %s141
    %p152 = scmp.eq.s32.totalorder %s17, 0
    %p153 = por %p151, %p152
    %p154 = scmp.ne.s32.totalorder %s140, %s141
    %p155 = scmp.eq.s32.totalorder %s18, 1
    %p156 = por %p154, %p155
    %p158 = scmp.ne.s32.totalorder %s141, %s157
    %p159 = scmp.eq.s32.totalorder %s18, 0
    %p160 = por %p158, %p159
    %p161 = scmp.le.s32.totalorder 1, %s12
    %p162 = scmp.lt.s32.totalorder %s12, 3
    %p163 = pnand %p161, %p162
    %p164 = pneg %p163
    // Predicated region
    $region9: #{down_block_forward.1} parent=5 // pred_check
      _
    $region10: #{down_block_forward.1} parent=5 // pred_check_branch
      %166 = sbr.rel (%p163) target = $region12
    $region11: #{down_block_forward.1} parent=5 // pred_region
      %s167 = ssub.s32 %s12, 1
      // Predicated region
      $region13: #{down_block_forward.1} parent=11 // pred_check
        %p168 = pneg %p59
      $region14: #{down_block_forward.1} parent=11 // pred_check_branch
        %170 = sbr.rel (%p168) target = $region16
      $region15: #{down_block_forward.1} parent=11 // pred_region
        _
      $region16: #{down_block_forward.1} parent=11 // pred_fallthru
        _
      // Predicated region
      $region17: #{down_block_forward.1} parent=11 // pred_check
        %p171 = pneg %p80
      $region18: #{down_block_forward.1} parent=11 // pred_check_branch
        %173 = sbr.rel (%p171) target = $region20
      $region19: #{down_block_forward.1} parent=11 // pred_region
        _
      $region20: #{down_block_forward.1} parent=11 // pred_fallthru
        _
      // Predicated region
      $region21: #{down_block_forward.1} parent=11 // pred_check
        %p174 = pneg %p101
      $region22: #{down_block_forward.1} parent=11 // pred_check_branch
        %176 = sbr.rel (%p174) target = $region24
      $region23: #{down_block_forward.1} parent=11 // pred_region
        _
      $region24: #{down_block_forward.1} parent=11 // pred_fallthru
        _
    $region12: #{down_block_forward.1} parent=5 // pred_fallthru
      _
    %p177 = scmp.lt.s32.totalorder %s12, 2
    // Predicated region
    $region25: #{down_block_forward.1} parent=5 // pred_check
      %p178 = pneg %p177
    $region26: #{down_block_forward.1} parent=5 // pred_check_branch
      %180 = sbr.rel (%p178) target = $region28
    $region27: #{down_block_forward.1} parent=5 // pred_region
      // Predicated region
      $region29: #{down_block_forward.1} parent=27 // pred_check
        %p181 = pneg %p32
      $region30: #{down_block_forward.1} parent=27 // pred_check_branch
        %183 = sbr.rel (%p181) target = $region32
      $region31: #{down_block_forward.1} parent=27 // pred_region
        %p184 = scmp.lt.s32.totalorder %s12, 1
        %s185 = scalar_select %p184, %s12, 1
        %s186 = smul.addr %s185, 32
        %s187 = smul.addr %s186, 8
        %s188 = scalar_lea.vmem %s0, %s187
      $region32: #{down_block_forward.1} parent=27 // pred_fallthru
        _
    $region28: #{down_block_forward.1} parent=5 // pred_fallthru
      _
    %p189 = scmp.le.s32.totalorder 1, %s12
    %p190 = scmp.lt.s32.totalorder %s12, 3
    %p191 = pnand %p189, %p190
    %p192 = pneg %p191
    // Predicated region
    $region33: #{down_block_forward.1} parent=5 // pred_check
      _
    $region34: #{down_block_forward.1} parent=5 // pred_check_branch
      %194 = sbr.rel (%p191) target = $region36
    $region35: #{down_block_forward.1} parent=5 // pred_region
      %s195 = ssub.s32 %s12, 1
      %p196 = scmp.lt.s32.totalorder %s17, 1
      %s197 = scalar_select %p196, %s17, 1
      %s198 = smul.addr %s197, 32
      %s199 = smul.addr %s198, 8
      %s200 = scalar_lea.vmem %s0, %s199
      %p201 = pneg %p38
      %p202 = pneg %p35
      %p203 = pneg %p59
      %p204 = pneg %p56
      %p205 = pneg %p80
      %p206 = pneg %p77
      %p207 = pneg %p101
      %p208 = pneg %p98
      %p209 = pneg %p127
      %p210 = pneg %p124
      %p211 = scmp.lt.s32.totalorder %s17, 1
      %s212 = scalar_select %p211, %s17, 1
      %s213 = smul.addr %s212, 32
      %s214 = smul.addr %s213, 8
      %s215 = scalar_lea.vmem %s4, %s214
      %p216 = pneg %p153
      %p217 = pneg %p150
      %p218 = scmp.lt.s32.totalorder %s17, 1
      %s219 = scalar_select %p218, %s17, 1
      %s220 = smul.addr %s219, 8
      %s221 = smul.addr %s220, 8
      %s222 = scalar_lea.vmem %s5, %s221
      %p223 = scmp.lt.s32.totalorder %s17, 1
      %s224 = scalar_select %p223, %s17, 1
      %s225 = smul.addr %s224, 32
      %s226 = smul.addr %s225, 8
      %s227 = scalar_lea.vmem %s0, %s226
      %p228 = scmp.lt.s32.totalorder %s17, 1
      %s229 = scalar_select %p228, %s17, 1
      %s230 = smul.addr %s229, 32
      %s231 = smul.addr %s230, 8
      %s232 = scalar_lea.vmem %s4, %s231
      %p233 = scmp.lt.s32.totalorder %s17, 1
      %s234 = scalar_select %p233, %s17, 1
      %s235 = smul.addr %s234, 8
      %s236 = smul.addr %s235, 8
      %s237 = scalar_lea.vmem %s5, %s236
      %vm238 = vcmask 31744
      %239 = vst.msk [vmem:[#allocation2] sm:$0xff] %vm238, 0.0
      %240 = vst.msk [vmem:[#allocation2 + $0x8] sm:$0xff] %vm238, 0.0
      %241 = vst.msk [vmem:[#allocation2 + $0x10] sm:$0xff] %vm238, 0.0
      %242 = vst.msk [vmem:[#allocation2 + $0x18] sm:$0xff] %vm238, 0.0
      %243 = vst.msk [vmem:[#allocation2 + $0x20] sm:$0xff] %vm238, 0.0
      %244 = vst.msk [vmem:[#allocation2 + $0x28] sm:$0xff] %vm238, 0.0
      %245 = vst.msk [vmem:[#allocation2 + $0x30] sm:$0xff] %vm238, 0.0
      %246 = vst.msk [vmem:[#allocation2 + $0x38] sm:$0xff] %vm238, 0.0
      %247 = vst.msk [vmem:[#allocation2 + $0x40] sm:$0xff] %vm238, 0.0
      %248 = vst.msk [vmem:[#allocation2 + $0x48] sm:$0xff] %vm238, 0.0
      %249 = vst.msk [vmem:[#allocation2 + $0x50] sm:$0xff] %vm238, 0.0
      %250 = vst.msk [vmem:[#allocation2 + $0x58] sm:$0xff] %vm238, 0.0
      %251 = vst.msk [vmem:[#allocation2 + $0x60] sm:$0xff] %vm238, 0.0
      %252 = vst.msk [vmem:[#allocation2 + $0x68] sm:$0xff] %vm238, 0.0
      %253 = vst.msk [vmem:[#allocation2 + $0x70] sm:$0xff] %vm238, 0.0
      %254 = vst.msk [vmem:[#allocation2 + $0x78] sm:$0xff] %vm238, 0.0
      %255 = vst.msk [vmem:[#allocation2 + $0x80] sm:$0xff] %vm238, 0.0
      %256 = vst.msk [vmem:[#allocation2 + $0x88] sm:$0xff] %vm238, 0.0
      %257 = vst.msk [vmem:[#allocation2 + $0x90] sm:$0xff] %vm238, 0.0
      %258 = vst.msk [vmem:[#allocation2 + $0x98] sm:$0xff] %vm238, 0.0
      %259 = vst.msk [vmem:[#allocation2 + $0xa0] sm:$0xff] %vm238, 0.0
      %260 = vst.msk [vmem:[#allocation2 + $0xa8] sm:$0xff] %vm238, 0.0
      %261 = vst.msk [vmem:[#allocation2 + $0xb0] sm:$0xff] %vm238, 0.0
      %262 = vst.msk [vmem:[#allocation2 + $0xb8] sm:$0xff] %vm238, 0.0
      %263 = vst.msk [vmem:[#allocation2 + $0xc0] sm:$0xff] %vm238, 0.0
      %264 = vst.msk [vmem:[#allocation2 + $0xc8] sm:$0xff] %vm238, 0.0
      %265 = vst.msk [vmem:[#allocation2 + $0xd0] sm:$0xff] %vm238, 0.0
      %266 = vst.msk [vmem:[#allocation2 + $0xd8] sm:$0xff] %vm238, 0.0
      %267 = vst.msk [vmem:[#allocation2 + $0xe0] sm:$0xff] %vm238, 0.0
      %268 = vst.msk [vmem:[#allocation2 + $0xe8] sm:$0xff] %vm238, 0.0
      %269 = vst.msk [vmem:[#allocation2 + $0xf0] sm:$0xff] %vm238, 0.0
      %270 = vst.msk [vmem:[#allocation2 + $0xf8] sm:$0xff] %vm238, 0.0
      %271 = vst.msk [vmem:[#allocation2 + $0x100] sm:$0xff] %vm238, 0.0
      %272 = vst.msk [vmem:[#allocation2 + $0x108] sm:$0xff] %vm238, 0.0
      %273 = vst.msk [vmem:[#allocation2 + $0x110] sm:$0xff] %vm238, 0.0
      %274 = vst.msk [vmem:[#allocation2 + $0x118] sm:$0xff] %vm238, 0.0
      %275 = vst.msk [vmem:[#allocation2 + $0x120] sm:$0xff] %vm238, 0.0
      %276 = vst.msk [vmem:[#allocation2 + $0x128] sm:$0xff] %vm238, 0.0
      %277 = vst.msk [vmem:[#allocation2 + $0x130] sm:$0xff] %vm238, 0.0
      %278 = vst.msk [vmem:[#allocation2 + $0x138] sm:$0xff] %vm238, 0.0
      %279 = vst.msk [vmem:[#allocation2 + $0x140] sm:$0xff] %vm238, 0.0
      %280 = vst.msk [vmem:[#allocation2 + $0x148] sm:$0xff] %vm238, 0.0
      %281 = vst.msk [vmem:[#allocation2 + $0x150] sm:$0xff] %vm238, 0.0
      %282 = vst.msk [vmem:[#allocation2 + $0x158] sm:$0xff] %vm238, 0.0
      %283 = vst.msk [vmem:[#allocation2 + $0x160] sm:$0xff] %vm238, 0.0
      %284 = vst.msk [vmem:[#allocation2 + $0x168] sm:$0xff] %vm238, 0.0
      %285 = vst.msk [vmem:[#allocation2 + $0x170] sm:$0xff] %vm238, 0.0
      %286 = vst.msk [vmem:[#allocation2 + $0x178] sm:$0xff] %vm238, 0.0
      %287 = vst.msk [vmem:[#allocation2 + $0x180] sm:$0xff] %vm238, 0.0
      %288 = vst.msk [vmem:[#allocation2 + $0x188] sm:$0xff] %vm238, 0.0
      %289 = vst.msk [vmem:[#allocation2 + $0x190] sm:$0xff] %vm238, 0.0
      %290 = vst.msk [vmem:[#allocation2 + $0x198] sm:$0xff] %vm238, 0.0
      %291 = vst.msk [vmem:[#allocation2 + $0x1a0] sm:$0xff] %vm238, 0.0
      %292 = vst.msk [vmem:[#allocation2 + $0x1a8] sm:$0xff] %vm238, 0.0
      %293 = vst.msk [vmem:[#allocation2 + $0x1b0] sm:$0xff] %vm238, 0.0
      %294 = vst.msk [vmem:[#allocation2 + $0x1b8] sm:$0xff] %vm238, 0.0
      %295 = vst.msk [vmem:[#allocation2 + $0x1c0] sm:$0xff] %vm238, 0.0
      %296 = vst.msk [vmem:[#allocation2 + $0x1c8] sm:$0xff] %vm238, 0.0
      %297 = vst.msk [vmem:[#allocation2 + $0x1d0] sm:$0xff] %vm238, 0.0
      %298 = vst.msk [vmem:[#allocation2 + $0x1d8] sm:$0xff] %vm238, 0.0
      %299 = vst.msk [vmem:[#allocation2 + $0x1e0] sm:$0xff] %vm238, 0.0
      %300 = vst.msk [vmem:[#allocation2 + $0x1e8] sm:$0xff] %vm238, 0.0
      %301 = vst.msk [vmem:[#allocation2 + $0x1f0] sm:$0xff] %vm238, 0.0
      %302 = vst.msk [vmem:[#allocation2 + $0x1f8] sm:$0xff] %vm238, 0.0
      %303 = vst.msk [vmem:[#allocation2 + $0x200] sm:$0xff] %vm238, 0.0
      %304 = vst.msk [vmem:[#allocation2 + $0x208] sm:$0xff] %vm238, 0.0
      %305 = vst.msk [vmem:[#allocation2 + $0x210] sm:$0xff] %vm238, 0.0
      %306 = vst.msk [vmem:[#allocation2 + $0x218] sm:$0xff] %vm238, 0.0
      %307 = vst.msk [vmem:[#allocation2 + $0x220] sm:$0xff] %vm238, 0.0
      %308 = vst.msk [vmem:[#allocation2 + $0x228] sm:$0xff] %vm238, 0.0
      %309 = vst.msk [vmem:[#allocation2 + $0x230] sm:$0xff] %vm238, 0.0
      %310 = vst.msk [vmem:[#allocation2 + $0x238] sm:$0xff] %vm238, 0.0
      %vm311 = vcmask 64512
      %312 = vst.msk [vmem:[#allocation3] sm:$0xff] %vm311, 0.0
      %313 = vst.msk [vmem:[#allocation3 + $0x8] sm:$0xff] %vm311, 0.0
      %314 = vst.msk [vmem:[#allocation3 + $0x10] sm:$0xff] %vm311, 0.0
      %315 = vst.msk [vmem:[#allocation3 + $0x18] sm:$0xff] %vm311, 0.0
      %316 = vst.msk [vmem:[#allocation3 + $0x20] sm:$0xff] %vm311, 0.0
      %317 = vst.msk [vmem:[#allocation3 + $0x28] sm:$0xff] %vm311, 0.0
      %318 = vst.msk [vmem:[#allocation3 + $0x30] sm:$0xff] %vm311, 0.0
      %319 = vst.msk [vmem:[#allocation3 + $0x38] sm:$0xff] %vm311, 0.0
      %320 = vst.msk [vmem:[#allocation3 + $0x40] sm:$0xff] %vm311, 0.0
      %321 = vst.msk [vmem:[#allocation3 + $0x48] sm:$0xff] %vm311, 0.0
      %322 = vst.msk [vmem:[#allocation3 + $0x50] sm:$0xff] %vm311, 0.0
      %323 = vst.msk [vmem:[#allocation3 + $0x58] sm:$0xff] %vm311, 0.0
      %324 = vst.msk [vmem:[#allocation3 + $0x60] sm:$0xff] %vm311, 0.0
      %325 = vst.msk [vmem:[#allocation3 + $0x68] sm:$0xff] %vm311, 0.0
      %326 = vst.msk [vmem:[#allocation3 + $0x70] sm:$0xff] %vm311, 0.0
      %327 = vst.msk [vmem:[#allocation3 + $0x78] sm:$0xff] %vm311, 0.0
      %328 = vst.msk [vmem:[#allocation3 + $0x80] sm:$0xff] %vm311, 0.0
      %329 = vst.msk [vmem:[#allocation3 + $0x88] sm:$0xff] %vm311, 0.0
      %330 = vst.msk [vmem:[#allocation3 + $0x90] sm:$0xff] %vm311, 0.0
      %331 = vst.msk [vmem:[#allocation3 + $0x98] sm:$0xff] %vm311, 0.0
      %332 = vst.msk [vmem:[#allocation3 + $0xa0] sm:$0xff] %vm311, 0.0
      %333 = vst.msk [vmem:[#allocation3 + $0xa8] sm:$0xff] %vm311, 0.0
      %334 = vst.msk [vmem:[#allocation3 + $0xb0] sm:$0xff] %vm311, 0.0
      %335 = vst.msk [vmem:[#allocation3 + $0xb8] sm:$0xff] %vm311, 0.0
      %336 = vst.msk [vmem:[#allocation3 + $0xc0] sm:$0xff] %vm311, 0.0
      %337 = vst.msk [vmem:[#allocation3 + $0xc8] sm:$0xff] %vm311, 0.0
      %338 = vst.msk [vmem:[#allocation3 + $0xd0] sm:$0xff] %vm311, 0.0
      %339 = vst.msk [vmem:[#allocation3 + $0xd8] sm:$0xff] %vm311, 0.0
      %340 = vst.msk [vmem:[#allocation3 + $0xe0] sm:$0xff] %vm311, 0.0
      %341 = vst.msk [vmem:[#allocation3 + $0xe8] sm:$0xff] %vm311, 0.0
      %342 = vst.msk [vmem:[#allocation3 + $0xf0] sm:$0xff] %vm311, 0.0
      %343 = vst.msk [vmem:[#allocation3 + $0xf8] sm:$0xff] %vm311, 0.0
      %344 = vst.msk [vmem:[#allocation3 + $0x100] sm:$0xff] %vm311, 0.0
      %345 = vst.msk [vmem:[#allocation3 + $0x108] sm:$0xff] %vm311, 0.0
      %346 = vst.msk [vmem:[#allocation3 + $0x110] sm:$0xff] %vm311, 0.0
      %347 = vst.msk [vmem:[#allocation3 + $0x118] sm:$0xff] %vm311, 0.0
      %348 = vst.msk [vmem:[#allocation3 + $0x120] sm:$0xff] %vm311, 0.0
      %349 = vst.msk [vmem:[#allocation3 + $0x128] sm:$0xff] %vm311, 0.0
      %350 = vst.msk [vmem:[#allocation3 + $0x130] sm:$0xff] %vm311, 0.0
      %351 = vst.msk [vmem:[#allocation3 + $0x138] sm:$0xff] %vm311, 0.0
      %352 = vst.msk [vmem:[#allocation3 + $0x140] sm:$0xff] %vm311, 0.0
      %353 = vst.msk [vmem:[#allocation3 + $0x148] sm:$0xff] %vm311, 0.0
      %354 = vst.msk [vmem:[#allocation3 + $0x150] sm:$0xff] %vm311, 0.0
      %355 = vst.msk [vmem:[#allocation3 + $0x158] sm:$0xff] %vm311, 0.0
      %356 = vst.msk [vmem:[#allocation3 + $0x160] sm:$0xff] %vm311, 0.0
      %357 = vst.msk [vmem:[#allocation3 + $0x168] sm:$0xff] %vm311, 0.0
      %358 = vst.msk [vmem:[#allocation3 + $0x170] sm:$0xff] %vm311, 0.0
      %359 = vst.msk [vmem:[#allocation3 + $0x178] sm:$0xff] %vm311, 0.0
      %360 = vst.msk [vmem:[#allocation3 + $0x180] sm:$0xff] %vm311, 0.0
      %361 = vst.msk [vmem:[#allocation3 + $0x188] sm:$0xff] %vm311, 0.0
      %362 = vst.msk [vmem:[#allocation3 + $0x190] sm:$0xff] %vm311, 0.0
      %363 = vst.msk [vmem:[#allocation3 + $0x198] sm:$0xff] %vm311, 0.0
      %364 = vst.msk [vmem:[#allocation3 + $0x1a0] sm:$0xff] %vm311, 0.0
      %365 = vst.msk [vmem:[#allocation3 + $0x1a8] sm:$0xff] %vm311, 0.0
      %366 = vst.msk [vmem:[#allocation3 + $0x1b0] sm:$0xff] %vm311, 0.0
      %367 = vst.msk [vmem:[#allocation3 + $0x1b8] sm:$0xff] %vm311, 0.0
      %368 = vst.msk [vmem:[#allocation3 + $0x1c0] sm:$0xff] %vm311, 0.0
      %369 = vst.msk [vmem:[#allocation3 + $0x1c8] sm:$0xff] %vm311, 0.0
      %370 = vst.msk [vmem:[#allocation3 + $0x1d0] sm:$0xff] %vm311, 0.0
      %371 = vst.msk [vmem:[#allocation3 + $0x1d8] sm:$0xff] %vm311, 0.0
      %372 = vst.msk [vmem:[#allocation3 + $0x1e0] sm:$0xff] %vm311, 0.0
      %373 = vst.msk [vmem:[#allocation3 + $0x1e8] sm:$0xff] %vm311, 0.0
      %374 = vst.msk [vmem:[#allocation3 + $0x1f0] sm:$0xff] %vm311, 0.0
      %375 = vst.msk [vmem:[#allocation3 + $0x1f8] sm:$0xff] %vm311, 0.0
      %376 = vst.msk [vmem:[#allocation3 + $0x200] sm:$0xff] %vm311, 0.0
      %377 = vst.msk [vmem:[#allocation3 + $0x208] sm:$0xff] %vm311, 0.0
      %378 = vst.msk [vmem:[#allocation3 + $0x210] sm:$0xff] %vm311, 0.0
      %379 = vst.msk [vmem:[#allocation3 + $0x218] sm:$0xff] %vm311, 0.0
      %380 = vst.msk [vmem:[#allocation3 + $0x220] sm:$0xff] %vm311, 0.0
      %381 = vst.msk [vmem:[#allocation3 + $0x228] sm:$0xff] %vm311, 0.0
      %382 = vst.msk [vmem:[#allocation3 + $0x230] sm:$0xff] %vm311, 0.0
      %383 = vst.msk [vmem:[#allocation3 + $0x238] sm:$0xff] %vm311, 0.0
      %v384 = vld [vmem:[%s227] sm:$0xff]
      %v385 = vld [vmem:[%s227 + $0x8] sm:$0xff]
      %s386 = scalar_lea.vmem [#allocation2], 32
      %387 = vst.msk [vmem:[%s386 + $0x8] sm:$0xff] %vm238, %v384
      %388 = vst.msk [vmem:[%s386 + $0x10] sm:$0xff] %vm238, %v385
      %s389 = scalar_lea.vmem %s227, 16
      %v390 = vld [vmem:[%s389] sm:$0xff]
      %v391 = vld [vmem:[%s389 + $0x8] sm:$0xff]
      %s392 = scalar_lea.vmem [#allocation2], 64
      %393 = vst.msk [vmem:[%s392 + $0x8] sm:$0xff] %vm238, %v390
      %394 = vst.msk [vmem:[%s392 + $0x10] sm:$0xff] %vm238, %v391
      %s395 = scalar_lea.vmem %s227, 32
      %v396 = vld [vmem:[%s395] sm:$0xff]
      %v397 = vld [vmem:[%s395 + $0x8] sm:$0xff]
      %s398 = scalar_lea.vmem [#allocation2], 96
      %399 = vst.msk [vmem:[%s398 + $0x8] sm:$0xff] %vm238, %v396
      %400 = vst.msk [vmem:[%s398 + $0x10] sm:$0xff] %vm238, %v397
      %s401 = scalar_lea.vmem %s227, 48
      %v402 = vld [vmem:[%s401] sm:$0xff]
      %v403 = vld [vmem:[%s401 + $0x8] sm:$0xff]
      %s404 = scalar_lea.vmem [#allocation2], 128
      %405 = vst.msk [vmem:[%s404 + $0x8] sm:$0xff] %vm238, %v402
      %406 = vst.msk [vmem:[%s404 + $0x10] sm:$0xff] %vm238, %v403
      %s407 = scalar_lea.vmem %s227, 64
      %v408 = vld [vmem:[%s407] sm:$0xff]
      %v409 = vld [vmem:[%s407 + $0x8] sm:$0xff]
      %s410 = scalar_lea.vmem [#allocation2], 160
      %411 = vst.msk [vmem:[%s410 + $0x8] sm:$0xff] %vm238, %v408
      %412 = vst.msk [vmem:[%s410 + $0x10] sm:$0xff] %vm238, %v409
      %s413 = scalar_lea.vmem %s227, 80
      %v414 = vld [vmem:[%s413] sm:$0xff]
      %v415 = vld [vmem:[%s413 + $0x8] sm:$0xff]
      %s416 = scalar_lea.vmem [#allocation2], 192
      %417 = vst.msk [vmem:[%s416 + $0x8] sm:$0xff] %vm238, %v414
      %418 = vst.msk [vmem:[%s416 + $0x10] sm:$0xff] %vm238, %v415
      %s419 = scalar_lea.vmem %s227, 96
      %v420 = vld [vmem:[%s419] sm:$0xff]
      %v421 = vld [vmem:[%s419 + $0x8] sm:$0xff]
      %s422 = scalar_lea.vmem [#allocation2], 224
      %423 = vst.msk [vmem:[%s422 + $0x8] sm:$0xff] %vm238, %v420
      %424 = vst.msk [vmem:[%s422 + $0x10] sm:$0xff] %vm238, %v421
      %s425 = scalar_lea.vmem %s227, 112
      %v426 = vld [vmem:[%s425] sm:$0xff]
      %v427 = vld [vmem:[%s425 + $0x8] sm:$0xff]
      %s428 = scalar_lea.vmem [#allocation2], 256
      %429 = vst.msk [vmem:[%s428 + $0x8] sm:$0xff] %vm238, %v426
      %430 = vst.msk [vmem:[%s428 + $0x10] sm:$0xff] %vm238, %v427
      %s431 = scalar_lea.vmem %s227, 128
      %v432 = vld [vmem:[%s431] sm:$0xff]
      %v433 = vld [vmem:[%s431 + $0x8] sm:$0xff]
      %s434 = scalar_lea.vmem [#allocation2], 288
      %435 = vst.msk [vmem:[%s434 + $0x8] sm:$0xff] %vm238, %v432
      %436 = vst.msk [vmem:[%s434 + $0x10] sm:$0xff] %vm238, %v433
      %s437 = scalar_lea.vmem %s227, 144
      %v438 = vld [vmem:[%s437] sm:$0xff]
      %v439 = vld [vmem:[%s437 + $0x8] sm:$0xff]
      %s440 = scalar_lea.vmem [#allocation2], 320
      %441 = vst.msk [vmem:[%s440 + $0x8] sm:$0xff] %vm238, %v438
      %442 = vst.msk [vmem:[%s440 + $0x10] sm:$0xff] %vm238, %v439
      %s443 = scalar_lea.vmem %s227, 160
      %v444 = vld [vmem:[%s443] sm:$0xff]
      %v445 = vld [vmem:[%s443 + $0x8] sm:$0xff]
      %s446 = scalar_lea.vmem [#allocation2], 352
      %447 = vst.msk [vmem:[%s446 + $0x8] sm:$0xff] %vm238, %v444
      %448 = vst.msk [vmem:[%s446 + $0x10] sm:$0xff] %vm238, %v445
      %s449 = scalar_lea.vmem %s227, 176
      %v450 = vld [vmem:[%s449] sm:$0xff]
      %v451 = vld [vmem:[%s449 + $0x8] sm:$0xff]
      %s452 = scalar_lea.vmem [#allocation2], 384
      %453 = vst.msk [vmem:[%s452 + $0x8] sm:$0xff] %vm238, %v450
      %454 = vst.msk [vmem:[%s452 + $0x10] sm:$0xff] %vm238, %v451
      %s455 = scalar_lea.vmem %s227, 192
      %v456 = vld [vmem:[%s455] sm:$0xff]
      %v457 = vld [vmem:[%s455 + $0x8] sm:$0xff]
      %s458 = scalar_lea.vmem [#allocation2], 416
      %459 = vst.msk [vmem:[%s458 + $0x8] sm:$0xff] %vm238, %v456
      %460 = vst.msk [vmem:[%s458 + $0x10] sm:$0xff] %vm238, %v457
      %s461 = scalar_lea.vmem %s227, 208
      %v462 = vld [vmem:[%s461] sm:$0xff]
      %v463 = vld [vmem:[%s461 + $0x8] sm:$0xff]
      %s464 = scalar_lea.vmem [#allocation2], 448
      %465 = vst.msk [vmem:[%s464 + $0x8] sm:$0xff] %vm238, %v462
      %466 = vst.msk [vmem:[%s464 + $0x10] sm:$0xff] %vm238, %v463
      %s467 = scalar_lea.vmem %s227, 224
      %v468 = vld [vmem:[%s467] sm:$0xff]
      %v469 = vld [vmem:[%s467 + $0x8] sm:$0xff]
      %s470 = scalar_lea.vmem [#allocation2], 480
      %471 = vst.msk [vmem:[%s470 + $0x8] sm:$0xff] %vm238, %v468
      %472 = vst.msk [vmem:[%s470 + $0x10] sm:$0xff] %vm238, %v469
      %s473 = scalar_lea.vmem %s227, 240
      %v474 = vld [vmem:[%s473] sm:$0xff]
      %v475 = vld [vmem:[%s473 + $0x8] sm:$0xff]
      %s476 = scalar_lea.vmem [#allocation2], 512
      %477 = vst.msk [vmem:[%s476 + $0x8] sm:$0xff] %vm238, %v474
      %478 = vst.msk [vmem:[%s476 + $0x10] sm:$0xff] %vm238, %v475
      %v479 = vld [vmem:[#allocation2 + $0x7] sm:$0xff]
      %v480 = vld [vmem:[#allocation2 + $0xf] sm:$0xff]
      %v481 = vld [vmem:[#allocation2 + $0x27] sm:$0xff]
      %v482 = vld [vmem:[#allocation2 + $0x2f] sm:$0xff]
      %v483 = vld [vmem:[#allocation2 + $0x47] sm:$0xff]
      %v484 = vld [vmem:[#allocation2 + $0x4f] sm:$0xff]
      %v485 = vld [vmem:[#allocation2 + $0x67] sm:$0xff]
      %v486 = vld [vmem:[#allocation2 + $0x6f] sm:$0xff]
      %v487 = vld [vmem:[#allocation2 + $0x87] sm:$0xff]
      %v488 = vld [vmem:[#allocation2 + $0x8f] sm:$0xff]
      %v489 = vld [vmem:[#allocation2 + $0xa7] sm:$0xff]
      %v490 = vld [vmem:[#allocation2 + $0xaf] sm:$0xff]
      %v491 = vld [vmem:[#allocation2 + $0xc7] sm:$0xff]
      %v492 = vld [vmem:[#allocation2 + $0xcf] sm:$0xff]
      %v493 = vld [vmem:[#allocation2 + $0xe7] sm:$0xff]
      %v494 = vld [vmem:[#allocation2 + $0xef] sm:$0xff]
      %v495 = vld [vmem:[#allocation2 + $0x107] sm:$0xff]
      %v496 = vld [vmem:[#allocation2 + $0x10f] sm:$0xff]
      %v497 = vld [vmem:[#allocation2 + $0x127] sm:$0xff]
      %v498 = vld [vmem:[#allocation2 + $0x12f] sm:$0xff]
      %v499 = vld [vmem:[#allocation2 + $0x147] sm:$0xff]
      %v500 = vld [vmem:[#allocation2 + $0x14f] sm:$0xff]
      %v501 = vld [vmem:[#allocation2 + $0x167] sm:$0xff]
      %v502 = vld [vmem:[#allocation2 + $0x16f] sm:$0xff]
      %v503 = vld [vmem:[#allocation2 + $0x187] sm:$0xff]
      %v504 = vld [vmem:[#allocation2 + $0x18f] sm:$0xff]
      %v505 = vld [vmem:[#allocation2 + $0x1a7] sm:$0xff]
      %v506 = vld [vmem:[#allocation2 + $0x1af] sm:$0xff]
      %v507 = vld [vmem:[#allocation2 + $0x1c7] sm:$0xff]
      %v508 = vld [vmem:[#allocation2 + $0x1cf] sm:$0xff]
      %v509 = vld [vmem:[#allocation2 + $0x1e7] sm:$0xff]
      %v510 = vld [vmem:[#allocation2 + $0x1ef] sm:$0xff]
      %v511 = vld [vmem:[#allocation2 + $0x8] sm:$0xff]
      %v512 = vld [vmem:[#allocation2 + $0x10] sm:$0xff]
      %v513 = vld [vmem:[#allocation2 + $0x28] sm:$0xff]
      %v514 = vld [vmem:[#allocation2 + $0x30] sm:$0xff]
      %v515 = vld [vmem:[#allocation2 + $0x48] sm:$0xff]
      %v516 = vld [vmem:[#allocation2 + $0x50] sm:$0xff]
      %v517 = vld [vmem:[#allocation2 + $0x68] sm:$0xff]
      %v518 = vld [vmem:[#allocation2 + $0x70] sm:$0xff]
      %v519 = vld [vmem:[#allocation2 + $0x88] sm:$0xff]
      %v520 = vld [vmem:[#allocation2 + $0x90] sm:$0xff]
      %v521 = vld [vmem:[#allocation2 + $0xa8] sm:$0xff]
      %v522 = vld [vmem:[#allocation2 + $0xb0] sm:$0xff]
      %v523 = vld [vmem:[#allocation2 + $0xc8] sm:$0xff]
      %v524 = vld [vmem:[#allocation2 + $0xd0] sm:$0xff]
      %v525 = vld [vmem:[#allocation2 + $0xe8] sm:$0xff]
      %v526 = vld [vmem:[#allocation2 + $0xf0] sm:$0xff]
      %v527 = vld [vmem:[#allocation2 + $0x108] sm:$0xff]
      %v528 = vld [vmem:[#allocation2 + $0x110] sm:$0xff]
      %v529 = vld [vmem:[#allocation2 + $0x128] sm:$0xff]
      %v530 = vld [vmem:[#allocation2 + $0x130] sm:$0xff]
      %v531 = vld [vmem:[#allocation2 + $0x148] sm:$0xff]
      %v532 = vld [vmem:[#allocation2 + $0x150] sm:$0xff]
      %v533 = vld [vmem:[#allocation2 + $0x168] sm:$0xff]
      %v534 = vld [vmem:[#allocation2 + $0x170] sm:$0xff]
      %v535 = vld [vmem:[#allocation2 + $0x188] sm:$0xff]
      %v536 = vld [vmem:[#allocation2 + $0x190] sm:$0xff]
      %v537 = vld [vmem:[#allocation2 + $0x1a8] sm:$0xff]
      %v538 = vld [vmem:[#allocation2 + $0x1b0] sm:$0xff]
      %v539 = vld [vmem:[#allocation2 + $0x1c8] sm:$0xff]
      %v540 = vld [vmem:[#allocation2 + $0x1d0] sm:$0xff]
      %v541 = vld [vmem:[#allocation2 + $0x1e8] sm:$0xff]
      %v542 = vld [vmem:[#allocation2 + $0x1f0] sm:$0xff]
      %v543 = vld [vmem:[#allocation2 + $0x9] sm:$0xff]
      %v544 = vld [vmem:[#allocation2 + $0x11] sm:$0xff]
      %v545 = vld [vmem:[#allocation2 + $0x29] sm:$0xff]
      %v546 = vld [vmem:[#allocation2 + $0x31] sm:$0xff]
      %v547 = vld [vmem:[#allocation2 + $0x49] sm:$0xff]
      %v548 = vld [vmem:[#allocation2 + $0x51] sm:$0xff]
      %v549 = vld [vmem:[#allocation2 + $0x69] sm:$0xff]
      %v550 = vld [vmem:[#allocation2 + $0x71] sm:$0xff]
      %v551 = vld [vmem:[#allocation2 + $0x89] sm:$0xff]
      %v552 = vld [vmem:[#allocation2 + $0x91] sm:$0xff]
      %v553 = vld [vmem:[#allocation2 + $0xa9] sm:$0xff]
      %v554 = vld [vmem:[#allocation2 + $0xb1] sm:$0xff]
      %v555 = vld [vmem:[#allocation2 + $0xc9] sm:$0xff]
      %v556 = vld [vmem:[#allocation2 + $0xd1] sm:$0xff]
      %v557 = vld [vmem:[#allocation2 + $0xe9] sm:$0xff]
      %v558 = vld [vmem:[#allocation2 + $0xf1] sm:$0xff]
      %v559 = vld [vmem:[#allocation2 + $0x109] sm:$0xff]
      %v560 = vld [vmem:[#allocation2 + $0x111] sm:$0xff]
      %v561 = vld [vmem:[#allocation2 + $0x129] sm:$0xff]
      %v562 = vld [vmem:[#allocation2 + $0x131] sm:$0xff]
      %v563 = vld [vmem:[#allocation2 + $0x149] sm:$0xff]
      %v564 = vld [vmem:[#allocation2 + $0x151] sm:$0xff]
      %v565 = vld [vmem:[#allocation2 + $0x169] sm:$0xff]
      %v566 = vld [vmem:[#allocation2 + $0x171] sm:$0xff]
      %v567 = vld [vmem:[#allocation2 + $0x189] sm:$0xff]
      %v568 = vld [vmem:[#allocation2 + $0x191] sm:$0xff]
      %v569 = vld [vmem:[#allocation2 + $0x1a9] sm:$0xff]
      %v570 = vld [vmem:[#allocation2 + $0x1b1] sm:$0xff]
      %v571 = vld [vmem:[#allocation2 + $0x1c9] sm:$0xff]
      %v572 = vld [vmem:[#allocation2 + $0x1d1] sm:$0xff]
      %v573 = vld [vmem:[#allocation2 + $0x1e9] sm:$0xff]
      %v574 = vld [vmem:[#allocation2 + $0x1f1] sm:$0xff]
      %v575 = vld [vmem:[%s386 + $0x7] sm:$0xff]
      %v576 = vld [vmem:[%s386 + $0xf] sm:$0xff]
      %v577 = vld [vmem:[%s386 + $0x27] sm:$0xff]
      %v578 = vld [vmem:[%s386 + $0x2f] sm:$0xff]
      %v579 = vld [vmem:[%s386 + $0x47] sm:$0xff]
      %v580 = vld [vmem:[%s386 + $0x4f] sm:$0xff]
      %v581 = vld [vmem:[%s386 + $0x67] sm:$0xff]
      %v582 = vld [vmem:[%s386 + $0x6f] sm:$0xff]
      %v583 = vld [vmem:[%s386 + $0x87] sm:$0xff]
      %v584 = vld [vmem:[%s386 + $0x8f] sm:$0xff]
      %v585 = vld [vmem:[%s386 + $0xa7] sm:$0xff]
      %v586 = vld [vmem:[%s386 + $0xaf] sm:$0xff]
      %v587 = vld [vmem:[%s386 + $0xc7] sm:$0xff]
      %v588 = vld [vmem:[%s386 + $0xcf] sm:$0xff]
      %v589 = vld [vmem:[%s386 + $0xe7] sm:$0xff]
      %v590 = vld [vmem:[%s386 + $0xef] sm:$0xff]
      %v591 = vld [vmem:[%s386 + $0x107] sm:$0xff]
      %v592 = vld [vmem:[%s386 + $0x10f] sm:$0xff]
      %v593 = vld [vmem:[%s386 + $0x127] sm:$0xff]
      %v594 = vld [vmem:[%s386 + $0x12f] sm:$0xff]
      %v595 = vld [vmem:[%s386 + $0x147] sm:$0xff]
      %v596 = vld [vmem:[%s386 + $0x14f] sm:$0xff]
      %v597 = vld [vmem:[%s386 + $0x167] sm:$0xff]
      %v598 = vld [vmem:[%s386 + $0x16f] sm:$0xff]
      %v599 = vld [vmem:[%s386 + $0x187] sm:$0xff]
      %v600 = vld [vmem:[%s386 + $0x18f] sm:$0xff]
      %v601 = vld [vmem:[%s386 + $0x1a7] sm:$0xff]
      %v602 = vld [vmem:[%s386 + $0x1af] sm:$0xff]
      %v603 = vld [vmem:[%s386 + $0x1c7] sm:$0xff]
      %v604 = vld [vmem:[%s386 + $0x1cf] sm:$0xff]
      %v605 = vld [vmem:[%s386 + $0x1e7] sm:$0xff]
      %v606 = vld [vmem:[%s386 + $0x1ef] sm:$0xff]
      %v607 = vld [vmem:[%s386 + $0x8] sm:$0xff]
      %v608 = vld [vmem:[%s386 + $0x10] sm:$0xff]
      %v609 = vld [vmem:[%s386 + $0x28] sm:$0xff]
      %v610 = vld [vmem:[%s386 + $0x30] sm:$0xff]
      %v611 = vld [vmem:[%s386 + $0x48] sm:$0xff]
      %v612 = vld [vmem:[%s386 + $0x50] sm:$0xff]
      %v613 = vld [vmem:[%s386 + $0x68] sm:$0xff]
      %v614 = vld [vmem:[%s386 + $0x70] sm:$0xff]
      %v615 = vld [vmem:[%s386 + $0x88] sm:$0xff]
      %v616 = vld [vmem:[%s386 + $0x90] sm:$0xff]
      %v617 = vld [vmem:[%s386 + $0xa8] sm:$0xff]
      %v618 = vld [vmem:[%s386 + $0xb0] sm:$0xff]
      %v619 = vld [vmem:[%s386 + $0xc8] sm:$0xff]
      %v620 = vld [vmem:[%s386 + $0xd0] sm:$0xff]
      %v621 = vld [vmem:[%s386 + $0xe8] sm:$0xff]
      %v622 = vld [vmem:[%s386 + $0xf0] sm:$0xff]
      %v623 = vld [vmem:[%s386 + $0x108] sm:$0xff]
      %v624 = vld [vmem:[%s386 + $0x110] sm:$0xff]
      %v625 = vld [vmem:[%s386 + $0x128] sm:$0xff]
      %v626 = vld [vmem:[%s386 + $0x130] sm:$0xff]
      %v627 = vld [vmem:[%s386 + $0x148] sm:$0xff]
      %v628 = vld [vmem:[%s386 + $0x150] sm:$0xff]
      %v629 = vld [vmem:[%s386 + $0x168] sm:$0xff]
      %v630 = vld [vmem:[%s386 + $0x170] sm:$0xff]
      %v631 = vld [vmem:[%s386 + $0x188] sm:$0xff]
      %v632 = vld [vmem:[%s386 + $0x190] sm:$0xff]
      %v633 = vld [vmem:[%s386 + $0x1a8] sm:$0xff]
      %v634 = vld [vmem:[%s386 + $0x1b0] sm:$0xff]
      %v635 = vld [vmem:[%s386 + $0x1c8] sm:$0xff]
      %v636 = vld [vmem:[%s386 + $0x1d0] sm:$0xff]
      %v637 = vld [vmem:[%s386 + $0x1e8] sm:$0xff]
      %v638 = vld [vmem:[%s386 + $0x1f0] sm:$0xff]
      %v639 = vld [vmem:[%s386 + $0x9] sm:$0xff]
      %v640 = vld [vmem:[%s386 + $0x11] sm:$0xff]
      %v641 = vld [vmem:[%s386 + $0x29] sm:$0xff]
      %v642 = vld [vmem:[%s386 + $0x31] sm:$0xff]
      %v643 = vld [vmem:[%s386 + $0x49] sm:$0xff]
      %v644 = vld [vmem:[%s386 + $0x51] sm:$0xff]
      %v645 = vld [vmem:[%s386 + $0x69] sm:$0xff]
      %v646 = vld [vmem:[%s386 + $0x71] sm:$0xff]
      %v647 = vld [vmem:[%s386 + $0x89] sm:$0xff]
      %v648 = vld [vmem:[%s386 + $0x91] sm:$0xff]
      %v649 = vld [vmem:[%s386 + $0xa9] sm:$0xff]
      %v650 = vld [vmem:[%s386 + $0xb1] sm:$0xff]
      %v651 = vld [vmem:[%s386 + $0xc9] sm:$0xff]
      %v652 = vld [vmem:[%s386 + $0xd1] sm:$0xff]
      %v653 = vld [vmem:[%s386 + $0xe9] sm:$0xff]
      %v654 = vld [vmem:[%s386 + $0xf1] sm:$0xff]
      %v655 = vld [vmem:[%s386 + $0x109] sm:$0xff]
      %v656 = vld [vmem:[%s386 + $0x111] sm:$0xff]
      %v657 = vld [vmem:[%s386 + $0x129] sm:$0xff]
      %v658 = vld [vmem:[%s386 + $0x131] sm:$0xff]
      %v659 = vld [vmem:[%s386 + $0x149] sm:$0xff]
      %v660 = vld [vmem:[%s386 + $0x151] sm:$0xff]
      %v661 = vld [vmem:[%s386 + $0x169] sm:$0xff]
      %v662 = vld [vmem:[%s386 + $0x171] sm:$0xff]
      %v663 = vld [vmem:[%s386 + $0x189] sm:$0xff]
      %v664 = vld [vmem:[%s386 + $0x191] sm:$0xff]
      %v665 = vld [vmem:[%s386 + $0x1a9] sm:$0xff]
      %v666 = vld [vmem:[%s386 + $0x1b1] sm:$0xff]
      %v667 = vld [vmem:[%s386 + $0x1c9] sm:$0xff]
      %v668 = vld [vmem:[%s386 + $0x1d1] sm:$0xff]
      %v669 = vld [vmem:[%s386 + $0x1e9] sm:$0xff]
      %v670 = vld [vmem:[%s386 + $0x1f1] sm:$0xff]
      %v671 = vld [vmem:[%s392 + $0x7] sm:$0xff]
      %v672 = vld [vmem:[%s392 + $0xf] sm:$0xff]
      %v673 = vld [vmem:[%s392 + $0x27] sm:$0xff]
      %v674 = vld [vmem:[%s392 + $0x2f] sm:$0xff]
      %v675 = vld [vmem:[%s392 + $0x47] sm:$0xff]
      %v676 = vld [vmem:[%s392 + $0x4f] sm:$0xff]
      %v677 = vld [vmem:[%s392 + $0x67] sm:$0xff]
      %v678 = vld [vmem:[%s392 + $0x6f] sm:$0xff]
      %v679 = vld [vmem:[%s392 + $0x87] sm:$0xff]
      %v680 = vld [vmem:[%s392 + $0x8f] sm:$0xff]
      %v681 = vld [vmem:[%s392 + $0xa7] sm:$0xff]
      %v682 = vld [vmem:[%s392 + $0xaf] sm:$0xff]
      %v683 = vld [vmem:[%s392 + $0xc7] sm:$0xff]
      %v684 = vld [vmem:[%s392 + $0xcf] sm:$0xff]
      %v685 = vld [vmem:[%s392 + $0xe7] sm:$0xff]
      %v686 = vld [vmem:[%s392 + $0xef] sm:$0xff]
      %v687 = vld [vmem:[%s392 + $0x107] sm:$0xff]
      %v688 = vld [vmem:[%s392 + $0x10f] sm:$0xff]
      %v689 = vld [vmem:[%s392 + $0x127] sm:$0xff]
      %v690 = vld [vmem:[%s392 + $0x12f] sm:$0xff]
      %v691 = vld [vmem:[%s392 + $0x147] sm:$0xff]
      %v692 = vld [vmem:[%s392 + $0x14f] sm:$0xff]
      %v693 = vld [vmem:[%s392 + $0x167] sm:$0xff]
      %v694 = vld [vmem:[%s392 + $0x16f] sm:$0xff]
      %v695 = vld [vmem:[%s392 + $0x187] sm:$0xff]
      %v696 = vld [vmem:[%s392 + $0x18f] sm:$0xff]
      %v697 = vld [vmem:[%s392 + $0x1a7] sm:$0xff]
      %v698 = vld [vmem:[%s392 + $0x1af] sm:$0xff]
      %v699 = vld [vmem:[%s392 + $0x1c7] sm:$0xff]
      %v700 = vld [vmem:[%s392 + $0x1cf] sm:$0xff]
      %v701 = vld [vmem:[%s392 + $0x1e7] sm:$0xff]
      %v702 = vld [vmem:[%s392 + $0x1ef] sm:$0xff]
      %v703 = vld [vmem:[%s392 + $0x8] sm:$0xff]
      %v704 = vld [vmem:[%s392 + $0x10] sm:$0xff]
      %v705 = vld [vmem:[%s392 + $0x28] sm:$0xff]
      %v706 = vld [vmem:[%s392 + $0x30] sm:$0xff]
      %v707 = vld [vmem:[%s392 + $0x48] sm:$0xff]
      %v708 = vld [vmem:[%s392 + $0x50] sm:$0xff]
      %v709 = vld [vmem:[%s392 + $0x68] sm:$0xff]
      %v710 = vld [vmem:[%s392 + $0x70] sm:$0xff]
      %v711 = vld [vmem:[%s392 + $0x88] sm:$0xff]
      %v712 = vld [vmem:[%s392 + $0x90] sm:$0xff]
      %v713 = vld [vmem:[%s392 + $0xa8] sm:$0xff]
      %v714 = vld [vmem:[%s392 + $0xb0] sm:$0xff]
      %v715 = vld [vmem:[%s392 + $0xc8] sm:$0xff]
      %v716 = vld [vmem:[%s392 + $0xd0] sm:$0xff]
      %v717 = vld [vmem:[%s392 + $0xe8] sm:$0xff]
      %v718 = vld [vmem:[%s392 + $0xf0] sm:$0xff]
      %v719 = vld [vmem:[%s392 + $0x108] sm:$0xff]
      %v720 = vld [vmem:[%s392 + $0x110] sm:$0xff]
      %v721 = vld [vmem:[%s392 + $0x128] sm:$0xff]
      %v722 = vld [vmem:[%s392 + $0x130] sm:$0xff]
      %v723 = vld [vmem:[%s392 + $0x148] sm:$0xff]
      %v724 = vld [vmem:[%s392 + $0x150] sm:$0xff]
      %v725 = vld [vmem:[%s392 + $0x168] sm:$0xff]
      %v726 = vld [vmem:[%s392 + $0x170] sm:$0xff]
      %v727 = vld [vmem:[%s392 + $0x188] sm:$0xff]
      %v728 = vld [vmem:[%s392 + $0x190] sm:$0xff]
      %v729 = vld [vmem:[%s392 + $0x1a8] sm:$0xff]
      %v730 = vld [vmem:[%s392 + $0x1b0] sm:$0xff]
      %v731 = vld [vmem:[%s392 + $0x1c8] sm:$0xff]
      %v732 = vld [vmem:[%s392 + $0x1d0] sm:$0xff]
      %v733 = vld [vmem:[%s392 + $0x1e8] sm:$0xff]
      %v734 = vld [vmem:[%s392 + $0x1f0] sm:$0xff]
      %v735 = vld [vmem:[%s392 + $0x9] sm:$0xff]
      %v736 = vld [vmem:[%s392 + $0x11] sm:$0xff]
      %v737 = vld [vmem:[%s392 + $0x29] sm:$0xff]
      %v738 = vld [vmem:[%s392 + $0x31] sm:$0xff]
      %v739 = vld [vmem:[%s392 + $0x49] sm:$0xff]
      %v740 = vld [vmem:[%s392 + $0x51] sm:$0xff]
      %v741 = vld [vmem:[%s392 + $0x69] sm:$0xff]
      %v742 = vld [vmem:[%s392 + $0x71] sm:$0xff]
      %v743 = vld [vmem:[%s392 + $0x89] sm:$0xff]
      %v744 = vld [vmem:[%s392 + $0x91] sm:$0xff]
      %v745 = vld [vmem:[%s392 + $0xa9] sm:$0xff]
      %v746 = vld [vmem:[%s392 + $0xb1] sm:$0xff]
      %v747 = vld [vmem:[%s392 + $0xc9] sm:$0xff]
      %v748 = vld [vmem:[%s392 + $0xd1] sm:$0xff]
      %v749 = vld [vmem:[%s392 + $0xe9] sm:$0xff]
      %v750 = vld [vmem:[%s392 + $0xf1] sm:$0xff]
      %v751 = vld [vmem:[%s392 + $0x109] sm:$0xff]
      %v752 = vld [vmem:[%s392 + $0x111] sm:$0xff]
      %v753 = vld [vmem:[%s392 + $0x129] sm:$0xff]
      %v754 = vld [vmem:[%s392 + $0x131] sm:$0xff]
      %v755 = vld [vmem:[%s392 + $0x149] sm:$0xff]
      %v756 = vld [vmem:[%s392 + $0x151] sm:$0xff]
      %v757 = vld [vmem:[%s392 + $0x169] sm:$0xff]
      %v758 = vld [vmem:[%s392 + $0x171] sm:$0xff]
      %v759 = vld [vmem:[%s392 + $0x189] sm:$0xff]
      %v760 = vld [vmem:[%s392 + $0x191] sm:$0xff]
      %v761 = vld [vmem:[%s392 + $0x1a9] sm:$0xff]
      %v762 = vld [vmem:[%s392 + $0x1b1] sm:$0xff]
      %v763 = vld [vmem:[%s392 + $0x1c9] sm:$0xff]
      %v764 = vld [vmem:[%s392 + $0x1d1] sm:$0xff]
      %v765 = vld [vmem:[%s392 + $0x1e9] sm:$0xff]
      %v766 = vld [vmem:[%s392 + $0x1f1] sm:$0xff]
      %799 = vrot.lane.b32.xlu0 %v511, 4
      %v800 = vpop.permute.xlu0 %799
      %801 = vrot.lane.b32.xlu0 %v512, 4
      %v802 = vpop.permute.xlu0 %801
      %803 = vrot.lane.b32.xlu0 %v513, 4
      %v804 = vpop.permute.xlu0 %803
      %805 = vrot.lane.b32.xlu0 %v514, 4
      %v806 = vpop.permute.xlu0 %805
      %807 = vrot.lane.b32.xlu0 %v515, 4
      %v808 = vpop.permute.xlu0 %807
      %809 = vrot.lane.b32.xlu0 %v516, 4
      %v810 = vpop.permute.xlu0 %809
      %811 = vrot.lane.b32.xlu0 %v517, 4
      %v812 = vpop.permute.xlu0 %811
      %813 = vrot.lane.b32.xlu0 %v518, 4
      %v814 = vpop.permute.xlu0 %813
      %815 = vrot.lane.b32.xlu0 %v519, 4
      %v816 = vpop.permute.xlu0 %815
      %817 = vrot.lane.b32.xlu0 %v520, 4
      %v818 = vpop.permute.xlu0 %817
      %819 = vrot.lane.b32.xlu0 %v521, 4
      %v820 = vpop.permute.xlu0 %819
      %821 = vrot.lane.b32.xlu0 %v522, 4
      %v822 = vpop.permute.xlu0 %821
      %823 = vrot.lane.b32.xlu0 %v523, 4
      %v824 = vpop.permute.xlu0 %823
      %825 = vrot.lane.b32.xlu0 %v524, 4
      %v826 = vpop.permute.xlu0 %825
      %827 = vrot.lane.b32.xlu0 %v525, 4
      %v828 = vpop.permute.xlu0 %827
      %829 = vrot.lane.b32.xlu0 %v526, 4
      %v830 = vpop.permute.xlu0 %829
      %831 = vrot.lane.b32.xlu0 %v527, 4
      %v832 = vpop.permute.xlu0 %831
      %833 = vrot.lane.b32.xlu0 %v528, 4
      %v834 = vpop.permute.xlu0 %833
      %835 = vrot.lane.b32.xlu0 %v529, 4
      %v836 = vpop.permute.xlu0 %835
      %837 = vrot.lane.b32.xlu0 %v530, 4
      %v838 = vpop.permute.xlu0 %837
      %839 = vrot.lane.b32.xlu0 %v531, 4
      %v840 = vpop.permute.xlu0 %839
      %841 = vrot.lane.b32.xlu0 %v532, 4
      %v842 = vpop.permute.xlu0 %841
      %843 = vrot.lane.b32.xlu0 %v533, 4
      %v844 = vpop.permute.xlu0 %843
      %845 = vrot.lane.b32.xlu0 %v534, 4
      %v846 = vpop.permute.xlu0 %845
      %847 = vrot.lane.b32.xlu0 %v535, 4
      %v848 = vpop.permute.xlu0 %847
      %849 = vrot.lane.b32.xlu0 %v536, 4
      %v850 = vpop.permute.xlu0 %849
      %851 = vrot.lane.b32.xlu0 %v537, 4
      %v852 = vpop.permute.xlu0 %851
      %853 = vrot.lane.b32.xlu0 %v538, 4
      %v854 = vpop.permute.xlu0 %853
      %855 = vrot.lane.b32.xlu0 %v539, 4
      %v856 = vpop.permute.xlu0 %855
      %857 = vrot.lane.b32.xlu0 %v540, 4
      %v858 = vpop.permute.xlu0 %857
      %859 = vrot.lane.b32.xlu0 %v541, 4
      %v860 = vpop.permute.xlu0 %859
      %861 = vrot.lane.b32.xlu0 %v542, 4
      %v862 = vpop.permute.xlu0 %861
      %927 = vrot.lane.b32.xlu0 %v543, 8
      %v928 = vpop.permute.xlu0 %927
      %929 = vrot.lane.b32.xlu0 %v544, 8
      %v930 = vpop.permute.xlu0 %929
      %931 = vrot.lane.b32.xlu0 %v545, 8
      %v932 = vpop.permute.xlu0 %931
      %933 = vrot.lane.b32.xlu0 %v546, 8
      %v934 = vpop.permute.xlu0 %933
      %935 = vrot.lane.b32.xlu0 %v547, 8
      %v936 = vpop.permute.xlu0 %935
      %937 = vrot.lane.b32.xlu0 %v548, 8
      %v938 = vpop.permute.xlu0 %937
      %939 = vrot.lane.b32.xlu0 %v549, 8
      %v940 = vpop.permute.xlu0 %939
      %941 = vrot.lane.b32.xlu0 %v550, 8
      %v942 = vpop.permute.xlu0 %941
      %943 = vrot.lane.b32.xlu0 %v551, 8
      %v944 = vpop.permute.xlu0 %943
      %945 = vrot.lane.b32.xlu0 %v552, 8
      %v946 = vpop.permute.xlu0 %945
      %947 = vrot.lane.b32.xlu0 %v553, 8
      %v948 = vpop.permute.xlu0 %947
      %949 = vrot.lane.b32.xlu0 %v554, 8
      %v950 = vpop.permute.xlu0 %949
      %951 = vrot.lane.b32.xlu0 %v555, 8
      %v952 = vpop.permute.xlu0 %951
      %953 = vrot.lane.b32.xlu0 %v556, 8
      %v954 = vpop.permute.xlu0 %953
      %955 = vrot.lane.b32.xlu0 %v557, 8
      %v956 = vpop.permute.xlu0 %955
      %957 = vrot.lane.b32.xlu0 %v558, 8
      %v958 = vpop.permute.xlu0 %957
      %959 = vrot.lane.b32.xlu0 %v559, 8
      %v960 = vpop.permute.xlu0 %959
      %961 = vrot.lane.b32.xlu0 %v560, 8
      %v962 = vpop.permute.xlu0 %961
      %963 = vrot.lane.b32.xlu0 %v561, 8
      %v964 = vpop.permute.xlu0 %963
      %965 = vrot.lane.b32.xlu0 %v562, 8
      %v966 = vpop.permute.xlu0 %965
      %967 = vrot.lane.b32.xlu0 %v563, 8
      %v968 = vpop.permute.xlu0 %967
      %969 = vrot.lane.b32.xlu0 %v564, 8
      %v970 = vpop.permute.xlu0 %969
      %971 = vrot.lane.b32.xlu0 %v565, 8
      %v972 = vpop.permute.xlu0 %971
      %973 = vrot.lane.b32.xlu0 %v566, 8
      %v974 = vpop.permute.xlu0 %973
      %975 = vrot.lane.b32.xlu0 %v567, 8
      %v976 = vpop.permute.xlu0 %975
      %977 = vrot.lane.b32.xlu0 %v568, 8
      %v978 = vpop.permute.xlu0 %977
      %979 = vrot.lane.b32.xlu0 %v569, 8
      %v980 = vpop.permute.xlu0 %979
      %981 = vrot.lane.b32.xlu0 %v570, 8
      %v982 = vpop.permute.xlu0 %981
      %983 = vrot.lane.b32.xlu0 %v571, 8
      %v984 = vpop.permute.xlu0 %983
      %985 = vrot.lane.b32.xlu0 %v572, 8
      %v986 = vpop.permute.xlu0 %985
      %987 = vrot.lane.b32.xlu0 %v573, 8
      %v988 = vpop.permute.xlu0 %987
      %989 = vrot.lane.b32.xlu0 %v574, 8
      %v990 = vpop.permute.xlu0 %989
      %1055 = vrot.lane.b32.xlu0 %v575, 12
      %v1056 = vpop.permute.xlu0 %1055
      %1057 = vrot.lane.b32.xlu0 %v576, 12
      %v1058 = vpop.permute.xlu0 %1057
      %1059 = vrot.lane.b32.xlu0 %v577, 12
      %v1060 = vpop.permute.xlu0 %1059
      %1061 = vrot.lane.b32.xlu0 %v578, 12
      %v1062 = vpop.permute.xlu0 %1061
      %1063 = vrot.lane.b32.xlu0 %v579, 12
      %v1064 = vpop.permute.xlu0 %1063
      %1065 = vrot.lane.b32.xlu0 %v580, 12
      %v1066 = vpop.permute.xlu0 %1065
      %1067 = vrot.lane.b32.xlu0 %v581, 12
      %v1068 = vpop.permute.xlu0 %1067
      %1069 = vrot.lane.b32.xlu0 %v582, 12
      %v1070 = vpop.permute.xlu0 %1069
      %1071 = vrot.lane.b32.xlu0 %v583, 12
      %v1072 = vpop.permute.xlu0 %1071
      %1073 = vrot.lane.b32.xlu0 %v584, 12
      %v1074 = vpop.permute.xlu0 %1073
      %1075 = vrot.lane.b32.xlu0 %v585, 12
      %v1076 = vpop.permute.xlu0 %1075
      %1077 = vrot.lane.b32.xlu0 %v586, 12
      %v1078 = vpop.permute.xlu0 %1077
      %1079 = vrot.lane.b32.xlu0 %v587, 12
      %v1080 = vpop.permute.xlu0 %1079
      %1081 = vrot.lane.b32.xlu0 %v588, 12
      %v1082 = vpop.permute.xlu0 %1081
      %1083 = vrot.lane.b32.xlu0 %v589, 12
      %v1084 = vpop.permute.xlu0 %1083
      %1085 = vrot.lane.b32.xlu0 %v590, 12
      %v1086 = vpop.permute.xlu0 %1085
      %1087 = vrot.lane.b32.xlu0 %v591, 12
      %v1088 = vpop.permute.xlu0 %1087
      %1089 = vrot.lane.b32.xlu0 %v592, 12
      %v1090 = vpop.permute.xlu0 %1089
      %1091 = vrot.lane.b32.xlu0 %v593, 12
      %v1092 = vpop.permute.xlu0 %1091
      %1093 = vrot.lane.b32.xlu0 %v594, 12
      %v1094 = vpop.permute.xlu0 %1093
      %1095 = vrot.lane.b32.xlu0 %v595, 12
      %v1096 = vpop.permute.xlu0 %1095
      %1097 = vrot.lane.b32.xlu0 %v596, 12
      %v1098 = vpop.permute.xlu0 %1097
      %1099 = vrot.lane.b32.xlu0 %v597, 12
      %v1100 = vpop.permute.xlu0 %1099
      %1101 = vrot.lane.b32.xlu0 %v598, 12
      %v1102 = vpop.permute.xlu0 %1101
      %1103 = vrot.lane.b32.xlu0 %v599, 12
      %v1104 = vpop.permute.xlu0 %1103
      %1105 = vrot.lane.b32.xlu0 %v600, 12
      %v1106 = vpop.permute.xlu0 %1105
      %1107 = vrot.lane.b32.xlu0 %v601, 12
      %v1108 = vpop.permute.xlu0 %1107
      %1109 = vrot.lane.b32.xlu0 %v602, 12
      %v1110 = vpop.permute.xlu0 %1109
      %1111 = vrot.lane.b32.xlu0 %v603, 12
      %v1112 = vpop.permute.xlu0 %1111
      %1113 = vrot.lane.b32.xlu0 %v604, 12
      %v1114 = vpop.permute.xlu0 %1113
      %1115 = vrot.lane.b32.xlu0 %v605, 12
      %v1116 = vpop.permute.xlu0 %1115
      %1117 = vrot.lane.b32.xlu0 %v606, 12
      %v1118 = vpop.permute.xlu0 %1117
      %1183 = vrot.lane.b32.xlu0 %v607, 16
      %v1184 = vpop.permute.xlu0 %1183
      %1185 = vrot.lane.b32.xlu0 %v608, 16
      %v1186 = vpop.permute.xlu0 %1185
      %1187 = vrot.lane.b32.xlu0 %v609, 16
      %v1188 = vpop.permute.xlu0 %1187
      %1189 = vrot.lane.b32.xlu0 %v610, 16
      %v1190 = vpop.permute.xlu0 %1189
      %1191 = vrot.lane.b32.xlu0 %v611, 16
      %v1192 = vpop.permute.xlu0 %1191
      %1193 = vrot.lane.b32.xlu0 %v612, 16
      %v1194 = vpop.permute.xlu0 %1193
      %1195 = vrot.lane.b32.xlu0 %v613, 16
      %v1196 = vpop.permute.xlu0 %1195
      %1197 = vrot.lane.b32.xlu0 %v614, 16
      %v1198 = vpop.permute.xlu0 %1197
      %1199 = vrot.lane.b32.xlu0 %v615, 16
      %v1200 = vpop.permute.xlu0 %1199
      %1201 = vrot.lane.b32.xlu0 %v616, 16
      %v1202 = vpop.permute.xlu0 %1201
      %1203 = vrot.lane.b32.xlu0 %v617, 16
      %v1204 = vpop.permute.xlu0 %1203
      %1205 = vrot.lane.b32.xlu0 %v618, 16
      %v1206 = vpop.permute.xlu0 %1205
      %1207 = vrot.lane.b32.xlu0 %v619, 16
      %v1208 = vpop.permute.xlu0 %1207
      %1209 = vrot.lane.b32.xlu0 %v620, 16
      %v1210 = vpop.permute.xlu0 %1209
      %1211 = vrot.lane.b32.xlu0 %v621, 16
      %v1212 = vpop.permute.xlu0 %1211
      %1213 = vrot.lane.b32.xlu0 %v622, 16
      %v1214 = vpop.permute.xlu0 %1213
      %1215 = vrot.lane.b32.xlu0 %v623, 16
      %v1216 = vpop.permute.xlu0 %1215
      %1217 = vrot.lane.b32.xlu0 %v624, 16
      %v1218 = vpop.permute.xlu0 %1217
      %1219 = vrot.lane.b32.xlu0 %v625, 16
      %v1220 = vpop.permute.xlu0 %1219
      %1221 = vrot.lane.b32.xlu0 %v626, 16
      %v1222 = vpop.permute.xlu0 %1221
      %1223 = vrot.lane.b32.xlu0 %v627, 16
      %v1224 = vpop.permute.xlu0 %1223
      %1225 = vrot.lane.b32.xlu0 %v628, 16
      %v1226 = vpop.permute.xlu0 %1225
      %1227 = vrot.lane.b32.xlu0 %v629, 16
      %v1228 = vpop.permute.xlu0 %1227
      %1229 = vrot.lane.b32.xlu0 %v630, 16
      %v1230 = vpop.permute.xlu0 %1229
      %1231 = vrot.lane.b32.xlu0 %v631, 16
      %v1232 = vpop.permute.xlu0 %1231
      %1233 = vrot.lane.b32.xlu0 %v632, 16
      %v1234 = vpop.permute.xlu0 %1233
      %1235 = vrot.lane.b32.xlu0 %v633, 16
      %v1236 = vpop.permute.xlu0 %1235
      %1237 = vrot.lane.b32.xlu0 %v634, 16
      %v1238 = vpop.permute.xlu0 %1237
      %1239 = vrot.lane.b32.xlu0 %v635, 16
      %v1240 = vpop.permute.xlu0 %1239
      %1241 = vrot.lane.b32.xlu0 %v636, 16
      %v1242 = vpop.permute.xlu0 %1241
      %1243 = vrot.lane.b32.xlu0 %v637, 16
      %v1244 = vpop.permute.xlu0 %1243
      %1245 = vrot.lane.b32.xlu0 %v638, 16
      %v1246 = vpop.permute.xlu0 %1245
      %1311 = vrot.lane.b32.xlu0 %v639, 20
      %v1312 = vpop.permute.xlu0 %1311
      %1313 = vrot.lane.b32.xlu0 %v640, 20
      %v1314 = vpop.permute.xlu0 %1313
      %1315 = vrot.lane.b32.xlu0 %v641, 20
      %v1316 = vpop.permute.xlu0 %1315
      %1317 = vrot.lane.b32.xlu0 %v642, 20
      %v1318 = vpop.permute.xlu0 %1317
      %1319 = vrot.lane.b32.xlu0 %v643, 20
      %v1320 = vpop.permute.xlu0 %1319
      %1321 = vrot.lane.b32.xlu0 %v644, 20
      %v1322 = vpop.permute.xlu0 %1321
      %1323 = vrot.lane.b32.xlu0 %v645, 20
      %v1324 = vpop.permute.xlu0 %1323
      %1325 = vrot.lane.b32.xlu0 %v646, 20
      %v1326 = vpop.permute.xlu0 %1325
      %1327 = vrot.lane.b32.xlu0 %v647, 20
      %v1328 = vpop.permute.xlu0 %1327
      %1329 = vrot.lane.b32.xlu0 %v648, 20
      %v1330 = vpop.permute.xlu0 %1329
      %1331 = vrot.lane.b32.xlu0 %v649, 20
      %v1332 = vpop.permute.xlu0 %1331
      %1333 = vrot.lane.b32.xlu0 %v650, 20
      %v1334 = vpop.permute.xlu0 %1333
      %1335 = vrot.lane.b32.xlu0 %v651, 20
      %v1336 = vpop.permute.xlu0 %1335
      %1337 = vrot.lane.b32.xlu0 %v652, 20
      %v1338 = vpop.permute.xlu0 %1337
      %1339 = vrot.lane.b32.xlu0 %v653, 20
      %v1340 = vpop.permute.xlu0 %1339
      %1341 = vrot.lane.b32.xlu0 %v654, 20
      %v1342 = vpop.permute.xlu0 %1341
      %1343 = vrot.lane.b32.xlu0 %v655, 20
      %v1344 = vpop.permute.xlu0 %1343
      %1345 = vrot.lane.b32.xlu0 %v656, 20
      %v1346 = vpop.permute.xlu0 %1345
      %1347 = vrot.lane.b32.xlu0 %v657, 20
      %v1348 = vpop.permute.xlu0 %1347
      %1349 = vrot.lane.b32.xlu0 %v658, 20
      %v1350 = vpop.permute.xlu0 %1349
      %1351 = vrot.lane.b32.xlu0 %v659, 20
      %v1352 = vpop.permute.xlu0 %1351
      %1353 = vrot.lane.b32.xlu0 %v660, 20
      %v1354 = vpop.permute.xlu0 %1353
      %1355 = vrot.lane.b32.xlu0 %v661, 20
      %v1356 = vpop.permute.xlu0 %1355
      %1357 = vrot.lane.b32.xlu0 %v662, 20
      %v1358 = vpop.permute.xlu0 %1357
      %1359 = vrot.lane.b32.xlu0 %v663, 20
      %v1360 = vpop.permute.xlu0 %1359
      %1361 = vrot.lane.b32.xlu0 %v664, 20
      %v1362 = vpop.permute.xlu0 %1361
      %1363 = vrot.lane.b32.xlu0 %v665, 20
      %v1364 = vpop.permute.xlu0 %1363
      %1365 = vrot.lane.b32.xlu0 %v666, 20
      %v1366 = vpop.permute.xlu0 %1365
      %1367 = vrot.lane.b32.xlu0 %v667, 20
      %v1368 = vpop.permute.xlu0 %1367
      %1369 = vrot.lane.b32.xlu0 %v668, 20
      %v1370 = vpop.permute.xlu0 %1369
      %1371 = vrot.lane.b32.xlu0 %v669, 20
      %v1372 = vpop.permute.xlu0 %1371
      %1373 = vrot.lane.b32.xlu0 %v670, 20
      %v1374 = vpop.permute.xlu0 %1373
      %1439 = vrot.lane.b32.xlu0 %v671, 24
      %v1440 = vpop.permute.xlu0 %1439
      %1441 = vrot.lane.b32.xlu0 %v672, 24
      %v1442 = vpop.permute.xlu0 %1441
      %1443 = vrot.lane.b32.xlu0 %v673, 24
      %v1444 = vpop.permute.xlu0 %1443
      %1445 = vrot.lane.b32.xlu0 %v674, 24
      %v1446 = vpop.permute.xlu0 %1445
      %1447 = vrot.lane.b32.xlu0 %v675, 24
      %v1448 = vpop.permute.xlu0 %1447
      %1449 = vrot.lane.b32.xlu0 %v676, 24
      %v1450 = vpop.permute.xlu0 %1449
      %1451 = vrot.lane.b32.xlu0 %v677, 24
      %v1452 = vpop.permute.xlu0 %1451
      %1453 = vrot.lane.b32.xlu0 %v678, 24
      %v1454 = vpop.permute.xlu0 %1453
      %1455 = vrot.lane.b32.xlu0 %v679, 24
      %v1456 = vpop.permute.xlu0 %1455
      %1457 = vrot.lane.b32.xlu0 %v680, 24
      %v1458 = vpop.permute.xlu0 %1457
      %1459 = vrot.lane.b32.xlu0 %v681, 24
      %v1460 = vpop.permute.xlu0 %1459
      %1461 = vrot.lane.b32.xlu0 %v682, 24
      %v1462 = vpop.permute.xlu0 %1461
      %1463 = vrot.lane.b32.xlu0 %v683, 24
      %v1464 = vpop.permute.xlu0 %1463
      %1465 = vrot.lane.b32.xlu0 %v684, 24
      %v1466 = vpop.permute.xlu0 %1465
      %1467 = vrot.lane.b32.xlu0 %v685, 24
      %v1468 = vpop.permute.xlu0 %1467
      %1469 = vrot.lane.b32.xlu0 %v686, 24
      %v1470 = vpop.permute.xlu0 %1469
      %1471 = vrot.lane.b32.xlu0 %v687, 24
      %v1472 = vpop.permute.xlu0 %1471
      %1473 = vrot.lane.b32.xlu0 %v688, 24
      %v1474 = vpop.permute.xlu0 %1473
      %1475 = vrot.lane.b32.xlu0 %v689, 24
      %v1476 = vpop.permute.xlu0 %1475
      %1477 = vrot.lane.b32.xlu0 %v690, 24
      %v1478 = vpop.permute.xlu0 %1477
      %1479 = vrot.lane.b32.xlu0 %v691, 24
      %v1480 = vpop.permute.xlu0 %1479
      %1481 = vrot.lane.b32.xlu0 %v692, 24
      %v1482 = vpop.permute.xlu0 %1481
      %1483 = vrot.lane.b32.xlu0 %v693, 24
      %v1484 = vpop.permute.xlu0 %1483
      %1485 = vrot.lane.b32.xlu0 %v694, 24
      %v1486 = vpop.permute.xlu0 %1485
      %1487 = vrot.lane.b32.xlu0 %v695, 24
      %v1488 = vpop.permute.xlu0 %1487
      %1489 = vrot.lane.b32.xlu0 %v696, 24
      %v1490 = vpop.permute.xlu0 %1489
      %1491 = vrot.lane.b32.xlu0 %v697, 24
      %v1492 = vpop.permute.xlu0 %1491
      %1493 = vrot.lane.b32.xlu0 %v698, 24
      %v1494 = vpop.permute.xlu0 %1493
      %1495 = vrot.lane.b32.xlu0 %v699, 24
      %v1496 = vpop.permute.xlu0 %1495
      %1497 = vrot.lane.b32.xlu0 %v700, 24
      %v1498 = vpop.permute.xlu0 %1497
      %1499 = vrot.lane.b32.xlu0 %v701, 24
      %v1500 = vpop.permute.xlu0 %1499
      %1501 = vrot.lane.b32.xlu0 %v702, 24
      %v1502 = vpop.permute.xlu0 %1501
      %1567 = vrot.lane.b32.xlu0 %v703, 28
      %v1568 = vpop.permute.xlu0 %1567
      %1569 = vrot.lane.b32.xlu0 %v704, 28
      %v1570 = vpop.permute.xlu0 %1569
      %1571 = vrot.lane.b32.xlu0 %v705, 28
      %v1572 = vpop.permute.xlu0 %1571
      %1573 = vrot.lane.b32.xlu0 %v706, 28
      %v1574 = vpop.permute.xlu0 %1573
      %1575 = vrot.lane.b32.xlu0 %v707, 28
      %v1576 = vpop.permute.xlu0 %1575
      %1577 = vrot.lane.b32.xlu0 %v708, 28
      %v1578 = vpop.permute.xlu0 %1577
      %1579 = vrot.lane.b32.xlu0 %v709, 28
      %v1580 = vpop.permute.xlu0 %1579
      %1581 = vrot.lane.b32.xlu0 %v710, 28
      %v1582 = vpop.permute.xlu0 %1581
      %1583 = vrot.lane.b32.xlu0 %v711, 28
      %v1584 = vpop.permute.xlu0 %1583
      %1585 = vrot.lane.b32.xlu0 %v712, 28
      %v1586 = vpop.permute.xlu0 %1585
      %1587 = vrot.lane.b32.xlu0 %v713, 28
      %v1588 = vpop.permute.xlu0 %1587
      %1589 = vrot.lane.b32.xlu0 %v714, 28
      %v1590 = vpop.permute.xlu0 %1589
      %1591 = vrot.lane.b32.xlu0 %v715, 28
      %v1592 = vpop.permute.xlu0 %1591
      %1593 = vrot.lane.b32.xlu0 %v716, 28
      %v1594 = vpop.permute.xlu0 %1593
      %1595 = vrot.lane.b32.xlu0 %v717, 28
      %v1596 = vpop.permute.xlu0 %1595
      %1597 = vrot.lane.b32.xlu0 %v718, 28
      %v1598 = vpop.permute.xlu0 %1597
      %1599 = vrot.lane.b32.xlu0 %v719, 28
      %v1600 = vpop.permute.xlu0 %1599
      %1601 = vrot.lane.b32.xlu0 %v720, 28
      %v1602 = vpop.permute.xlu0 %1601
      %1603 = vrot.lane.b32.xlu0 %v721, 28
      %v1604 = vpop.permute.xlu0 %1603
      %1605 = vrot.lane.b32.xlu0 %v722, 28
      %v1606 = vpop.permute.xlu0 %1605
      %1607 = vrot.lane.b32.xlu0 %v723, 28
      %v1608 = vpop.permute.xlu0 %1607
      %1609 = vrot.lane.b32.xlu0 %v724, 28
      %v1610 = vpop.permute.xlu0 %1609
      %1611 = vrot.lane.b32.xlu0 %v725, 28
      %v1612 = vpop.permute.xlu0 %1611
      %1613 = vrot.lane.b32.xlu0 %v726, 28
      %v1614 = vpop.permute.xlu0 %1613
      %1615 = vrot.lane.b32.xlu0 %v727, 28
      %v1616 = vpop.permute.xlu0 %1615
      %1617 = vrot.lane.b32.xlu0 %v728, 28
      %v1618 = vpop.permute.xlu0 %1617
      %1619 = vrot.lane.b32.xlu0 %v729, 28
      %v1620 = vpop.permute.xlu0 %1619
      %1621 = vrot.lane.b32.xlu0 %v730, 28
      %v1622 = vpop.permute.xlu0 %1621
      %1623 = vrot.lane.b32.xlu0 %v731, 28
      %v1624 = vpop.permute.xlu0 %1623
      %1625 = vrot.lane.b32.xlu0 %v732, 28
      %v1626 = vpop.permute.xlu0 %1625
      %1627 = vrot.lane.b32.xlu0 %v733, 28
      %v1628 = vpop.permute.xlu0 %1627
      %1629 = vrot.lane.b32.xlu0 %v734, 28
      %v1630 = vpop.permute.xlu0 %1629
      %1695 = vrot.lane.b32.xlu0 %v735, 32
      %v1696 = vpop.permute.xlu0 %1695
      %1697 = vrot.lane.b32.xlu0 %v736, 32
      %v1698 = vpop.permute.xlu0 %1697
      %1699 = vrot.lane.b32.xlu0 %v737, 32
      %v1700 = vpop.permute.xlu0 %1699
      %1701 = vrot.lane.b32.xlu0 %v738, 32
      %v1702 = vpop.permute.xlu0 %1701
      %1703 = vrot.lane.b32.xlu0 %v739, 32
      %v1704 = vpop.permute.xlu0 %1703
      %1705 = vrot.lane.b32.xlu0 %v740, 32
      %v1706 = vpop.permute.xlu0 %1705
      %1707 = vrot.lane.b32.xlu0 %v741, 32
      %v1708 = vpop.permute.xlu0 %1707
      %1709 = vrot.lane.b32.xlu0 %v742, 32
      %v1710 = vpop.permute.xlu0 %1709
      %1711 = vrot.lane.b32.xlu0 %v743, 32
      %v1712 = vpop.permute.xlu0 %1711
      %1713 = vrot.lane.b32.xlu0 %v744, 32
      %v1714 = vpop.permute.xlu0 %1713
      %1715 = vrot.lane.b32.xlu0 %v745, 32
      %v1716 = vpop.permute.xlu0 %1715
      %1717 = vrot.lane.b32.xlu0 %v746, 32
      %v1718 = vpop.permute.xlu0 %1717
      %1719 = vrot.lane.b32.xlu0 %v747, 32
      %v1720 = vpop.permute.xlu0 %1719
      %1721 = vrot.lane.b32.xlu0 %v748, 32
      %v1722 = vpop.permute.xlu0 %1721
      %1723 = vrot.lane.b32.xlu0 %v749, 32
      %v1724 = vpop.permute.xlu0 %1723
      %1725 = vrot.lane.b32.xlu0 %v750, 32
      %v1726 = vpop.permute.xlu0 %1725
      %1727 = vrot.lane.b32.xlu0 %v751, 32
      %v1728 = vpop.permute.xlu0 %1727
      %1729 = vrot.lane.b32.xlu0 %v752, 32
      %v1730 = vpop.permute.xlu0 %1729
      %1731 = vrot.lane.b32.xlu0 %v753, 32
      %v1732 = vpop.permute.xlu0 %1731
      %1733 = vrot.lane.b32.xlu0 %v754, 32
      %v1734 = vpop.permute.xlu0 %1733
      %1735 = vrot.lane.b32.xlu0 %v755, 32
      %v1736 = vpop.permute.xlu0 %1735
      %1737 = vrot.lane.b32.xlu0 %v756, 32
      %v1738 = vpop.permute.xlu0 %1737
      %1739 = vrot.lane.b32.xlu0 %v757, 32
      %v1740 = vpop.permute.xlu0 %1739
      %1741 = vrot.lane.b32.xlu0 %v758, 32
      %v1742 = vpop.permute.xlu0 %1741
      %1743 = vrot.lane.b32.xlu0 %v759, 32
      %v1744 = vpop.permute.xlu0 %1743
      %1745 = vrot.lane.b32.xlu0 %v760, 32
      %v1746 = vpop.permute.xlu0 %1745
      %1747 = vrot.lane.b32.xlu0 %v761, 32
      %v1748 = vpop.permute.xlu0 %1747
      %1749 = vrot.lane.b32.xlu0 %v762, 32
      %v1750 = vpop.permute.xlu0 %1749
      %1751 = vrot.lane.b32.xlu0 %v763, 32
      %v1752 = vpop.permute.xlu0 %1751
      %1753 = vrot.lane.b32.xlu0 %v764, 32
      %v1754 = vpop.permute.xlu0 %1753
      %1755 = vrot.lane.b32.xlu0 %v765, 32
      %v1756 = vpop.permute.xlu0 %1755
      %1757 = vrot.lane.b32.xlu0 %v766, 32
      %v1758 = vpop.permute.xlu0 %1757
      %v1791 = vsel %vm238, %v479, %v800
      %v1792 = vsel %vm238, %v480, %v802
      %v1793 = vsel %vm238, %v481, %v804
      %v1794 = vsel %vm238, %v482, %v806
      %v1795 = vsel %vm238, %v483, %v808
      %v1796 = vsel %vm238, %v484, %v810
      %v1797 = vsel %vm238, %v485, %v812
      %v1798 = vsel %vm238, %v486, %v814
      %v1799 = vsel %vm238, %v487, %v816
      %v1800 = vsel %vm238, %v488, %v818
      %v1801 = vsel %vm238, %v489, %v820
      %v1802 = vsel %vm238, %v490, %v822
      %v1803 = vsel %vm238, %v491, %v824
      %v1804 = vsel %vm238, %v492, %v826
      %v1805 = vsel %vm238, %v493, %v828
      %v1806 = vsel %vm238, %v494, %v830
      %v1807 = vsel %vm238, %v495, %v832
      %v1808 = vsel %vm238, %v496, %v834
      %v1809 = vsel %vm238, %v497, %v836
      %v1810 = vsel %vm238, %v498, %v838
      %v1811 = vsel %vm238, %v499, %v840
      %v1812 = vsel %vm238, %v500, %v842
      %v1813 = vsel %vm238, %v501, %v844
      %v1814 = vsel %vm238, %v502, %v846
      %v1815 = vsel %vm238, %v503, %v848
      %v1816 = vsel %vm238, %v504, %v850
      %v1817 = vsel %vm238, %v505, %v852
      %v1818 = vsel %vm238, %v506, %v854
      %v1819 = vsel %vm238, %v507, %v856
      %v1820 = vsel %vm238, %v508, %v858
      %v1821 = vsel %vm238, %v509, %v860
      %v1822 = vsel %vm238, %v510, %v862
      %v1823 = vsel %vm311, %v1791, %v928
      %v1824 = vsel %vm311, %v1792, %v930
      %v1825 = vsel %vm311, %v1793, %v932
      %v1826 = vsel %vm311, %v1794, %v934
      %v1827 = vsel %vm311, %v1795, %v936
      %v1828 = vsel %vm311, %v1796, %v938
      %v1829 = vsel %vm311, %v1797, %v940
      %v1830 = vsel %vm311, %v1798, %v942
      %v1831 = vsel %vm311, %v1799, %v944
      %v1832 = vsel %vm311, %v1800, %v946
      %v1833 = vsel %vm311, %v1801, %v948
      %v1834 = vsel %vm311, %v1802, %v950
      %v1835 = vsel %vm311, %v1803, %v952
      %v1836 = vsel %vm311, %v1804, %v954
      %v1837 = vsel %vm311, %v1805, %v956
      %v1838 = vsel %vm311, %v1806, %v958
      %v1839 = vsel %vm311, %v1807, %v960
      %v1840 = vsel %vm311, %v1808, %v962
      %v1841 = vsel %vm311, %v1809, %v964
      %v1842 = vsel %vm311, %v1810, %v966
      %v1843 = vsel %vm311, %v1811, %v968
      %v1844 = vsel %vm311, %v1812, %v970
      %v1845 = vsel %vm311, %v1813, %v972
      %v1846 = vsel %vm311, %v1814, %v974
      %v1847 = vsel %vm311, %v1815, %v976
      %v1848 = vsel %vm311, %v1816, %v978
      %v1849 = vsel %vm311, %v1817, %v980
      %v1850 = vsel %vm311, %v1818, %v982
      %v1851 = vsel %vm311, %v1819, %v984
      %v1852 = vsel %vm311, %v1820, %v986
      %v1853 = vsel %vm311, %v1821, %v988
      %v1854 = vsel %vm311, %v1822, %v990
      %vm1855 = vcmask 97280
      %v1856 = vsel %vm1855, %v1823, %v1056
      %v1857 = vsel %vm1855, %v1824, %v1058
      %v1858 = vsel %vm1855, %v1825, %v1060
      %v1859 = vsel %vm1855, %v1826, %v1062
      %v1860 = vsel %vm1855, %v1827, %v1064
      %v1861 = vsel %vm1855, %v1828, %v1066
      %v1862 = vsel %vm1855, %v1829, %v1068
      %v1863 = vsel %vm1855, %v1830, %v1070
      %v1864 = vsel %vm1855, %v1831, %v1072
      %v1865 = vsel %vm1855, %v1832, %v1074
      %v1866 = vsel %vm1855, %v1833, %v1076
      %v1867 = vsel %vm1855, %v1834, %v1078
      %v1868 = vsel %vm1855, %v1835, %v1080
      %v1869 = vsel %vm1855, %v1836, %v1082
      %v1870 = vsel %vm1855, %v1837, %v1084
      %v1871 = vsel %vm1855, %v1838, %v1086
      %v1872 = vsel %vm1855, %v1839, %v1088
      %v1873 = vsel %vm1855, %v1840, %v1090
      %v1874 = vsel %vm1855, %v1841, %v1092
      %v1875 = vsel %vm1855, %v1842, %v1094
      %v1876 = vsel %vm1855, %v1843, %v1096
      %v1877 = vsel %vm1855, %v1844, %v1098
      %v1878 = vsel %vm1855, %v1845, %v1100
      %v1879 = vsel %vm1855, %v1846, %v1102
      %v1880 = vsel %vm1855, %v1847, %v1104
      %v1881 = vsel %vm1855, %v1848, %v1106
      %v1882 = vsel %vm1855, %v1849, %v1108
      %v1883 = vsel %vm1855, %v1850, %v1110
      %v1884 = vsel %vm1855, %v1851, %v1112
      %v1885 = vsel %vm1855, %v1852, %v1114
      %v1886 = vsel %vm1855, %v1853, %v1116
      %v1887 = vsel %vm1855, %v1854, %v1118
      %vm1888 = vcmask 130048
      %v1889 = vsel %vm1888, %v1856, %v1184
      %v1890 = vsel %vm1888, %v1857, %v1186
      %v1891 = vsel %vm1888, %v1858, %v1188
      %v1892 = vsel %vm1888, %v1859, %v1190
      %v1893 = vsel %vm1888, %v1860, %v1192
      %v1894 = vsel %vm1888, %v1861, %v1194
      %v1895 = vsel %vm1888, %v1862, %v1196
      %v1896 = vsel %vm1888, %v1863, %v1198
      %v1897 = vsel %vm1888, %v1864, %v1200
      %v1898 = vsel %vm1888, %v1865, %v1202
      %v1899 = vsel %vm1888, %v1866, %v1204
      %v1900 = vsel %vm1888, %v1867, %v1206
      %v1901 = vsel %vm1888, %v1868, %v1208
      %v1902 = vsel %vm1888, %v1869, %v1210
      %v1903 = vsel %vm1888, %v1870, %v1212
      %v1904 = vsel %vm1888, %v1871, %v1214
      %v1905 = vsel %vm1888, %v1872, %v1216
      %v1906 = vsel %vm1888, %v1873, %v1218
      %v1907 = vsel %vm1888, %v1874, %v1220
      %v1908 = vsel %vm1888, %v1875, %v1222
      %v1909 = vsel %vm1888, %v1876, %v1224
      %v1910 = vsel %vm1888, %v1877, %v1226
      %v1911 = vsel %vm1888, %v1878, %v1228
      %v1912 = vsel %vm1888, %v1879, %v1230
      %v1913 = vsel %vm1888, %v1880, %v1232
      %v1914 = vsel %vm1888, %v1881, %v1234
      %v1915 = vsel %vm1888, %v1882, %v1236
      %v1916 = vsel %vm1888, %v1883, %v1238
      %v1917 = vsel %vm1888, %v1884, %v1240
      %v1918 = vsel %vm1888, %v1885, %v1242
      %v1919 = vsel %vm1888, %v1886, %v1244
      %v1920 = vsel %vm1888, %v1887, %v1246
      %vm1921 = vcmask 162816
      %v1922 = vsel %vm1921, %v1889, %v1312
      %v1923 = vsel %vm1921, %v1890, %v1314
      %v1924 = vsel %vm1921, %v1891, %v1316
      %v1925 = vsel %vm1921, %v1892, %v1318
      %v1926 = vsel %vm1921, %v1893, %v1320
      %v1927 = vsel %vm1921, %v1894, %v1322
      %v1928 = vsel %vm1921, %v1895, %v1324
      %v1929 = vsel %vm1921, %v1896, %v1326
      %v1930 = vsel %vm1921, %v1897, %v1328
      %v1931 = vsel %vm1921, %v1898, %v1330
      %v1932 = vsel %vm1921, %v1899, %v1332
      %v1933 = vsel %vm1921, %v1900, %v1334
      %v1934 = vsel %vm1921, %v1901, %v1336
      %v1935 = vsel %vm1921, %v1902, %v1338
      %v1936 = vsel %vm1921, %v1903, %v1340
      %v1937 = vsel %vm1921, %v1904, %v1342
      %v1938 = vsel %vm1921, %v1905, %v1344
      %v1939 = vsel %vm1921, %v1906, %v1346
      %v1940 = vsel %vm1921, %v1907, %v1348
      %v1941 = vsel %vm1921, %v1908, %v1350
      %v1942 = vsel %vm1921, %v1909, %v1352
      %v1943 = vsel %vm1921, %v1910, %v1354
      %v1944 = vsel %vm1921, %v1911, %v1356
      %v1945 = vsel %vm1921, %v1912, %v1358
      %v1946 = vsel %vm1921, %v1913, %v1360
      %v1947 = vsel %vm1921, %v1914, %v1362
      %v1948 = vsel %vm1921, %v1915, %v1364
      %v1949 = vsel %vm1921, %v1916, %v1366
      %v1950 = vsel %vm1921, %v1917, %v1368
      %v1951 = vsel %vm1921, %v1918, %v1370
      %v1952 = vsel %vm1921, %v1919, %v1372
      %v1953 = vsel %vm1921, %v1920, %v1374
      %vm1954 = vcmask 195584
      %v1955 = vsel %vm1954, %v1922, %v1440
      %v1956 = vsel %vm1954, %v1923, %v1442
      %v1957 = vsel %vm1954, %v1924, %v1444
      %v1958 = vsel %vm1954, %v1925, %v1446
      %v1959 = vsel %vm1954, %v1926, %v1448
      %v1960 = vsel %vm1954, %v1927, %v1450
      %v1961 = vsel %vm1954, %v1928, %v1452
      %v1962 = vsel %vm1954, %v1929, %v1454
      %v1963 = vsel %vm1954, %v1930, %v1456
      %v1964 = vsel %vm1954, %v1931, %v1458
      %v1965 = vsel %vm1954, %v1932, %v1460
      %v1966 = vsel %vm1954, %v1933, %v1462
      %v1967 = vsel %vm1954, %v1934, %v1464
      %v1968 = vsel %vm1954, %v1935, %v1466
      %v1969 = vsel %vm1954, %v1936, %v1468
      %v1970 = vsel %vm1954, %v1937, %v1470
      %v1971 = vsel %vm1954, %v1938, %v1472
      %v1972 = vsel %vm1954, %v1939, %v1474
      %v1973 = vsel %vm1954, %v1940, %v1476
      %v1974 = vsel %vm1954, %v1941, %v1478
      %v1975 = vsel %vm1954, %v1942, %v1480
      %v1976 = vsel %vm1954, %v1943, %v1482
      %v1977 = vsel %vm1954, %v1944, %v1484
      %v1978 = vsel %vm1954, %v1945, %v1486
      %v1979 = vsel %vm1954, %v1946, %v1488
      %v1980 = vsel %vm1954, %v1947, %v1490
      %v1981 = vsel %vm1954, %v1948, %v1492
      %v1982 = vsel %vm1954, %v1949, %v1494
      %v1983 = vsel %vm1954, %v1950, %v1496
      %v1984 = vsel %vm1954, %v1951, %v1498
      %v1985 = vsel %vm1954, %v1952, %v1500
      %v1986 = vsel %vm1954, %v1953, %v1502
      %vm1987 = vcmask 228352
      %v1988 = vsel %vm1987, %v1955, %v1568
      %v1989 = vsel %vm1987, %v1956, %v1570
      %v1990 = vsel %vm1987, %v1957, %v1572
      %v1991 = vsel %vm1987, %v1958, %v1574
      %v1992 = vsel %vm1987, %v1959, %v1576
      %v1993 = vsel %vm1987, %v1960, %v1578
      %v1994 = vsel %vm1987, %v1961, %v1580
      %v1995 = vsel %vm1987, %v1962, %v1582
      %v1996 = vsel %vm1987, %v1963, %v1584
      %v1997 = vsel %vm1987, %v1964, %v1586
      %v1998 = vsel %vm1987, %v1965, %v1588
      %v1999 = vsel %vm1987, %v1966, %v1590
      %v2000 = vsel %vm1987, %v1967, %v1592
      %v2001 = vsel %vm1987, %v1968, %v1594
      %v2002 = vsel %vm1987, %v1969, %v1596
      %v2003 = vsel %vm1987, %v1970, %v1598
      %v2004 = vsel %vm1987, %v1971, %v1600
      %v2005 = vsel %vm1987, %v1972, %v1602
      %v2006 = vsel %vm1987, %v1973, %v1604
      %v2007 = vsel %vm1987, %v1974, %v1606
      %v2008 = vsel %vm1987, %v1975, %v1608
      %v2009 = vsel %vm1987, %v1976, %v1610
      %v2010 = vsel %vm1987, %v1977, %v1612
      %v2011 = vsel %vm1987, %v1978, %v1614
      %v2012 = vsel %vm1987, %v1979, %v1616
      %v2013 = vsel %vm1987, %v1980, %v1618
      %v2014 = vsel %vm1987, %v1981, %v1620
      %v2015 = vsel %vm1987, %v1982, %v1622
      %v2016 = vsel %vm1987, %v1983, %v1624
      %v2017 = vsel %vm1987, %v1984, %v1626
      %v2018 = vsel %vm1987, %v1985, %v1628
      %v2019 = vsel %vm1987, %v1986, %v1630
      %vm2020 = vcmask 261120
      %v2021 = vsel %vm2020, %v1988, %v1696
      %v2022 = vsel %vm2020, %v1989, %v1698
      %v2023 = vsel %vm2020, %v1990, %v1700
      %v2024 = vsel %vm2020, %v1991, %v1702
      %v2025 = vsel %vm2020, %v1992, %v1704
      %v2026 = vsel %vm2020, %v1993, %v1706
      %v2027 = vsel %vm2020, %v1994, %v1708
      %v2028 = vsel %vm2020, %v1995, %v1710
      %v2029 = vsel %vm2020, %v1996, %v1712
      %v2030 = vsel %vm2020, %v1997, %v1714
      %v2031 = vsel %vm2020, %v1998, %v1716
      %v2032 = vsel %vm2020, %v1999, %v1718
      %v2033 = vsel %vm2020, %v2000, %v1720
      %v2034 = vsel %vm2020, %v2001, %v1722
      %v2035 = vsel %vm2020, %v2002, %v1724
      %v2036 = vsel %vm2020, %v2003, %v1726
      %v2037 = vsel %vm2020, %v2004, %v1728
      %v2038 = vsel %vm2020, %v2005, %v1730
      %v2039 = vsel %vm2020, %v2006, %v1732
      %v2040 = vsel %vm2020, %v2007, %v1734
      %v2041 = vsel %vm2020, %v2008, %v1736
      %v2042 = vsel %vm2020, %v2009, %v1738
      %v2043 = vsel %vm2020, %v2010, %v1740
      %v2044 = vsel %vm2020, %v2011, %v1742
      %v2045 = vsel %vm2020, %v2012, %v1744
      %v2046 = vsel %vm2020, %v2013, %v1746
      %v2047 = vsel %vm2020, %v2014, %v1748
      %v2048 = vsel %vm2020, %v2015, %v1750
      %v2049 = vsel %vm2020, %v2016, %v1752
      %v2050 = vsel %vm2020, %v2017, %v1754
      %v2051 = vsel %vm2020, %v2018, %v1756
      %v2052 = vsel %vm2020, %v2019, %v1758
      %v2053 = vld [vmem:[%s1] sm:$0xff]
      %v2054 = vld [vmem:[%s1 + $0x8] sm:$0xff]
      %v2055 = vld [vmem:[%s1 + $0x10] sm:$0xff]
      %v2056 = vld [vmem:[%s1 + $0x18] sm:$0xff]
      %v2057 = vld [vmem:[%s1 + $0x20] sm:$0xf]
      %vm2058 = vcmask 293888
      %v2060 = vsel %vm2058, %v2021, 0
      %v2063 = vsel %vm2058, %v2022, 0
      %v2066 = vsel %vm2058, %v2023, 0
      %v2069 = vsel %vm2058, %v2024, 0
      %v2072 = vsel %vm2058, %v2025, 0
      %v2075 = vsel %vm2058, %v2026, 0
      %v2078 = vsel %vm2058, %v2027, 0
      %v2081 = vsel %vm2058, %v2028, 0
      %v2084 = vsel %vm2058, %v2029, 0
      %v2087 = vsel %vm2058, %v2030, 0
      %v2090 = vsel %vm2058, %v2031, 0
      %v2093 = vsel %vm2058, %v2032, 0
      %v2096 = vsel %vm2058, %v2033, 0
      %v2099 = vsel %vm2058, %v2034, 0
      %v2102 = vsel %vm2058, %v2035, 0
      %v2105 = vsel %vm2058, %v2036, 0
      %v2108 = vsel %vm2058, %v2037, 0
      %v2111 = vsel %vm2058, %v2038, 0
      %v2114 = vsel %vm2058, %v2039, 0
      %v2117 = vsel %vm2058, %v2040, 0
      %v2120 = vsel %vm2058, %v2041, 0
      %v2123 = vsel %vm2058, %v2042, 0
      %v2126 = vsel %vm2058, %v2043, 0
      %v2129 = vsel %vm2058, %v2044, 0
      %v2132 = vsel %vm2058, %v2045, 0
      %v2135 = vsel %vm2058, %v2046, 0
      %v2138 = vsel %vm2058, %v2047, 0
      %v2141 = vsel %vm2058, %v2048, 0
      %v2144 = vsel %vm2058, %v2049, 0
      %v2147 = vsel %vm2058, %v2050, 0
      %v2150 = vsel %vm2058, %v2051, 0
      %v2153 = vsel %vm2058, %v2052, 0
      %vm2155 = vcmask 1043456
      %v2157 = vsel %vm2155, %v2057, 0
      %2159 = vmatprep.subr.mxu0 0.0
      %2160 = vmatpush1.msra.mxu0 0.0
      %2161 = vmatprep.subr.mxu0 0.0
      %2162 = vmatpush1.msra.mxu0 0.0
      %2163 = vmatprep.subr.mxu0 0.0
      %2164 = vmatpush1.msra.mxu0 0.0
      %2165 = vmatprep.subr.mxu0 0.0
      %2166 = vmatpush1.msra.mxu0 0.0
      %2167 = vmatprep.subr.mxu0 0.0
      %2168 = vmatpush1.msra.mxu0 0.0
      %2169 = vmatprep.subr.mxu0 0.0
      %2170 = vmatpush1.msra.mxu0 0.0
      %2171 = vmatprep.subr.mxu0 0.0
      %2172 = vmatpush1.msra.mxu0 0.0
      %2173 = vmatprep.subr.mxu0 0.0
      %2174 = vmatpush1.msra.mxu0 0.0
      %2175 = vmatprep.subr.mxu0 0.0
      %2176 = vmatpush1.msra.mxu0 0.0
      %2177 = vmatprep.subr.mxu0 0.0
      %2178 = vmatpush1.msra.mxu0 0.0
      %2179 = vmatprep.subr.mxu0 0.0
      %2180 = vmatpush1.msra.mxu0 0.0
      %2181 = vmatprep.subr.mxu0 0.0
      %2182 = vmatpush1.msra.mxu0 %v2157
      %2183 = vmatprep.subr.mxu0 0.0
      %2184 = vmatpush1.msra.mxu0 %v2056
      %2185 = vmatprep.subr.mxu0 0.0
      %2186 = vmatpush1.msra.mxu0 %v2055
      %2187 = vmatprep.subr.mxu0 0.0
      %2188 = vmatpush1.msra.mxu0 %v2054
      %2189 = vmatprep.subr.mxu0 0.0
      %2190 = vmatpush1.msra.mxu0 %v2053
      %2191 = vmatprep.subr.mxu0 0.0
      %2192 = vmatpush2.msra.mxu0 0.0
      %2193 = vmatprep.subr.mxu0 0.0
      %2194 = vmatpush2.msra.mxu0 0.0
      %2195 = vmatprep.subr.mxu0 0.0
      %2196 = vmatpush2.msra.mxu0 0.0
      %2197 = vmatprep.subr.mxu0 0.0
      %2198 = vmatpush2.msra.mxu0 0.0
      %2199 = vmatprep.subr.mxu0 0.0
      %2200 = vmatpush2.msra.mxu0 0.0
      %2201 = vmatprep.subr.mxu0 0.0
      %2202 = vmatpush2.msra.mxu0 0.0
      %2203 = vmatprep.subr.mxu0 0.0
      %2204 = vmatpush2.msra.mxu0 0.0
      %2205 = vmatprep.subr.mxu0 0.0
      %2206 = vmatpush2.msra.mxu0 0.0
      %2207 = vmatprep.subr.mxu0 0.0
      %2208 = vmatpush2.msra.mxu0 0.0
      %2209 = vmatprep.subr.mxu0 0.0
      %2210 = vmatpush2.msra.mxu0 0.0
      %2211 = vmatprep.subr.mxu0 0.0
      %2212 = vmatpush2.msra.mxu0 0.0
      %2213 = vmatprep.subr.mxu0 0.0
      %2214 = vmatpush2.msra.mxu0 0.0
      %2215 = vmatprep.subr.mxu0 0.0
      %2216 = vmatpush2.msra.mxu0 0.0
      %2217 = vmatprep.subr.mxu0 0.0
      %2218 = vmatpush2.msra.mxu0 0.0
      %2219 = vmatprep.subr.mxu0 0.0
      %2220 = vmatpush2.msra.mxu0 0.0
      %2221 = vmatprep.subr.mxu0 0.0
      %2222 = vmatpush2.msra.mxu0 0.0
      %2223 = vmatprep.mubr.f32.mxu0 0.0
      %2224 = vmatmul.mubr.f32.gmra.mxu0 %v2060
      %v2225 = vpop.f32.mrf.mxu0
      %v2226 = vadd.f32 0.0, %v2225
      %v2227 = vpop.f32.mrf.mxu0
      %2228 = vmatprep.mubr.f32.mxu0 0.0
      %2229 = vmatmul.mubr.f32.gmra.mxu0 %v2063
      %v2230 = vpop.f32.mrf.mxu0
      %v2231 = vadd.f32 0.0, %v2230
      %v2232 = vpop.f32.mrf.mxu0
      %2233 = vmatprep.mubr.f32.mxu0 0.0
      %2234 = vmatmul.mubr.f32.gmra.mxu0 %v2066
      %v2235 = vpop.f32.mrf.mxu0
      %v2236 = vadd.f32 0.0, %v2235
      %v2237 = vpop.f32.mrf.mxu0
      %2238 = vmatprep.mubr.f32.mxu0 0.0
      %2239 = vmatmul.mubr.f32.gmra.mxu0 %v2069
      %v2240 = vpop.f32.mrf.mxu0
      %v2241 = vadd.f32 0.0, %v2240
      %v2242 = vpop.f32.mrf.mxu0
      %2243 = vmatprep.mubr.f32.mxu0 0.0
      %2244 = vmatmul.mubr.f32.gmra.mxu0 %v2072
      %v2245 = vpop.f32.mrf.mxu0
      %v2246 = vadd.f32 0.0, %v2245
      %v2247 = vpop.f32.mrf.mxu0
      %2248 = vmatprep.mubr.f32.mxu0 0.0
      %2249 = vmatmul.mubr.f32.gmra.mxu0 %v2075
      %v2250 = vpop.f32.mrf.mxu0
      %v2251 = vadd.f32 0.0, %v2250
      %v2252 = vpop.f32.mrf.mxu0
      %2253 = vmatprep.mubr.f32.mxu0 0.0
      %2254 = vmatmul.mubr.f32.gmra.mxu0 %v2078
      %v2255 = vpop.f32.mrf.mxu0
      %v2256 = vadd.f32 0.0, %v2255
      %v2257 = vpop.f32.mrf.mxu0
      %2258 = vmatprep.mubr.f32.mxu0 0.0
      %2259 = vmatmul.mubr.f32.gmra.mxu0 %v2081
      %v2260 = vpop.f32.mrf.mxu0
      %v2261 = vadd.f32 0.0, %v2260
      %v2262 = vpop.f32.mrf.mxu0
      %2263 = vmatprep.mubr.f32.mxu0 0.0
      %2264 = vmatmul.mubr.f32.gmra.mxu0 %v2084
      %v2265 = vpop.f32.mrf.mxu0
      %v2266 = vadd.f32 0.0, %v2265
      %v2267 = vpop.f32.mrf.mxu0
      %2268 = vmatprep.mubr.f32.mxu0 0.0
      %2269 = vmatmul.mubr.f32.gmra.mxu0 %v2087
      %v2270 = vpop.f32.mrf.mxu0
      %v2271 = vadd.f32 0.0, %v2270
      %v2272 = vpop.f32.mrf.mxu0
      %2273 = vmatprep.mubr.f32.mxu0 0.0
      %2274 = vmatmul.mubr.f32.gmra.mxu0 %v2090
      %v2275 = vpop.f32.mrf.mxu0
      %v2276 = vadd.f32 0.0, %v2275
      %v2277 = vpop.f32.mrf.mxu0
      %2278 = vmatprep.mubr.f32.mxu0 0.0
      %2279 = vmatmul.mubr.f32.gmra.mxu0 %v2093
      %v2280 = vpop.f32.mrf.mxu0
      %v2281 = vadd.f32 0.0, %v2280
      %v2282 = vpop.f32.mrf.mxu0
      %2283 = vmatprep.mubr.f32.mxu0 0.0
      %2284 = vmatmul.mubr.f32.gmra.mxu0 %v2096
      %v2285 = vpop.f32.mrf.mxu0
      %v2286 = vadd.f32 0.0, %v2285
      %v2287 = vpop.f32.mrf.mxu0
      %2288 = vmatprep.mubr.f32.mxu0 0.0
      %2289 = vmatmul.mubr.f32.gmra.mxu0 %v2099
      %v2290 = vpop.f32.mrf.mxu0
      %v2291 = vadd.f32 0.0, %v2290
      %v2292 = vpop.f32.mrf.mxu0
      %2293 = vmatprep.mubr.f32.mxu0 0.0
      %2294 = vmatmul.mubr.f32.gmra.mxu0 %v2102
      %v2295 = vpop.f32.mrf.mxu0
      %v2296 = vadd.f32 0.0, %v2295
      %v2297 = vpop.f32.mrf.mxu0
      %2298 = vmatprep.mubr.f32.mxu0 0.0
      %2299 = vmatmul.mubr.f32.gmra.mxu0 %v2105
      %v2300 = vpop.f32.mrf.mxu0
      %v2301 = vadd.f32 0.0, %v2300
      %v2302 = vpop.f32.mrf.mxu0
      %2303 = vmatprep.mubr.f32.mxu0 0.0
      %2304 = vmatmul.mubr.f32.gmra.mxu0 %v2108
      %v2305 = vpop.f32.mrf.mxu0
      %v2306 = vadd.f32 0.0, %v2305
      %v2307 = vpop.f32.mrf.mxu0
      %2308 = vmatprep.mubr.f32.mxu0 0.0
      %2309 = vmatmul.mubr.f32.gmra.mxu0 %v2111
      %v2310 = vpop.f32.mrf.mxu0
      %v2311 = vadd.f32 0.0, %v2310
      %v2312 = vpop.f32.mrf.mxu0
      %2313 = vmatprep.mubr.f32.mxu0 0.0
      %2314 = vmatmul.mubr.f32.gmra.mxu0 %v2114
      %v2315 = vpop.f32.mrf.mxu0
      %v2316 = vadd.f32 0.0, %v2315
      %v2317 = vpop.f32.mrf.mxu0
      %2318 = vmatprep.mubr.f32.mxu0 0.0
      %2319 = vmatmul.mubr.f32.gmra.mxu0 %v2117
      %v2320 = vpop.f32.mrf.mxu0
      %v2321 = vadd.f32 0.0, %v2320
      %v2322 = vpop.f32.mrf.mxu0
      %2323 = vmatprep.mubr.f32.mxu0 0.0
      %2324 = vmatmul.mubr.f32.gmra.mxu0 %v2120
      %v2325 = vpop.f32.mrf.mxu0
      %v2326 = vadd.f32 0.0, %v2325
      %v2327 = vpop.f32.mrf.mxu0
      %2328 = vmatprep.mubr.f32.mxu0 0.0
      %2329 = vmatmul.mubr.f32.gmra.mxu0 %v2123
      %v2330 = vpop.f32.mrf.mxu0
      %v2331 = vadd.f32 0.0, %v2330
      %v2332 = vpop.f32.mrf.mxu0
      %2333 = vmatprep.mubr.f32.mxu0 0.0
      %2334 = vmatmul.mubr.f32.gmra.mxu0 %v2126
      %v2335 = vpop.f32.mrf.mxu0
      %v2336 = vadd.f32 0.0, %v2335
      %v2337 = vpop.f32.mrf.mxu0
      %2338 = vmatprep.mubr.f32.mxu0 0.0
      %2339 = vmatmul.mubr.f32.gmra.mxu0 %v2129
      %v2340 = vpop.f32.mrf.mxu0
      %v2341 = vadd.f32 0.0, %v2340
      %v2342 = vpop.f32.mrf.mxu0
      %2343 = vmatprep.mubr.f32.mxu0 0.0
      %2344 = vmatmul.mubr.f32.gmra.mxu0 %v2132
      %v2345 = vpop.f32.mrf.mxu0
      %v2346 = vadd.f32 0.0, %v2345
      %v2347 = vpop.f32.mrf.mxu0
      %2348 = vmatprep.mubr.f32.mxu0 0.0
      %2349 = vmatmul.mubr.f32.gmra.mxu0 %v2135
      %v2350 = vpop.f32.mrf.mxu0
      %v2351 = vadd.f32 0.0, %v2350
      %v2352 = vpop.f32.mrf.mxu0
      %2353 = vmatprep.mubr.f32.mxu0 0.0
      %2354 = vmatmul.mubr.f32.gmra.mxu0 %v2138
      %v2355 = vpop.f32.mrf.mxu0
      %v2356 = vadd.f32 0.0, %v2355
      %v2357 = vpop.f32.mrf.mxu0
      %2358 = vmatprep.mubr.f32.mxu0 0.0
      %2359 = vmatmul.mubr.f32.gmra.mxu0 %v2141
      %v2360 = vpop.f32.mrf.mxu0
      %v2361 = vadd.f32 0.0, %v2360
      %v2362 = vpop.f32.mrf.mxu0
      %2363 = vmatprep.mubr.f32.mxu0 0.0
      %2364 = vmatmul.mubr.f32.gmra.mxu0 %v2144
      %v2365 = vpop.f32.mrf.mxu0
      %v2366 = vadd.f32 0.0, %v2365
      %v2367 = vpop.f32.mrf.mxu0
      %2368 = vmatprep.mubr.f32.mxu0 0.0
      %2369 = vmatmul.mubr.f32.gmra.mxu0 %v2147
      %v2370 = vpop.f32.mrf.mxu0
      %v2371 = vadd.f32 0.0, %v2370
      %v2372 = vpop.f32.mrf.mxu0
      %2373 = vmatprep.mubr.f32.mxu0 0.0
      %2374 = vmatmul.mubr.f32.gmra.mxu0 %v2150
      %v2375 = vpop.f32.mrf.mxu0
      %v2376 = vadd.f32 0.0, %v2375
      %v2377 = vpop.f32.mrf.mxu0
      %2378 = vmatprep.mubr.f32.mxu0 0.0
      %2379 = vmatmul.mubr.f32.gmra.mxu0 %v2153
      %v2380 = vpop.f32.mrf.mxu0
      %v2381 = vadd.f32 0.0, %v2380
      %v2382 = vpop.f32.mrf.mxu0
      %2383 = vdwg.mxu0
      %v2384 = vld [vmem:[%s3] sm:$0x1]
      %v2385 = vlaneseq
      %v2386 = vshrl.u32 %v2385, 7
      %v2387 = vsub.s32 0, %v2386
      %v2388 = vrot.slane %v2384, %v2387
      %v2389 = vmul.f32 %v2226, %v2388
      %v2390 = vmul.f32 %v2231, %v2388
      %v2391 = vmul.f32 %v2236, %v2388
      %v2392 = vmul.f32 %v2241, %v2388
      %v2393 = vmul.f32 %v2246, %v2388
      %v2394 = vmul.f32 %v2251, %v2388
      %v2395 = vmul.f32 %v2256, %v2388
      %v2396 = vmul.f32 %v2261, %v2388
      %v2397 = vmul.f32 %v2266, %v2388
      %v2398 = vmul.f32 %v2271, %v2388
      %v2399 = vmul.f32 %v2276, %v2388
      %v2400 = vmul.f32 %v2281, %v2388
      %v2401 = vmul.f32 %v2286, %v2388
      %v2402 = vmul.f32 %v2291, %v2388
      %v2403 = vmul.f32 %v2296, %v2388
      %v2404 = vmul.f32 %v2301, %v2388
      %v2405 = vmul.f32 %v2306, %v2388
      %v2406 = vmul.f32 %v2311, %v2388
      %v2407 = vmul.f32 %v2316, %v2388
      %v2408 = vmul.f32 %v2321, %v2388
      %v2409 = vmul.f32 %v2326, %v2388
      %v2410 = vmul.f32 %v2331, %v2388
      %v2411 = vmul.f32 %v2336, %v2388
      %v2412 = vmul.f32 %v2341, %v2388
      %v2413 = vmul.f32 %v2346, %v2388
      %v2414 = vmul.f32 %v2351, %v2388
      %v2415 = vmul.f32 %v2356, %v2388
      %v2416 = vmul.f32 %v2361, %v2388
      %v2417 = vmul.f32 %v2366, %v2388
      %v2418 = vmul.f32 %v2371, %v2388
      %v2419 = vmul.f32 %v2376, %v2388
      %v2420 = vmul.f32 %v2381, %v2388
      %v2421 = vld [vmem:[%s3 + $0x1] sm:$0x1]
      %v2422 = vlaneseq
      %v2423 = vshrl.u32 %v2422, 7
      %v2424 = vsub.s32 0, %v2423
      %v2425 = vrot.slane %v2421, %v2424
      %v2426 = vadd.f32 %v2389, %v2425
      %v2427 = vadd.f32 %v2390, %v2425
      %v2428 = vadd.f32 %v2391, %v2425
      %v2429 = vadd.f32 %v2392, %v2425
      %v2430 = vadd.f32 %v2393, %v2425
      %v2431 = vadd.f32 %v2394, %v2425
      %v2432 = vadd.f32 %v2395, %v2425
      %v2433 = vadd.f32 %v2396, %v2425
      %v2434 = vadd.f32 %v2397, %v2425
      %v2435 = vadd.f32 %v2398, %v2425
      %v2436 = vadd.f32 %v2399, %v2425
      %v2437 = vadd.f32 %v2400, %v2425
      %v2438 = vadd.f32 %v2401, %v2425
      %v2439 = vadd.f32 %v2402, %v2425
      %v2440 = vadd.f32 %v2403, %v2425
      %v2441 = vadd.f32 %v2404, %v2425
      %v2442 = vadd.f32 %v2405, %v2425
      %v2443 = vadd.f32 %v2406, %v2425
      %v2444 = vadd.f32 %v2407, %v2425
      %v2445 = vadd.f32 %v2408, %v2425
      %v2446 = vadd.f32 %v2409, %v2425
      %v2447 = vadd.f32 %v2410, %v2425
      %v2448 = vadd.f32 %v2411, %v2425
      %v2449 = vadd.f32 %v2412, %v2425
      %v2450 = vadd.f32 %v2413, %v2425
      %v2451 = vadd.f32 %v2414, %v2425
      %v2452 = vadd.f32 %v2415, %v2425
      %v2453 = vadd.f32 %v2416, %v2425
      %v2454 = vadd.f32 %v2417, %v2425
      %v2455 = vadd.f32 %v2418, %v2425
      %v2456 = vadd.f32 %v2419, %v2425
      %v2457 = vadd.f32 %v2420, %v2425
      %v2458 = vmax.f32 %v2426, 0.0
      %v2459 = vmax.f32 %v2427, 0.0
      %v2460 = vmax.f32 %v2428, 0.0
      %v2461 = vmax.f32 %v2429, 0.0
      %v2462 = vmax.f32 %v2430, 0.0
      %v2463 = vmax.f32 %v2431, 0.0
      %v2464 = vmax.f32 %v2432, 0.0
      %v2465 = vmax.f32 %v2433, 0.0
      %v2466 = vmax.f32 %v2434, 0.0
      %v2467 = vmax.f32 %v2435, 0.0
      %v2468 = vmax.f32 %v2436, 0.0
      %v2469 = vmax.f32 %v2437, 0.0
      %v2470 = vmax.f32 %v2438, 0.0
      %v2471 = vmax.f32 %v2439, 0.0
      %v2472 = vmax.f32 %v2440, 0.0
      %v2473 = vmax.f32 %v2441, 0.0
      %v2474 = vmax.f32 %v2442, 0.0
      %v2475 = vmax.f32 %v2443, 0.0
      %v2476 = vmax.f32 %v2444, 0.0
      %v2477 = vmax.f32 %v2445, 0.0
      %v2478 = vmax.f32 %v2446, 0.0
      %v2479 = vmax.f32 %v2447, 0.0
      %v2480 = vmax.f32 %v2448, 0.0
      %v2481 = vmax.f32 %v2449, 0.0
      %v2482 = vmax.f32 %v2450, 0.0
      %v2483 = vmax.f32 %v2451, 0.0
      %v2484 = vmax.f32 %v2452, 0.0
      %v2485 = vmax.f32 %v2453, 0.0
      %v2486 = vmax.f32 %v2454, 0.0
      %v2487 = vmax.f32 %v2455, 0.0
      %v2488 = vmax.f32 %v2456, 0.0
      %v2489 = vmax.f32 %v2457, 0.0
      %2490 = vst.msk [vmem:[#allocation4] sm:$0xff] %vm311, %v2458
      %2491 = vst.msk [vmem:[#allocation4 + $0x8] sm:$0xff] %vm311, %v2459
      %2492 = vst.msk [vmem:[#allocation4 + $0x10] sm:$0xff] %vm311, %v2460
      %2493 = vst.msk [vmem:[#allocation4 + $0x18] sm:$0xff] %vm311, %v2461
      %2494 = vst.msk [vmem:[#allocation4 + $0x20] sm:$0xff] %vm311, %v2462
      %2495 = vst.msk [vmem:[#allocation4 + $0x28] sm:$0xff] %vm311, %v2463
      %2496 = vst.msk [vmem:[#allocation4 + $0x30] sm:$0xff] %vm311, %v2464
      %2497 = vst.msk [vmem:[#allocation4 + $0x38] sm:$0xff] %vm311, %v2465
      %2498 = vst.msk [vmem:[#allocation4 + $0x40] sm:$0xff] %vm311, %v2466
      %2499 = vst.msk [vmem:[#allocation4 + $0x48] sm:$0xff] %vm311, %v2467
      %2500 = vst.msk [vmem:[#allocation4 + $0x50] sm:$0xff] %vm311, %v2468
      %2501 = vst.msk [vmem:[#allocation4 + $0x58] sm:$0xff] %vm311, %v2469
      %2502 = vst.msk [vmem:[#allocation4 + $0x60] sm:$0xff] %vm311, %v2470
      %2503 = vst.msk [vmem:[#allocation4 + $0x68] sm:$0xff] %vm311, %v2471
      %2504 = vst.msk [vmem:[#allocation4 + $0x70] sm:$0xff] %vm311, %v2472
      %2505 = vst.msk [vmem:[#allocation4 + $0x78] sm:$0xff] %vm311, %v2473
      %2506 = vst.msk [vmem:[#allocation4 + $0x80] sm:$0xff] %vm311, %v2474
      %2507 = vst.msk [vmem:[#allocation4 + $0x88] sm:$0xff] %vm311, %v2475
      %2508 = vst.msk [vmem:[#allocation4 + $0x90] sm:$0xff] %vm311, %v2476
      %2509 = vst.msk [vmem:[#allocation4 + $0x98] sm:$0xff] %vm311, %v2477
      %2510 = vst.msk [vmem:[#allocation4 + $0xa0] sm:$0xff] %vm311, %v2478
      %2511 = vst.msk [vmem:[#allocation4 + $0xa8] sm:$0xff] %vm311, %v2479
      %2512 = vst.msk [vmem:[#allocation4 + $0xb0] sm:$0xff] %vm311, %v2480
      %2513 = vst.msk [vmem:[#allocation4 + $0xb8] sm:$0xff] %vm311, %v2481
      %2514 = vst.msk [vmem:[#allocation4 + $0xc0] sm:$0xff] %vm311, %v2482
      %2515 = vst.msk [vmem:[#allocation4 + $0xc8] sm:$0xff] %vm311, %v2483
      %2516 = vst.msk [vmem:[#allocation4 + $0xd0] sm:$0xff] %vm311, %v2484
      %2517 = vst.msk [vmem:[#allocation4 + $0xd8] sm:$0xff] %vm311, %v2485
      %2518 = vst.msk [vmem:[#allocation4 + $0xe0] sm:$0xff] %vm311, %v2486
      %2519 = vst.msk [vmem:[#allocation4 + $0xe8] sm:$0xff] %vm311, %v2487
      %2520 = vst.msk [vmem:[#allocation4 + $0xf0] sm:$0xff] %vm311, %v2488
      %2521 = vst.msk [vmem:[#allocation4 + $0xf8] sm:$0xff] %vm311, %v2489
      %v2522 = vld [vmem:[#allocation4] sm:$0xff]
      %v2523 = vld [vmem:[#allocation4 + $0x8] sm:$0xff]
      %s2524 = scalar_lea.vmem [#allocation3], 32
      %2525 = vst.msk [vmem:[%s2524 + $0x8] sm:$0xff] %vm311, %v2522
      %2526 = vst.msk [vmem:[%s2524 + $0x10] sm:$0xff] %vm311, %v2523
      %v2527 = vld [vmem:[#allocation4 + $0x10] sm:$0xff]
      %v2528 = vld [vmem:[#allocation4 + $0x18] sm:$0xff]
      %s2529 = scalar_lea.vmem [#allocation3], 64
      %2530 = vst.msk [vmem:[%s2529 + $0x8] sm:$0xff] %vm311, %v2527
      %2531 = vst.msk [vmem:[%s2529 + $0x10] sm:$0xff] %vm311, %v2528
      %v2532 = vld [vmem:[#allocation4 + $0x20] sm:$0xff]
      %v2533 = vld [vmem:[#allocation4 + $0x28] sm:$0xff]
      %s2534 = scalar_lea.vmem [#allocation3], 96
      %2535 = vst.msk [vmem:[%s2534 + $0x8] sm:$0xff] %vm311, %v2532
      %2536 = vst.msk [vmem:[%s2534 + $0x10] sm:$0xff] %vm311, %v2533
      %v2537 = vld [vmem:[#allocation4 + $0x30] sm:$0xff]
      %v2538 = vld [vmem:[#allocation4 + $0x38] sm:$0xff]
      %s2539 = scalar_lea.vmem [#allocation3], 128
      %2540 = vst.msk [vmem:[%s2539 + $0x8] sm:$0xff] %vm311, %v2537
      %2541 = vst.msk [vmem:[%s2539 + $0x10] sm:$0xff] %vm311, %v2538
      %v2542 = vld [vmem:[#allocation4 + $0x40] sm:$0xff]
      %v2543 = vld [vmem:[#allocation4 + $0x48] sm:$0xff]
      %s2544 = scalar_lea.vmem [#allocation3], 160
      %2545 = vst.msk [vmem:[%s2544 + $0x8] sm:$0xff] %vm311, %v2542
      %2546 = vst.msk [vmem:[%s2544 + $0x10] sm:$0xff] %vm311, %v2543
      %v2547 = vld [vmem:[#allocation4 + $0x50] sm:$0xff]
      %v2548 = vld [vmem:[#allocation4 + $0x58] sm:$0xff]
      %s2549 = scalar_lea.vmem [#allocation3], 192
      %2550 = vst.msk [vmem:[%s2549 + $0x8] sm:$0xff] %vm311, %v2547
      %2551 = vst.msk [vmem:[%s2549 + $0x10] sm:$0xff] %vm311, %v2548
      %v2552 = vld [vmem:[#allocation4 + $0x60] sm:$0xff]
      %v2553 = vld [vmem:[#allocation4 + $0x68] sm:$0xff]
      %s2554 = scalar_lea.vmem [#allocation3], 224
      %2555 = vst.msk [vmem:[%s2554 + $0x8] sm:$0xff] %vm311, %v2552
      %2556 = vst.msk [vmem:[%s2554 + $0x10] sm:$0xff] %vm311, %v2553
      %v2557 = vld [vmem:[#allocation4 + $0x70] sm:$0xff]
      %v2558 = vld [vmem:[#allocation4 + $0x78] sm:$0xff]
      %s2559 = scalar_lea.vmem [#allocation3], 256
      %2560 = vst.msk [vmem:[%s2559 + $0x8] sm:$0xff] %vm311, %v2557
      %2561 = vst.msk [vmem:[%s2559 + $0x10] sm:$0xff] %vm311, %v2558
      %v2562 = vld [vmem:[#allocation4 + $0x80] sm:$0xff]
      %v2563 = vld [vmem:[#allocation4 + $0x88] sm:$0xff]
      %s2564 = scalar_lea.vmem [#allocation3], 288
      %2565 = vst.msk [vmem:[%s2564 + $0x8] sm:$0xff] %vm311, %v2562
      %2566 = vst.msk [vmem:[%s2564 + $0x10] sm:$0xff] %vm311, %v2563
      %v2567 = vld [vmem:[#allocation4 + $0x90] sm:$0xff]
      %v2568 = vld [vmem:[#allocation4 + $0x98] sm:$0xff]
      %s2569 = scalar_lea.vmem [#allocation3], 320
      %2570 = vst.msk [vmem:[%s2569 + $0x8] sm:$0xff] %vm311, %v2567
      %2571 = vst.msk [vmem:[%s2569 + $0x10] sm:$0xff] %vm311, %v2568
      %v2572 = vld [vmem:[#allocation4 + $0xa0] sm:$0xff]
      %v2573 = vld [vmem:[#allocation4 + $0xa8] sm:$0xff]
      %s2574 = scalar_lea.vmem [#allocation3], 352
      %2575 = vst.msk [vmem:[%s2574 + $0x8] sm:$0xff] %vm311, %v2572
      %2576 = vst.msk [vmem:[%s2574 + $0x10] sm:$0xff] %vm311, %v2573
      %v2577 = vld [vmem:[#allocation4 + $0xb0] sm:$0xff]
      %v2578 = vld [vmem:[#allocation4 + $0xb8] sm:$0xff]
      %s2579 = scalar_lea.vmem [#allocation3], 384
      %2580 = vst.msk [vmem:[%s2579 + $0x8] sm:$0xff] %vm311, %v2577
      %2581 = vst.msk [vmem:[%s2579 + $0x10] sm:$0xff] %vm311, %v2578
      %v2582 = vld [vmem:[#allocation4 + $0xc0] sm:$0xff]
      %v2583 = vld [vmem:[#allocation4 + $0xc8] sm:$0xff]
      %s2584 = scalar_lea.vmem [#allocation3], 416
      %2585 = vst.msk [vmem:[%s2584 + $0x8] sm:$0xff] %vm311, %v2582
      %2586 = vst.msk [vmem:[%s2584 + $0x10] sm:$0xff] %vm311, %v2583
      %v2587 = vld [vmem:[#allocation4 + $0xd0] sm:$0xff]
      %v2588 = vld [vmem:[#allocation4 + $0xd8] sm:$0xff]
      %s2589 = scalar_lea.vmem [#allocation3], 448
      %2590 = vst.msk [vmem:[%s2589 + $0x8] sm:$0xff] %vm311, %v2587
      %2591 = vst.msk [vmem:[%s2589 + $0x10] sm:$0xff] %vm311, %v2588
      %v2592 = vld [vmem:[#allocation4 + $0xe0] sm:$0xff]
      %v2593 = vld [vmem:[#allocation4 + $0xe8] sm:$0xff]
      %s2594 = scalar_lea.vmem [#allocation3], 480
      %2595 = vst.msk [vmem:[%s2594 + $0x8] sm:$0xff] %vm311, %v2592
      %2596 = vst.msk [vmem:[%s2594 + $0x10] sm:$0xff] %vm311, %v2593
      %v2597 = vld [vmem:[#allocation4 + $0xf0] sm:$0xff]
      %v2598 = vld [vmem:[#allocation4 + $0xf8] sm:$0xff]
      %s2599 = scalar_lea.vmem [#allocation3], 512
      %2600 = vst.msk [vmem:[%s2599 + $0x8] sm:$0xff] %vm311, %v2597
      %2601 = vst.msk [vmem:[%s2599 + $0x10] sm:$0xff] %vm311, %v2598
      %v2602 = vld [vmem:[#allocation3 + $0x7] sm:$0xff]
      %v2603 = vld [vmem:[#allocation3 + $0xf] sm:$0xff]
      %v2604 = vld [vmem:[#allocation3 + $0x27] sm:$0xff]
      %v2605 = vld [vmem:[#allocation3 + $0x2f] sm:$0xff]
      %v2606 = vld [vmem:[#allocation3 + $0x47] sm:$0xff]
      %v2607 = vld [vmem:[#allocation3 + $0x4f] sm:$0xff]
      %v2608 = vld [vmem:[#allocation3 + $0x67] sm:$0xff]
      %v2609 = vld [vmem:[#allocation3 + $0x6f] sm:$0xff]
      %v2610 = vld [vmem:[#allocation3 + $0x87] sm:$0xff]
      %v2611 = vld [vmem:[#allocation3 + $0x8f] sm:$0xff]
      %v2612 = vld [vmem:[#allocation3 + $0xa7] sm:$0xff]
      %v2613 = vld [vmem:[#allocation3 + $0xaf] sm:$0xff]
      %v2614 = vld [vmem:[#allocation3 + $0xc7] sm:$0xff]
      %v2615 = vld [vmem:[#allocation3 + $0xcf] sm:$0xff]
      %v2616 = vld [vmem:[#allocation3 + $0xe7] sm:$0xff]
      %v2617 = vld [vmem:[#allocation3 + $0xef] sm:$0xff]
      %v2618 = vld [vmem:[#allocation3 + $0x107] sm:$0xff]
      %v2619 = vld [vmem:[#allocation3 + $0x10f] sm:$0xff]
      %v2620 = vld [vmem:[#allocation3 + $0x127] sm:$0xff]
      %v2621 = vld [vmem:[#allocation3 + $0x12f] sm:$0xff]
      %v2622 = vld [vmem:[#allocation3 + $0x147] sm:$0xff]
      %v2623 = vld [vmem:[#allocation3 + $0x14f] sm:$0xff]
      %v2624 = vld [vmem:[#allocation3 + $0x167] sm:$0xff]
      %v2625 = vld [vmem:[#allocation3 + $0x16f] sm:$0xff]
      %v2626 = vld [vmem:[#allocation3 + $0x187] sm:$0xff]
      %v2627 = vld [vmem:[#allocation3 + $0x18f] sm:$0xff]
      %v2628 = vld [vmem:[#allocation3 + $0x1a7] sm:$0xff]
      %v2629 = vld [vmem:[#allocation3 + $0x1af] sm:$0xff]
      %v2630 = vld [vmem:[#allocation3 + $0x1c7] sm:$0xff]
      %v2631 = vld [vmem:[#allocation3 + $0x1cf] sm:$0xff]
      %v2632 = vld [vmem:[#allocation3 + $0x1e7] sm:$0xff]
      %v2633 = vld [vmem:[#allocation3 + $0x1ef] sm:$0xff]
      %v2634 = vld [vmem:[#allocation3 + $0x8] sm:$0xff]
      %v2635 = vld [vmem:[#allocation3 + $0x10] sm:$0xff]
      %v2636 = vld [vmem:[#allocation3 + $0x28] sm:$0xff]
      %v2637 = vld [vmem:[#allocation3 + $0x30] sm:$0xff]
      %v2638 = vld [vmem:[#allocation3 + $0x48] sm:$0xff]
      %v2639 = vld [vmem:[#allocation3 + $0x50] sm:$0xff]
      %v2640 = vld [vmem:[#allocation3 + $0x68] sm:$0xff]
      %v2641 = vld [vmem:[#allocation3 + $0x70] sm:$0xff]
      %v2642 = vld [vmem:[#allocation3 + $0x88] sm:$0xff]
      %v2643 = vld [vmem:[#allocation3 + $0x90] sm:$0xff]
      %v2644 = vld [vmem:[#allocation3 + $0xa8] sm:$0xff]
      %v2645 = vld [vmem:[#allocation3 + $0xb0] sm:$0xff]
      %v2646 = vld [vmem:[#allocation3 + $0xc8] sm:$0xff]
      %v2647 = vld [vmem:[#allocation3 + $0xd0] sm:$0xff]
      %v2648 = vld [vmem:[#allocation3 + $0xe8] sm:$0xff]
      %v2649 = vld [vmem:[#allocation3 + $0xf0] sm:$0xff]
      %v2650 = vld [vmem:[#allocation3 + $0x108] sm:$0xff]
      %v2651 = vld [vmem:[#allocation3 + $0x110] sm:$0xff]
      %v2652 = vld [vmem:[#allocation3 + $0x128] sm:$0xff]
      %v2653 = vld [vmem:[#allocation3 + $0x130] sm:$0xff]
      %v2654 = vld [vmem:[#allocation3 + $0x148] sm:$0xff]
      %v2655 = vld [vmem:[#allocation3 + $0x150] sm:$0xff]
      %v2656 = vld [vmem:[#allocation3 + $0x168] sm:$0xff]
      %v2657 = vld [vmem:[#allocation3 + $0x170] sm:$0xff]
      %v2658 = vld [vmem:[#allocation3 + $0x188] sm:$0xff]
      %v2659 = vld [vmem:[#allocation3 + $0x190] sm:$0xff]
      %v2660 = vld [vmem:[#allocation3 + $0x1a8] sm:$0xff]
      %v2661 = vld [vmem:[#allocation3 + $0x1b0] sm:$0xff]
      %v2662 = vld [vmem:[#allocation3 + $0x1c8] sm:$0xff]
      %v2663 = vld [vmem:[#allocation3 + $0x1d0] sm:$0xff]
      %v2664 = vld [vmem:[#allocation3 + $0x1e8] sm:$0xff]
      %v2665 = vld [vmem:[#allocation3 + $0x1f0] sm:$0xff]
      %v2666 = vld [vmem:[#allocation3 + $0x9] sm:$0xff]
      %v2667 = vld [vmem:[#allocation3 + $0x11] sm:$0xff]
      %v2668 = vld [vmem:[#allocation3 + $0x29] sm:$0xff]
      %v2669 = vld [vmem:[#allocation3 + $0x31] sm:$0xff]
      %v2670 = vld [vmem:[#allocation3 + $0x49] sm:$0xff]
      %v2671 = vld [vmem:[#allocation3 + $0x51] sm:$0xff]
      %v2672 = vld [vmem:[#allocation3 + $0x69] sm:$0xff]
      %v2673 = vld [vmem:[#allocation3 + $0x71] sm:$0xff]
      %v2674 = vld [vmem:[#allocation3 + $0x89] sm:$0xff]
      %v2675 = vld [vmem:[#allocation3 + $0x91] sm:$0xff]
      %v2676 = vld [vmem:[#allocation3 + $0xa9] sm:$0xff]
      %v2677 = vld [vmem:[#allocation3 + $0xb1] sm:$0xff]
      %v2678 = vld [vmem:[#allocation3 + $0xc9] sm:$0xff]
      %v2679 = vld [vmem:[#allocation3 + $0xd1] sm:$0xff]
      %v2680 = vld [vmem:[#allocation3 + $0xe9] sm:$0xff]
      %v2681 = vld [vmem:[#allocation3 + $0xf1] sm:$0xff]
      %v2682 = vld [vmem:[#allocation3 + $0x109] sm:$0xff]
      %v2683 = vld [vmem:[#allocation3 + $0x111] sm:$0xff]
      %v2684 = vld [vmem:[#allocation3 + $0x129] sm:$0xff]
      %v2685 = vld [vmem:[#allocation3 + $0x131] sm:$0xff]
      %v2686 = vld [vmem:[#allocation3 + $0x149] sm:$0xff]
      %v2687 = vld [vmem:[#allocation3 + $0x151] sm:$0xff]
      %v2688 = vld [vmem:[#allocation3 + $0x169] sm:$0xff]
      %v2689 = vld [vmem:[#allocation3 + $0x171] sm:$0xff]
      %v2690 = vld [vmem:[#allocation3 + $0x189] sm:$0xff]
      %v2691 = vld [vmem:[#allocation3 + $0x191] sm:$0xff]
      %v2692 = vld [vmem:[#allocation3 + $0x1a9] sm:$0xff]
      %v2693 = vld [vmem:[#allocation3 + $0x1b1] sm:$0xff]
      %v2694 = vld [vmem:[#allocation3 + $0x1c9] sm:$0xff]
      %v2695 = vld [vmem:[#allocation3 + $0x1d1] sm:$0xff]
      %v2696 = vld [vmem:[#allocation3 + $0x1e9] sm:$0xff]
      %v2697 = vld [vmem:[#allocation3 + $0x1f1] sm:$0xff]
      %v2698 = vld [vmem:[%s2524 + $0x7] sm:$0xff]
      %v2699 = vld [vmem:[%s2524 + $0xf] sm:$0xff]
      %v2700 = vld [vmem:[%s2524 + $0x27] sm:$0xff]
      %v2701 = vld [vmem:[%s2524 + $0x2f] sm:$0xff]
      %v2702 = vld [vmem:[%s2524 + $0x47] sm:$0xff]
      %v2703 = vld [vmem:[%s2524 + $0x4f] sm:$0xff]
      %v2704 = vld [vmem:[%s2524 + $0x67] sm:$0xff]
      %v2705 = vld [vmem:[%s2524 + $0x6f] sm:$0xff]
      %v2706 = vld [vmem:[%s2524 + $0x87] sm:$0xff]
      %v2707 = vld [vmem:[%s2524 + $0x8f] sm:$0xff]
      %v2708 = vld [vmem:[%s2524 + $0xa7] sm:$0xff]
      %v2709 = vld [vmem:[%s2524 + $0xaf] sm:$0xff]
      %v2710 = vld [vmem:[%s2524 + $0xc7] sm:$0xff]
      %v2711 = vld [vmem:[%s2524 + $0xcf] sm:$0xff]
      %v2712 = vld [vmem:[%s2524 + $0xe7] sm:$0xff]
      %v2713 = vld [vmem:[%s2524 + $0xef] sm:$0xff]
      %v2714 = vld [vmem:[%s2524 + $0x107] sm:$0xff]
      %v2715 = vld [vmem:[%s2524 + $0x10f] sm:$0xff]
      %v2716 = vld [vmem:[%s2524 + $0x127] sm:$0xff]
      %v2717 = vld [vmem:[%s2524 + $0x12f] sm:$0xff]
      %v2718 = vld [vmem:[%s2524 + $0x147] sm:$0xff]
      %v2719 = vld [vmem:[%s2524 + $0x14f] sm:$0xff]
      %v2720 = vld [vmem:[%s2524 + $0x167] sm:$0xff]
      %v2721 = vld [vmem:[%s2524 + $0x16f] sm:$0xff]
      %v2722 = vld [vmem:[%s2524 + $0x187] sm:$0xff]
      %v2723 = vld [vmem:[%s2524 + $0x18f] sm:$0xff]
      %v2724 = vld [vmem:[%s2524 + $0x1a7] sm:$0xff]
      %v2725 = vld [vmem:[%s2524 + $0x1af] sm:$0xff]
      %v2726 = vld [vmem:[%s2524 + $0x1c7] sm:$0xff]
      %v2727 = vld [vmem:[%s2524 + $0x1cf] sm:$0xff]
      %v2728 = vld [vmem:[%s2524 + $0x1e7] sm:$0xff]
      %v2729 = vld [vmem:[%s2524 + $0x1ef] sm:$0xff]
      %v2730 = vld [vmem:[%s2524 + $0x8] sm:$0xff]
      %v2731 = vld [vmem:[%s2524 + $0x10] sm:$0xff]
      %v2732 = vld [vmem:[%s2524 + $0x28] sm:$0xff]
      %v2733 = vld [vmem:[%s2524 + $0x30] sm:$0xff]
      %v2734 = vld [vmem:[%s2524 + $0x48] sm:$0xff]
      %v2735 = vld [vmem:[%s2524 + $0x50] sm:$0xff]
      %v2736 = vld [vmem:[%s2524 + $0x68] sm:$0xff]
      %v2737 = vld [vmem:[%s2524 + $0x70] sm:$0xff]
      %v2738 = vld [vmem:[%s2524 + $0x88] sm:$0xff]
      %v2739 = vld [vmem:[%s2524 + $0x90] sm:$0xff]
      %v2740 = vld [vmem:[%s2524 + $0xa8] sm:$0xff]
      %v2741 = vld [vmem:[%s2524 + $0xb0] sm:$0xff]
      %v2742 = vld [vmem:[%s2524 + $0xc8] sm:$0xff]
      %v2743 = vld [vmem:[%s2524 + $0xd0] sm:$0xff]
      %v2744 = vld [vmem:[%s2524 + $0xe8] sm:$0xff]
      %v2745 = vld [vmem:[%s2524 + $0xf0] sm:$0xff]
      %v2746 = vld [vmem:[%s2524 + $0x108] sm:$0xff]
      %v2747 = vld [vmem:[%s2524 + $0x110] sm:$0xff]
      %v2748 = vld [vmem:[%s2524 + $0x128] sm:$0xff]
      %v2749 = vld [vmem:[%s2524 + $0x130] sm:$0xff]
      %v2750 = vld [vmem:[%s2524 + $0x148] sm:$0xff]
      %v2751 = vld [vmem:[%s2524 + $0x150] sm:$0xff]
      %v2752 = vld [vmem:[%s2524 + $0x168] sm:$0xff]
      %v2753 = vld [vmem:[%s2524 + $0x170] sm:$0xff]
      %v2754 = vld [vmem:[%s2524 + $0x188] sm:$0xff]
      %v2755 = vld [vmem:[%s2524 + $0x190] sm:$0xff]
      %v2756 = vld [vmem:[%s2524 + $0x1a8] sm:$0xff]
      %v2757 = vld [vmem:[%s2524 + $0x1b0] sm:$0xff]
      %v2758 = vld [vmem:[%s2524 + $0x1c8] sm:$0xff]
      %v2759 = vld [vmem:[%s2524 + $0x1d0] sm:$0xff]
      %v2760 = vld [vmem:[%s2524 + $0x1e8] sm:$0xff]
      %v2761 = vld [vmem:[%s2524 + $0x1f0] sm:$0xff]
      %v2762 = vld [vmem:[%s2524 + $0x9] sm:$0xff]
      %v2763 = vld [vmem:[%s2524 + $0x11] sm:$0xff]
      %v2764 = vld [vmem:[%s2524 + $0x29] sm:$0xff]
      %v2765 = vld [vmem:[%s2524 + $0x31] sm:$0xff]
      %v2766 = vld [vmem:[%s2524 + $0x49] sm:$0xff]
      %v2767 = vld [vmem:[%s2524 + $0x51] sm:$0xff]
      %v2768 = vld [vmem:[%s2524 + $0x69] sm:$0xff]
      %v2769 = vld [vmem:[%s2524 + $0x71] sm:$0xff]
      %v2770 = vld [vmem:[%s2524 + $0x89] sm:$0xff]
      %v2771 = vld [vmem:[%s2524 + $0x91] sm:$0xff]
      %v2772 = vld [vmem:[%s2524 + $0xa9] sm:$0xff]
      %v2773 = vld [vmem:[%s2524 + $0xb1] sm:$0xff]
      %v2774 = vld [vmem:[%s2524 + $0xc9] sm:$0xff]
      %v2775 = vld [vmem:[%s2524 + $0xd1] sm:$0xff]
      %v2776 = vld [vmem:[%s2524 + $0xe9] sm:$0xff]
      %v2777 = vld [vmem:[%s2524 + $0xf1] sm:$0xff]
      %v2778 = vld [vmem:[%s2524 + $0x109] sm:$0xff]
      %v2779 = vld [vmem:[%s2524 + $0x111] sm:$0xff]
      %v2780 = vld [vmem:[%s2524 + $0x129] sm:$0xff]
      %v2781 = vld [vmem:[%s2524 + $0x131] sm:$0xff]
      %v2782 = vld [vmem:[%s2524 + $0x149] sm:$0xff]
      %v2783 = vld [vmem:[%s2524 + $0x151] sm:$0xff]
      %v2784 = vld [vmem:[%s2524 + $0x169] sm:$0xff]
      %v2785 = vld [vmem:[%s2524 + $0x171] sm:$0xff]
      %v2786 = vld [vmem:[%s2524 + $0x189] sm:$0xff]
      %v2787 = vld [vmem:[%s2524 + $0x191] sm:$0xff]
      %v2788 = vld [vmem:[%s2524 + $0x1a9] sm:$0xff]
      %v2789 = vld [vmem:[%s2524 + $0x1b1] sm:$0xff]
      %v2790 = vld [vmem:[%s2524 + $0x1c9] sm:$0xff]
      %v2791 = vld [vmem:[%s2524 + $0x1d1] sm:$0xff]
      %v2792 = vld [vmem:[%s2524 + $0x1e9] sm:$0xff]
      %v2793 = vld [vmem:[%s2524 + $0x1f1] sm:$0xff]
      %v2794 = vld [vmem:[%s2529 + $0x7] sm:$0xff]
      %v2795 = vld [vmem:[%s2529 + $0xf] sm:$0xff]
      %v2796 = vld [vmem:[%s2529 + $0x27] sm:$0xff]
      %v2797 = vld [vmem:[%s2529 + $0x2f] sm:$0xff]
      %v2798 = vld [vmem:[%s2529 + $0x47] sm:$0xff]
      %v2799 = vld [vmem:[%s2529 + $0x4f] sm:$0xff]
      %v2800 = vld [vmem:[%s2529 + $0x67] sm:$0xff]
      %v2801 = vld [vmem:[%s2529 + $0x6f] sm:$0xff]
      %v2802 = vld [vmem:[%s2529 + $0x87] sm:$0xff]
      %v2803 = vld [vmem:[%s2529 + $0x8f] sm:$0xff]
      %v2804 = vld [vmem:[%s2529 + $0xa7] sm:$0xff]
      %v2805 = vld [vmem:[%s2529 + $0xaf] sm:$0xff]
      %v2806 = vld [vmem:[%s2529 + $0xc7] sm:$0xff]
      %v2807 = vld [vmem:[%s2529 + $0xcf] sm:$0xff]
      %v2808 = vld [vmem:[%s2529 + $0xe7] sm:$0xff]
      %v2809 = vld [vmem:[%s2529 + $0xef] sm:$0xff]
      %v2810 = vld [vmem:[%s2529 + $0x107] sm:$0xff]
      %v2811 = vld [vmem:[%s2529 + $0x10f] sm:$0xff]
      %v2812 = vld [vmem:[%s2529 + $0x127] sm:$0xff]
      %v2813 = vld [vmem:[%s2529 + $0x12f] sm:$0xff]
      %v2814 = vld [vmem:[%s2529 + $0x147] sm:$0xff]
      %v2815 = vld [vmem:[%s2529 + $0x14f] sm:$0xff]
      %v2816 = vld [vmem:[%s2529 + $0x167] sm:$0xff]
      %v2817 = vld [vmem:[%s2529 + $0x16f] sm:$0xff]
      %v2818 = vld [vmem:[%s2529 + $0x187] sm:$0xff]
      %v2819 = vld [vmem:[%s2529 + $0x18f] sm:$0xff]
      %v2820 = vld [vmem:[%s2529 + $0x1a7] sm:$0xff]
      %v2821 = vld [vmem:[%s2529 + $0x1af] sm:$0xff]
      %v2822 = vld [vmem:[%s2529 + $0x1c7] sm:$0xff]
      %v2823 = vld [vmem:[%s2529 + $0x1cf] sm:$0xff]
      %v2824 = vld [vmem:[%s2529 + $0x1e7] sm:$0xff]
      %v2825 = vld [vmem:[%s2529 + $0x1ef] sm:$0xff]
      %v2826 = vld [vmem:[%s2529 + $0x8] sm:$0xff]
      %v2827 = vld [vmem:[%s2529 + $0x10] sm:$0xff]
      %v2828 = vld [vmem:[%s2529 + $0x28] sm:$0xff]
      %v2829 = vld [vmem:[%s2529 + $0x30] sm:$0xff]
      %v2830 = vld [vmem:[%s2529 + $0x48] sm:$0xff]
      %v2831 = vld [vmem:[%s2529 + $0x50] sm:$0xff]
      %v2832 = vld [vmem:[%s2529 + $0x68] sm:$0xff]
      %v2833 = vld [vmem:[%s2529 + $0x70] sm:$0xff]
      %v2834 = vld [vmem:[%s2529 + $0x88] sm:$0xff]
      %v2835 = vld [vmem:[%s2529 + $0x90] sm:$0xff]
      %v2836 = vld [vmem:[%s2529 + $0xa8] sm:$0xff]
      %v2837 = vld [vmem:[%s2529 + $0xb0] sm:$0xff]
      %v2838 = vld [vmem:[%s2529 + $0xc8] sm:$0xff]
      %v2839 = vld [vmem:[%s2529 + $0xd0] sm:$0xff]
      %v2840 = vld [vmem:[%s2529 + $0xe8] sm:$0xff]
      %v2841 = vld [vmem:[%s2529 + $0xf0] sm:$0xff]
      %v2842 = vld [vmem:[%s2529 + $0x108] sm:$0xff]
      %v2843 = vld [vmem:[%s2529 + $0x110] sm:$0xff]
      %v2844 = vld [vmem:[%s2529 + $0x128] sm:$0xff]
      %v2845 = vld [vmem:[%s2529 + $0x130] sm:$0xff]
      %v2846 = vld [vmem:[%s2529 + $0x148] sm:$0xff]
      %v2847 = vld [vmem:[%s2529 + $0x150] sm:$0xff]
      %v2848 = vld [vmem:[%s2529 + $0x168] sm:$0xff]
      %v2849 = vld [vmem:[%s2529 + $0x170] sm:$0xff]
      %v2850 = vld [vmem:[%s2529 + $0x188] sm:$0xff]
      %v2851 = vld [vmem:[%s2529 + $0x190] sm:$0xff]
      %v2852 = vld [vmem:[%s2529 + $0x1a8] sm:$0xff]
      %v2853 = vld [vmem:[%s2529 + $0x1b0] sm:$0xff]
      %v2854 = vld [vmem:[%s2529 + $0x1c8] sm:$0xff]
      %v2855 = vld [vmem:[%s2529 + $0x1d0] sm:$0xff]
      %v2856 = vld [vmem:[%s2529 + $0x1e8] sm:$0xff]
      %v2857 = vld [vmem:[%s2529 + $0x1f0] sm:$0xff]
      %v2858 = vld [vmem:[%s2529 + $0x9] sm:$0xff]
      %v2859 = vld [vmem:[%s2529 + $0x11] sm:$0xff]
      %v2860 = vld [vmem:[%s2529 + $0x29] sm:$0xff]
      %v2861 = vld [vmem:[%s2529 + $0x31] sm:$0xff]
      %v2862 = vld [vmem:[%s2529 + $0x49] sm:$0xff]
      %v2863 = vld [vmem:[%s2529 + $0x51] sm:$0xff]
      %v2864 = vld [vmem:[%s2529 + $0x69] sm:$0xff]
      %v2865 = vld [vmem:[%s2529 + $0x71] sm:$0xff]
      %v2866 = vld [vmem:[%s2529 + $0x89] sm:$0xff]
      %v2867 = vld [vmem:[%s2529 + $0x91] sm:$0xff]
      %v2868 = vld [vmem:[%s2529 + $0xa9] sm:$0xff]
      %v2869 = vld [vmem:[%s2529 + $0xb1] sm:$0xff]
      %v2870 = vld [vmem:[%s2529 + $0xc9] sm:$0xff]
      %v2871 = vld [vmem:[%s2529 + $0xd1] sm:$0xff]
      %v2872 = vld [vmem:[%s2529 + $0xe9] sm:$0xff]
      %v2873 = vld [vmem:[%s2529 + $0xf1] sm:$0xff]
      %v2874 = vld [vmem:[%s2529 + $0x109] sm:$0xff]
      %v2875 = vld [vmem:[%s2529 + $0x111] sm:$0xff]
      %v2876 = vld [vmem:[%s2529 + $0x129] sm:$0xff]
      %v2877 = vld [vmem:[%s2529 + $0x131] sm:$0xff]
      %v2878 = vld [vmem:[%s2529 + $0x149] sm:$0xff]
      %v2879 = vld [vmem:[%s2529 + $0x151] sm:$0xff]
      %v2880 = vld [vmem:[%s2529 + $0x169] sm:$0xff]
      %v2881 = vld [vmem:[%s2529 + $0x171] sm:$0xff]
      %v2882 = vld [vmem:[%s2529 + $0x189] sm:$0xff]
      %v2883 = vld [vmem:[%s2529 + $0x191] sm:$0xff]
      %v2884 = vld [vmem:[%s2529 + $0x1a9] sm:$0xff]
      %v2885 = vld [vmem:[%s2529 + $0x1b1] sm:$0xff]
      %v2886 = vld [vmem:[%s2529 + $0x1c9] sm:$0xff]
      %v2887 = vld [vmem:[%s2529 + $0x1d1] sm:$0xff]
      %v2888 = vld [vmem:[%s2529 + $0x1e9] sm:$0xff]
      %v2889 = vld [vmem:[%s2529 + $0x1f1] sm:$0xff]
      %2922 = vrot.lane.b32.xlu0 %v2634, 8
      %v2923 = vpop.permute.xlu0 %2922
      %2924 = vrot.lane.b32.xlu0 %v2635, 8
      %v2925 = vpop.permute.xlu0 %2924
      %2926 = vrot.lane.b32.xlu0 %v2636, 8
      %v2927 = vpop.permute.xlu0 %2926
      %2928 = vrot.lane.b32.xlu0 %v2637, 8
      %v2929 = vpop.permute.xlu0 %2928
      %2930 = vrot.lane.b32.xlu0 %v2638, 8
      %v2931 = vpop.permute.xlu0 %2930
      %2932 = vrot.lane.b32.xlu0 %v2639, 8
      %v2933 = vpop.permute.xlu0 %2932
      %2934 = vrot.lane.b32.xlu0 %v2640, 8
      %v2935 = vpop.permute.xlu0 %2934
      %2936 = vrot.lane.b32.xlu0 %v2641, 8
      %v2937 = vpop.permute.xlu0 %2936
      %2938 = vrot.lane.b32.xlu0 %v2642, 8
      %v2939 = vpop.permute.xlu0 %2938
      %2940 = vrot.lane.b32.xlu0 %v2643, 8
      %v2941 = vpop.permute.xlu0 %2940
      %2942 = vrot.lane.b32.xlu0 %v2644, 8
      %v2943 = vpop.permute.xlu0 %2942
      %2944 = vrot.lane.b32.xlu0 %v2645, 8
      %v2945 = vpop.permute.xlu0 %2944
      %2946 = vrot.lane.b32.xlu0 %v2646, 8
      %v2947 = vpop.permute.xlu0 %2946
      %2948 = vrot.lane.b32.xlu0 %v2647, 8
      %v2949 = vpop.permute.xlu0 %2948
      %2950 = vrot.lane.b32.xlu0 %v2648, 8
      %v2951 = vpop.permute.xlu0 %2950
      %2952 = vrot.lane.b32.xlu0 %v2649, 8
      %v2953 = vpop.permute.xlu0 %2952
      %2954 = vrot.lane.b32.xlu0 %v2650, 8
      %v2955 = vpop.permute.xlu0 %2954
      %2956 = vrot.lane.b32.xlu0 %v2651, 8
      %v2957 = vpop.permute.xlu0 %2956
      %2958 = vrot.lane.b32.xlu0 %v2652, 8
      %v2959 = vpop.permute.xlu0 %2958
      %2960 = vrot.lane.b32.xlu0 %v2653, 8
      %v2961 = vpop.permute.xlu0 %2960
      %2962 = vrot.lane.b32.xlu0 %v2654, 8
      %v2963 = vpop.permute.xlu0 %2962
      %2964 = vrot.lane.b32.xlu0 %v2655, 8
      %v2965 = vpop.permute.xlu0 %2964
      %2966 = vrot.lane.b32.xlu0 %v2656, 8
      %v2967 = vpop.permute.xlu0 %2966
      %2968 = vrot.lane.b32.xlu0 %v2657, 8
      %v2969 = vpop.permute.xlu0 %2968
      %2970 = vrot.lane.b32.xlu0 %v2658, 8
      %v2971 = vpop.permute.xlu0 %2970
      %2972 = vrot.lane.b32.xlu0 %v2659, 8
      %v2973 = vpop.permute.xlu0 %2972
      %2974 = vrot.lane.b32.xlu0 %v2660, 8
      %v2975 = vpop.permute.xlu0 %2974
      %2976 = vrot.lane.b32.xlu0 %v2661, 8
      %v2977 = vpop.permute.xlu0 %2976
      %2978 = vrot.lane.b32.xlu0 %v2662, 8
      %v2979 = vpop.permute.xlu0 %2978
      %2980 = vrot.lane.b32.xlu0 %v2663, 8
      %v2981 = vpop.permute.xlu0 %2980
      %2982 = vrot.lane.b32.xlu0 %v2664, 8
      %v2983 = vpop.permute.xlu0 %2982
      %2984 = vrot.lane.b32.xlu0 %v2665, 8
      %v2985 = vpop.permute.xlu0 %2984
      %3050 = vrot.lane.b32.xlu0 %v2666, 16
      %v3051 = vpop.permute.xlu0 %3050
      %3052 = vrot.lane.b32.xlu0 %v2667, 16
      %v3053 = vpop.permute.xlu0 %3052
      %3054 = vrot.lane.b32.xlu0 %v2668, 16
      %v3055 = vpop.permute.xlu0 %3054
      %3056 = vrot.lane.b32.xlu0 %v2669, 16
      %v3057 = vpop.permute.xlu0 %3056
      %3058 = vrot.lane.b32.xlu0 %v2670, 16
      %v3059 = vpop.permute.xlu0 %3058
      %3060 = vrot.lane.b32.xlu0 %v2671, 16
      %v3061 = vpop.permute.xlu0 %3060
      %3062 = vrot.lane.b32.xlu0 %v2672, 16
      %v3063 = vpop.permute.xlu0 %3062
      %3064 = vrot.lane.b32.xlu0 %v2673, 16
      %v3065 = vpop.permute.xlu0 %3064
      %3066 = vrot.lane.b32.xlu0 %v2674, 16
      %v3067 = vpop.permute.xlu0 %3066
      %3068 = vrot.lane.b32.xlu0 %v2675, 16
      %v3069 = vpop.permute.xlu0 %3068
      %3070 = vrot.lane.b32.xlu0 %v2676, 16
      %v3071 = vpop.permute.xlu0 %3070
      %3072 = vrot.lane.b32.xlu0 %v2677, 16
      %v3073 = vpop.permute.xlu0 %3072
      %3074 = vrot.lane.b32.xlu0 %v2678, 16
      %v3075 = vpop.permute.xlu0 %3074
      %3076 = vrot.lane.b32.xlu0 %v2679, 16
      %v3077 = vpop.permute.xlu0 %3076
      %3078 = vrot.lane.b32.xlu0 %v2680, 16
      %v3079 = vpop.permute.xlu0 %3078
      %3080 = vrot.lane.b32.xlu0 %v2681, 16
      %v3081 = vpop.permute.xlu0 %3080
      %3082 = vrot.lane.b32.xlu0 %v2682, 16
      %v3083 = vpop.permute.xlu0 %3082
      %3084 = vrot.lane.b32.xlu0 %v2683, 16
      %v3085 = vpop.permute.xlu0 %3084
      %3086 = vrot.lane.b32.xlu0 %v2684, 16
      %v3087 = vpop.permute.xlu0 %3086
      %3088 = vrot.lane.b32.xlu0 %v2685, 16
      %v3089 = vpop.permute.xlu0 %3088
      %3090 = vrot.lane.b32.xlu0 %v2686, 16
      %v3091 = vpop.permute.xlu0 %3090
      %3092 = vrot.lane.b32.xlu0 %v2687, 16
      %v3093 = vpop.permute.xlu0 %3092
      %3094 = vrot.lane.b32.xlu0 %v2688, 16
      %v3095 = vpop.permute.xlu0 %3094
      %3096 = vrot.lane.b32.xlu0 %v2689, 16
      %v3097 = vpop.permute.xlu0 %3096
      %3098 = vrot.lane.b32.xlu0 %v2690, 16
      %v3099 = vpop.permute.xlu0 %3098
      %3100 = vrot.lane.b32.xlu0 %v2691, 16
      %v3101 = vpop.permute.xlu0 %3100
      %3102 = vrot.lane.b32.xlu0 %v2692, 16
      %v3103 = vpop.permute.xlu0 %3102
      %3104 = vrot.lane.b32.xlu0 %v2693, 16
      %v3105 = vpop.permute.xlu0 %3104
      %3106 = vrot.lane.b32.xlu0 %v2694, 16
      %v3107 = vpop.permute.xlu0 %3106
      %3108 = vrot.lane.b32.xlu0 %v2695, 16
      %v3109 = vpop.permute.xlu0 %3108
      %3110 = vrot.lane.b32.xlu0 %v2696, 16
      %v3111 = vpop.permute.xlu0 %3110
      %3112 = vrot.lane.b32.xlu0 %v2697, 16
      %v3113 = vpop.permute.xlu0 %3112
      %3178 = vrot.lane.b32.xlu0 %v2698, 24
      %v3179 = vpop.permute.xlu0 %3178
      %3180 = vrot.lane.b32.xlu0 %v2699, 24
      %v3181 = vpop.permute.xlu0 %3180
      %3182 = vrot.lane.b32.xlu0 %v2700, 24
      %v3183 = vpop.permute.xlu0 %3182
      %3184 = vrot.lane.b32.xlu0 %v2701, 24
      %v3185 = vpop.permute.xlu0 %3184
      %3186 = vrot.lane.b32.xlu0 %v2702, 24
      %v3187 = vpop.permute.xlu0 %3186
      %3188 = vrot.lane.b32.xlu0 %v2703, 24
      %v3189 = vpop.permute.xlu0 %3188
      %3190 = vrot.lane.b32.xlu0 %v2704, 24
      %v3191 = vpop.permute.xlu0 %3190
      %3192 = vrot.lane.b32.xlu0 %v2705, 24
      %v3193 = vpop.permute.xlu0 %3192
      %3194 = vrot.lane.b32.xlu0 %v2706, 24
      %v3195 = vpop.permute.xlu0 %3194
      %3196 = vrot.lane.b32.xlu0 %v2707, 24
      %v3197 = vpop.permute.xlu0 %3196
      %3198 = vrot.lane.b32.xlu0 %v2708, 24
      %v3199 = vpop.permute.xlu0 %3198
      %3200 = vrot.lane.b32.xlu0 %v2709, 24
      %v3201 = vpop.permute.xlu0 %3200
      %3202 = vrot.lane.b32.xlu0 %v2710, 24
      %v3203 = vpop.permute.xlu0 %3202
      %3204 = vrot.lane.b32.xlu0 %v2711, 24
      %v3205 = vpop.permute.xlu0 %3204
      %3206 = vrot.lane.b32.xlu0 %v2712, 24
      %v3207 = vpop.permute.xlu0 %3206
      %3208 = vrot.lane.b32.xlu0 %v2713, 24
      %v3209 = vpop.permute.xlu0 %3208
      %3210 = vrot.lane.b32.xlu0 %v2714, 24
      %v3211 = vpop.permute.xlu0 %3210
      %3212 = vrot.lane.b32.xlu0 %v2715, 24
      %v3213 = vpop.permute.xlu0 %3212
      %3214 = vrot.lane.b32.xlu0 %v2716, 24
      %v3215 = vpop.permute.xlu0 %3214
      %3216 = vrot.lane.b32.xlu0 %v2717, 24
      %v3217 = vpop.permute.xlu0 %3216
      %3218 = vrot.lane.b32.xlu0 %v2718, 24
      %v3219 = vpop.permute.xlu0 %3218
      %3220 = vrot.lane.b32.xlu0 %v2719, 24
      %v3221 = vpop.permute.xlu0 %3220
      %3222 = vrot.lane.b32.xlu0 %v2720, 24
      %v3223 = vpop.permute.xlu0 %3222
      %3224 = vrot.lane.b32.xlu0 %v2721, 24
      %v3225 = vpop.permute.xlu0 %3224
      %3226 = vrot.lane.b32.xlu0 %v2722, 24
      %v3227 = vpop.permute.xlu0 %3226
      %3228 = vrot.lane.b32.xlu0 %v2723, 24
      %v3229 = vpop.permute.xlu0 %3228
      %3230 = vrot.lane.b32.xlu0 %v2724, 24
      %v3231 = vpop.permute.xlu0 %3230
      %3232 = vrot.lane.b32.xlu0 %v2725, 24
      %v3233 = vpop.permute.xlu0 %3232
      %3234 = vrot.lane.b32.xlu0 %v2726, 24
      %v3235 = vpop.permute.xlu0 %3234
      %3236 = vrot.lane.b32.xlu0 %v2727, 24
      %v3237 = vpop.permute.xlu0 %3236
      %3238 = vrot.lane.b32.xlu0 %v2728, 24
      %v3239 = vpop.permute.xlu0 %3238
      %3240 = vrot.lane.b32.xlu0 %v2729, 24
      %v3241 = vpop.permute.xlu0 %3240
      %3306 = vrot.lane.b32.xlu0 %v2730, 32
      %v3307 = vpop.permute.xlu0 %3306
      %3308 = vrot.lane.b32.xlu0 %v2731, 32
      %v3309 = vpop.permute.xlu0 %3308
      %3310 = vrot.lane.b32.xlu0 %v2732, 32
      %v3311 = vpop.permute.xlu0 %3310
      %3312 = vrot.lane.b32.xlu0 %v2733, 32
      %v3313 = vpop.permute.xlu0 %3312
      %3314 = vrot.lane.b32.xlu0 %v2734, 32
      %v3315 = vpop.permute.xlu0 %3314
      %3316 = vrot.lane.b32.xlu0 %v2735, 32
      %v3317 = vpop.permute.xlu0 %3316
      %3318 = vrot.lane.b32.xlu0 %v2736, 32
      %v3319 = vpop.permute.xlu0 %3318
      %3320 = vrot.lane.b32.xlu0 %v2737, 32
      %v3321 = vpop.permute.xlu0 %3320
      %3322 = vrot.lane.b32.xlu0 %v2738, 32
      %v3323 = vpop.permute.xlu0 %3322
      %3324 = vrot.lane.b32.xlu0 %v2739, 32
      %v3325 = vpop.permute.xlu0 %3324
      %3326 = vrot.lane.b32.xlu0 %v2740, 32
      %v3327 = vpop.permute.xlu0 %3326
      %3328 = vrot.lane.b32.xlu0 %v2741, 32
      %v3329 = vpop.permute.xlu0 %3328
      %3330 = vrot.lane.b32.xlu0 %v2742, 32
      %v3331 = vpop.permute.xlu0 %3330
      %3332 = vrot.lane.b32.xlu0 %v2743, 32
      %v3333 = vpop.permute.xlu0 %3332
      %3334 = vrot.lane.b32.xlu0 %v2744, 32
      %v3335 = vpop.permute.xlu0 %3334
      %3336 = vrot.lane.b32.xlu0 %v2745, 32
      %v3337 = vpop.permute.xlu0 %3336
      %3338 = vrot.lane.b32.xlu0 %v2746, 32
      %v3339 = vpop.permute.xlu0 %3338
      %3340 = vrot.lane.b32.xlu0 %v2747, 32
      %v3341 = vpop.permute.xlu0 %3340
      %3342 = vrot.lane.b32.xlu0 %v2748, 32
      %v3343 = vpop.permute.xlu0 %3342
      %3344 = vrot.lane.b32.xlu0 %v2749, 32
      %v3345 = vpop.permute.xlu0 %3344
      %3346 = vrot.lane.b32.xlu0 %v2750, 32
      %v3347 = vpop.permute.xlu0 %3346
      %3348 = vrot.lane.b32.xlu0 %v2751, 32
      %v3349 = vpop.permute.xlu0 %3348
      %3350 = vrot.lane.b32.xlu0 %v2752, 32
      %v3351 = vpop.permute.xlu0 %3350
      %3352 = vrot.lane.b32.xlu0 %v2753, 32
      %v3353 = vpop.permute.xlu0 %3352
      %3354 = vrot.lane.b32.xlu0 %v2754, 32
      %v3355 = vpop.permute.xlu0 %3354
      %3356 = vrot.lane.b32.xlu0 %v2755, 32
      %v3357 = vpop.permute.xlu0 %3356
      %3358 = vrot.lane.b32.xlu0 %v2756, 32
      %v3359 = vpop.permute.xlu0 %3358
      %3360 = vrot.lane.b32.xlu0 %v2757, 32
      %v3361 = vpop.permute.xlu0 %3360
      %3362 = vrot.lane.b32.xlu0 %v2758, 32
      %v3363 = vpop.permute.xlu0 %3362
      %3364 = vrot.lane.b32.xlu0 %v2759, 32
      %v3365 = vpop.permute.xlu0 %3364
      %3366 = vrot.lane.b32.xlu0 %v2760, 32
      %v3367 = vpop.permute.xlu0 %3366
      %3368 = vrot.lane.b32.xlu0 %v2761, 32
      %v3369 = vpop.permute.xlu0 %3368
      %3434 = vrot.lane.b32.xlu0 %v2762, 40
      %v3435 = vpop.permute.xlu0 %3434
      %3436 = vrot.lane.b32.xlu0 %v2763, 40
      %v3437 = vpop.permute.xlu0 %3436
      %3438 = vrot.lane.b32.xlu0 %v2764, 40
      %v3439 = vpop.permute.xlu0 %3438
      %3440 = vrot.lane.b32.xlu0 %v2765, 40
      %v3441 = vpop.permute.xlu0 %3440
      %3442 = vrot.lane.b32.xlu0 %v2766, 40
      %v3443 = vpop.permute.xlu0 %3442
      %3444 = vrot.lane.b32.xlu0 %v2767, 40
      %v3445 = vpop.permute.xlu0 %3444
      %3446 = vrot.lane.b32.xlu0 %v2768, 40
      %v3447 = vpop.permute.xlu0 %3446
      %3448 = vrot.lane.b32.xlu0 %v2769, 40
      %v3449 = vpop.permute.xlu0 %3448
      %3450 = vrot.lane.b32.xlu0 %v2770, 40
      %v3451 = vpop.permute.xlu0 %3450
      %3452 = vrot.lane.b32.xlu0 %v2771, 40
      %v3453 = vpop.permute.xlu0 %3452
      %3454 = vrot.lane.b32.xlu0 %v2772, 40
      %v3455 = vpop.permute.xlu0 %3454
      %3456 = vrot.lane.b32.xlu0 %v2773, 40
      %v3457 = vpop.permute.xlu0 %3456
      %3458 = vrot.lane.b32.xlu0 %v2774, 40
      %v3459 = vpop.permute.xlu0 %3458
      %3460 = vrot.lane.b32.xlu0 %v2775, 40
      %v3461 = vpop.permute.xlu0 %3460
      %3462 = vrot.lane.b32.xlu0 %v2776, 40
      %v3463 = vpop.permute.xlu0 %3462
      %3464 = vrot.lane.b32.xlu0 %v2777, 40
      %v3465 = vpop.permute.xlu0 %3464
      %3466 = vrot.lane.b32.xlu0 %v2778, 40
      %v3467 = vpop.permute.xlu0 %3466
      %3468 = vrot.lane.b32.xlu0 %v2779, 40
      %v3469 = vpop.permute.xlu0 %3468
      %3470 = vrot.lane.b32.xlu0 %v2780, 40
      %v3471 = vpop.permute.xlu0 %3470
      %3472 = vrot.lane.b32.xlu0 %v2781, 40
      %v3473 = vpop.permute.xlu0 %3472
      %3474 = vrot.lane.b32.xlu0 %v2782, 40
      %v3475 = vpop.permute.xlu0 %3474
      %3476 = vrot.lane.b32.xlu0 %v2783, 40
      %v3477 = vpop.permute.xlu0 %3476
      %3478 = vrot.lane.b32.xlu0 %v2784, 40
      %v3479 = vpop.permute.xlu0 %3478
      %3480 = vrot.lane.b32.xlu0 %v2785, 40
      %v3481 = vpop.permute.xlu0 %3480
      %3482 = vrot.lane.b32.xlu0 %v2786, 40
      %v3483 = vpop.permute.xlu0 %3482
      %3484 = vrot.lane.b32.xlu0 %v2787, 40
      %v3485 = vpop.permute.xlu0 %3484
      %3486 = vrot.lane.b32.xlu0 %v2788, 40
      %v3487 = vpop.permute.xlu0 %3486
      %3488 = vrot.lane.b32.xlu0 %v2789, 40
      %v3489 = vpop.permute.xlu0 %3488
      %3490 = vrot.lane.b32.xlu0 %v2790, 40
      %v3491 = vpop.permute.xlu0 %3490
      %3492 = vrot.lane.b32.xlu0 %v2791, 40
      %v3493 = vpop.permute.xlu0 %3492
      %3494 = vrot.lane.b32.xlu0 %v2792, 40
      %v3495 = vpop.permute.xlu0 %3494
      %3496 = vrot.lane.b32.xlu0 %v2793, 40
      %v3497 = vpop.permute.xlu0 %3496
      %3562 = vrot.lane.b32.xlu0 %v2794, 48
      %v3563 = vpop.permute.xlu0 %3562
      %3564 = vrot.lane.b32.xlu0 %v2795, 48
      %v3565 = vpop.permute.xlu0 %3564
      %3566 = vrot.lane.b32.xlu0 %v2796, 48
      %v3567 = vpop.permute.xlu0 %3566
      %3568 = vrot.lane.b32.xlu0 %v2797, 48
      %v3569 = vpop.permute.xlu0 %3568
      %3570 = vrot.lane.b32.xlu0 %v2798, 48
      %v3571 = vpop.permute.xlu0 %3570
      %3572 = vrot.lane.b32.xlu0 %v2799, 48
      %v3573 = vpop.permute.xlu0 %3572
      %3574 = vrot.lane.b32.xlu0 %v2800, 48
      %v3575 = vpop.permute.xlu0 %3574
      %3576 = vrot.lane.b32.xlu0 %v2801, 48
      %v3577 = vpop.permute.xlu0 %3576
      %3578 = vrot.lane.b32.xlu0 %v2802, 48
      %v3579 = vpop.permute.xlu0 %3578
      %3580 = vrot.lane.b32.xlu0 %v2803, 48
      %v3581 = vpop.permute.xlu0 %3580
      %3582 = vrot.lane.b32.xlu0 %v2804, 48
      %v3583 = vpop.permute.xlu0 %3582
      %3584 = vrot.lane.b32.xlu0 %v2805, 48
      %v3585 = vpop.permute.xlu0 %3584
      %3586 = vrot.lane.b32.xlu0 %v2806, 48
      %v3587 = vpop.permute.xlu0 %3586
      %3588 = vrot.lane.b32.xlu0 %v2807, 48
      %v3589 = vpop.permute.xlu0 %3588
      %3590 = vrot.lane.b32.xlu0 %v2808, 48
      %v3591 = vpop.permute.xlu0 %3590
      %3592 = vrot.lane.b32.xlu0 %v2809, 48
      %v3593 = vpop.permute.xlu0 %3592
      %3594 = vrot.lane.b32.xlu0 %v2810, 48
      %v3595 = vpop.permute.xlu0 %3594
      %3596 = vrot.lane.b32.xlu0 %v2811, 48
      %v3597 = vpop.permute.xlu0 %3596
      %3598 = vrot.lane.b32.xlu0 %v2812, 48
      %v3599 = vpop.permute.xlu0 %3598
      %3600 = vrot.lane.b32.xlu0 %v2813, 48
      %v3601 = vpop.permute.xlu0 %3600
      %3602 = vrot.lane.b32.xlu0 %v2814, 48
      %v3603 = vpop.permute.xlu0 %3602
      %3604 = vrot.lane.b32.xlu0 %v2815, 48
      %v3605 = vpop.permute.xlu0 %3604
      %3606 = vrot.lane.b32.xlu0 %v2816, 48
      %v3607 = vpop.permute.xlu0 %3606
      %3608 = vrot.lane.b32.xlu0 %v2817, 48
      %v3609 = vpop.permute.xlu0 %3608
      %3610 = vrot.lane.b32.xlu0 %v2818, 48
      %v3611 = vpop.permute.xlu0 %3610
      %3612 = vrot.lane.b32.xlu0 %v2819, 48
      %v3613 = vpop.permute.xlu0 %3612
      %3614 = vrot.lane.b32.xlu0 %v2820, 48
      %v3615 = vpop.permute.xlu0 %3614
      %3616 = vrot.lane.b32.xlu0 %v2821, 48
      %v3617 = vpop.permute.xlu0 %3616
      %3618 = vrot.lane.b32.xlu0 %v2822, 48
      %v3619 = vpop.permute.xlu0 %3618
      %3620 = vrot.lane.b32.xlu0 %v2823, 48
      %v3621 = vpop.permute.xlu0 %3620
      %3622 = vrot.lane.b32.xlu0 %v2824, 48
      %v3623 = vpop.permute.xlu0 %3622
      %3624 = vrot.lane.b32.xlu0 %v2825, 48
      %v3625 = vpop.permute.xlu0 %3624
      %3690 = vrot.lane.b32.xlu0 %v2826, 56
      %v3691 = vpop.permute.xlu0 %3690
      %3692 = vrot.lane.b32.xlu0 %v2827, 56
      %v3693 = vpop.permute.xlu0 %3692
      %3694 = vrot.lane.b32.xlu0 %v2828, 56
      %v3695 = vpop.permute.xlu0 %3694
      %3696 = vrot.lane.b32.xlu0 %v2829, 56
      %v3697 = vpop.permute.xlu0 %3696
      %3698 = vrot.lane.b32.xlu0 %v2830, 56
      %v3699 = vpop.permute.xlu0 %3698
      %3700 = vrot.lane.b32.xlu0 %v2831, 56
      %v3701 = vpop.permute.xlu0 %3700
      %3702 = vrot.lane.b32.xlu0 %v2832, 56
      %v3703 = vpop.permute.xlu0 %3702
      %3704 = vrot.lane.b32.xlu0 %v2833, 56
      %v3705 = vpop.permute.xlu0 %3704
      %3706 = vrot.lane.b32.xlu0 %v2834, 56
      %v3707 = vpop.permute.xlu0 %3706
      %3708 = vrot.lane.b32.xlu0 %v2835, 56
      %v3709 = vpop.permute.xlu0 %3708
      %3710 = vrot.lane.b32.xlu0 %v2836, 56
      %v3711 = vpop.permute.xlu0 %3710
      %3712 = vrot.lane.b32.xlu0 %v2837, 56
      %v3713 = vpop.permute.xlu0 %3712
      %3714 = vrot.lane.b32.xlu0 %v2838, 56
      %v3715 = vpop.permute.xlu0 %3714
      %3716 = vrot.lane.b32.xlu0 %v2839, 56
      %v3717 = vpop.permute.xlu0 %3716
      %3718 = vrot.lane.b32.xlu0 %v2840, 56
      %v3719 = vpop.permute.xlu0 %3718
      %3720 = vrot.lane.b32.xlu0 %v2841, 56
      %v3721 = vpop.permute.xlu0 %3720
      %3722 = vrot.lane.b32.xlu0 %v2842, 56
      %v3723 = vpop.permute.xlu0 %3722
      %3724 = vrot.lane.b32.xlu0 %v2843, 56
      %v3725 = vpop.permute.xlu0 %3724
      %3726 = vrot.lane.b32.xlu0 %v2844, 56
      %v3727 = vpop.permute.xlu0 %3726
      %3728 = vrot.lane.b32.xlu0 %v2845, 56
      %v3729 = vpop.permute.xlu0 %3728
      %3730 = vrot.lane.b32.xlu0 %v2846, 56
      %v3731 = vpop.permute.xlu0 %3730
      %3732 = vrot.lane.b32.xlu0 %v2847, 56
      %v3733 = vpop.permute.xlu0 %3732
      %3734 = vrot.lane.b32.xlu0 %v2848, 56
      %v3735 = vpop.permute.xlu0 %3734
      %3736 = vrot.lane.b32.xlu0 %v2849, 56
      %v3737 = vpop.permute.xlu0 %3736
      %3738 = vrot.lane.b32.xlu0 %v2850, 56
      %v3739 = vpop.permute.xlu0 %3738
      %3740 = vrot.lane.b32.xlu0 %v2851, 56
      %v3741 = vpop.permute.xlu0 %3740
      %3742 = vrot.lane.b32.xlu0 %v2852, 56
      %v3743 = vpop.permute.xlu0 %3742
      %3744 = vrot.lane.b32.xlu0 %v2853, 56
      %v3745 = vpop.permute.xlu0 %3744
      %3746 = vrot.lane.b32.xlu0 %v2854, 56
      %v3747 = vpop.permute.xlu0 %3746
      %3748 = vrot.lane.b32.xlu0 %v2855, 56
      %v3749 = vpop.permute.xlu0 %3748
      %3750 = vrot.lane.b32.xlu0 %v2856, 56
      %v3751 = vpop.permute.xlu0 %3750
      %3752 = vrot.lane.b32.xlu0 %v2857, 56
      %v3753 = vpop.permute.xlu0 %3752
      %3818 = vrot.lane.b32.xlu0 %v2858, 64
      %v3819 = vpop.permute.xlu0 %3818
      %3820 = vrot.lane.b32.xlu0 %v2859, 64
      %v3821 = vpop.permute.xlu0 %3820
      %3822 = vrot.lane.b32.xlu0 %v2860, 64
      %v3823 = vpop.permute.xlu0 %3822
      %3824 = vrot.lane.b32.xlu0 %v2861, 64
      %v3825 = vpop.permute.xlu0 %3824
      %3826 = vrot.lane.b32.xlu0 %v2862, 64
      %v3827 = vpop.permute.xlu0 %3826
      %3828 = vrot.lane.b32.xlu0 %v2863, 64
      %v3829 = vpop.permute.xlu0 %3828
      %3830 = vrot.lane.b32.xlu0 %v2864, 64
      %v3831 = vpop.permute.xlu0 %3830
      %3832 = vrot.lane.b32.xlu0 %v2865, 64
      %v3833 = vpop.permute.xlu0 %3832
      %3834 = vrot.lane.b32.xlu0 %v2866, 64
      %v3835 = vpop.permute.xlu0 %3834
      %3836 = vrot.lane.b32.xlu0 %v2867, 64
      %v3837 = vpop.permute.xlu0 %3836
      %3838 = vrot.lane.b32.xlu0 %v2868, 64
      %v3839 = vpop.permute.xlu0 %3838
      %3840 = vrot.lane.b32.xlu0 %v2869, 64
      %v3841 = vpop.permute.xlu0 %3840
      %3842 = vrot.lane.b32.xlu0 %v2870, 64
      %v3843 = vpop.permute.xlu0 %3842
      %3844 = vrot.lane.b32.xlu0 %v2871, 64
      %v3845 = vpop.permute.xlu0 %3844
      %3846 = vrot.lane.b32.xlu0 %v2872, 64
      %v3847 = vpop.permute.xlu0 %3846
      %3848 = vrot.lane.b32.xlu0 %v2873, 64
      %v3849 = vpop.permute.xlu0 %3848
      %3850 = vrot.lane.b32.xlu0 %v2874, 64
      %v3851 = vpop.permute.xlu0 %3850
      %3852 = vrot.lane.b32.xlu0 %v2875, 64
      %v3853 = vpop.permute.xlu0 %3852
      %3854 = vrot.lane.b32.xlu0 %v2876, 64
      %v3855 = vpop.permute.xlu0 %3854
      %3856 = vrot.lane.b32.xlu0 %v2877, 64
      %v3857 = vpop.permute.xlu0 %3856
      %3858 = vrot.lane.b32.xlu0 %v2878, 64
      %v3859 = vpop.permute.xlu0 %3858
      %3860 = vrot.lane.b32.xlu0 %v2879, 64
      %v3861 = vpop.permute.xlu0 %3860
      %3862 = vrot.lane.b32.xlu0 %v2880, 64
      %v3863 = vpop.permute.xlu0 %3862
      %3864 = vrot.lane.b32.xlu0 %v2881, 64
      %v3865 = vpop.permute.xlu0 %3864
      %3866 = vrot.lane.b32.xlu0 %v2882, 64
      %v3867 = vpop.permute.xlu0 %3866
      %3868 = vrot.lane.b32.xlu0 %v2883, 64
      %v3869 = vpop.permute.xlu0 %3868
      %3870 = vrot.lane.b32.xlu0 %v2884, 64
      %v3871 = vpop.permute.xlu0 %3870
      %3872 = vrot.lane.b32.xlu0 %v2885, 64
      %v3873 = vpop.permute.xlu0 %3872
      %3874 = vrot.lane.b32.xlu0 %v2886, 64
      %v3875 = vpop.permute.xlu0 %3874
      %3876 = vrot.lane.b32.xlu0 %v2887, 64
      %v3877 = vpop.permute.xlu0 %3876
      %3878 = vrot.lane.b32.xlu0 %v2888, 64
      %v3879 = vpop.permute.xlu0 %3878
      %3880 = vrot.lane.b32.xlu0 %v2889, 64
      %v3881 = vpop.permute.xlu0 %3880
      %v3914 = vsel %vm311, %v2602, %v2923
      %v3915 = vsel %vm311, %v2603, %v2925
      %v3916 = vsel %vm311, %v2604, %v2927
      %v3917 = vsel %vm311, %v2605, %v2929
      %v3918 = vsel %vm311, %v2606, %v2931
      %v3919 = vsel %vm311, %v2607, %v2933
      %v3920 = vsel %vm311, %v2608, %v2935
      %v3921 = vsel %vm311, %v2609, %v2937
      %v3922 = vsel %vm311, %v2610, %v2939
      %v3923 = vsel %vm311, %v2611, %v2941
      %v3924 = vsel %vm311, %v2612, %v2943
      %v3925 = vsel %vm311, %v2613, %v2945
      %v3926 = vsel %vm311, %v2614, %v2947
      %v3927 = vsel %vm311, %v2615, %v2949
      %v3928 = vsel %vm311, %v2616, %v2951
      %v3929 = vsel %vm311, %v2617, %v2953
      %v3930 = vsel %vm311, %v2618, %v2955
      %v3931 = vsel %vm311, %v2619, %v2957
      %v3932 = vsel %vm311, %v2620, %v2959
      %v3933 = vsel %vm311, %v2621, %v2961
      %v3934 = vsel %vm311, %v2622, %v2963
      %v3935 = vsel %vm311, %v2623, %v2965
      %v3936 = vsel %vm311, %v2624, %v2967
      %v3937 = vsel %vm311, %v2625, %v2969
      %v3938 = vsel %vm311, %v2626, %v2971
      %v3939 = vsel %vm311, %v2627, %v2973
      %v3940 = vsel %vm311, %v2628, %v2975
      %v3941 = vsel %vm311, %v2629, %v2977
      %v3942 = vsel %vm311, %v2630, %v2979
      %v3943 = vsel %vm311, %v2631, %v2981
      %v3944 = vsel %vm311, %v2632, %v2983
      %v3945 = vsel %vm311, %v2633, %v2985
      %v3946 = vsel %vm1888, %v3914, %v3051
      %v3947 = vsel %vm1888, %v3915, %v3053
      %v3948 = vsel %vm1888, %v3916, %v3055
      %v3949 = vsel %vm1888, %v3917, %v3057
      %v3950 = vsel %vm1888, %v3918, %v3059
      %v3951 = vsel %vm1888, %v3919, %v3061
      %v3952 = vsel %vm1888, %v3920, %v3063
      %v3953 = vsel %vm1888, %v3921, %v3065
      %v3954 = vsel %vm1888, %v3922, %v3067
      %v3955 = vsel %vm1888, %v3923, %v3069
      %v3956 = vsel %vm1888, %v3924, %v3071
      %v3957 = vsel %vm1888, %v3925, %v3073
      %v3958 = vsel %vm1888, %v3926, %v3075
      %v3959 = vsel %vm1888, %v3927, %v3077
      %v3960 = vsel %vm1888, %v3928, %v3079
      %v3961 = vsel %vm1888, %v3929, %v3081
      %v3962 = vsel %vm1888, %v3930, %v3083
      %v3963 = vsel %vm1888, %v3931, %v3085
      %v3964 = vsel %vm1888, %v3932, %v3087
      %v3965 = vsel %vm1888, %v3933, %v3089
      %v3966 = vsel %vm1888, %v3934, %v3091
      %v3967 = vsel %vm1888, %v3935, %v3093
      %v3968 = vsel %vm1888, %v3936, %v3095
      %v3969 = vsel %vm1888, %v3937, %v3097
      %v3970 = vsel %vm1888, %v3938, %v3099
      %v3971 = vsel %vm1888, %v3939, %v3101
      %v3972 = vsel %vm1888, %v3940, %v3103
      %v3973 = vsel %vm1888, %v3941, %v3105
      %v3974 = vsel %vm1888, %v3942, %v3107
      %v3975 = vsel %vm1888, %v3943, %v3109
      %v3976 = vsel %vm1888, %v3944, %v3111
      %v3977 = vsel %vm1888, %v3945, %v3113
      %v3978 = vsel %vm1954, %v3946, %v3179
      %v3979 = vsel %vm1954, %v3947, %v3181
      %v3980 = vsel %vm1954, %v3948, %v3183
      %v3981 = vsel %vm1954, %v3949, %v3185
      %v3982 = vsel %vm1954, %v3950, %v3187
      %v3983 = vsel %vm1954, %v3951, %v3189
      %v3984 = vsel %vm1954, %v3952, %v3191
      %v3985 = vsel %vm1954, %v3953, %v3193
      %v3986 = vsel %vm1954, %v3954, %v3195
      %v3987 = vsel %vm1954, %v3955, %v3197
      %v3988 = vsel %vm1954, %v3956, %v3199
      %v3989 = vsel %vm1954, %v3957, %v3201
      %v3990 = vsel %vm1954, %v3958, %v3203
      %v3991 = vsel %vm1954, %v3959, %v3205
      %v3992 = vsel %vm1954, %v3960, %v3207
      %v3993 = vsel %vm1954, %v3961, %v3209
      %v3994 = vsel %vm1954, %v3962, %v3211
      %v3995 = vsel %vm1954, %v3963, %v3213
      %v3996 = vsel %vm1954, %v3964, %v3215
      %v3997 = vsel %vm1954, %v3965, %v3217
      %v3998 = vsel %vm1954, %v3966, %v3219
      %v3999 = vsel %vm1954, %v3967, %v3221
      %v4000 = vsel %vm1954, %v3968, %v3223
      %v4001 = vsel %vm1954, %v3969, %v3225
      %v4002 = vsel %vm1954, %v3970, %v3227
      %v4003 = vsel %vm1954, %v3971, %v3229
      %v4004 = vsel %vm1954, %v3972, %v3231
      %v4005 = vsel %vm1954, %v3973, %v3233
      %v4006 = vsel %vm1954, %v3974, %v3235
      %v4007 = vsel %vm1954, %v3975, %v3237
      %v4008 = vsel %vm1954, %v3976, %v3239
      %v4009 = vsel %vm1954, %v3977, %v3241
      %v4010 = vsel %vm2020, %v3978, %v3307
      %v4011 = vsel %vm2020, %v3979, %v3309
      %v4012 = vsel %vm2020, %v3980, %v3311
      %v4013 = vsel %vm2020, %v3981, %v3313
      %v4014 = vsel %vm2020, %v3982, %v3315
      %v4015 = vsel %vm2020, %v3983, %v3317
      %v4016 = vsel %vm2020, %v3984, %v3319
      %v4017 = vsel %vm2020, %v3985, %v3321
      %v4018 = vsel %vm2020, %v3986, %v3323
      %v4019 = vsel %vm2020, %v3987, %v3325
      %v4020 = vsel %vm2020, %v3988, %v3327
      %v4021 = vsel %vm2020, %v3989, %v3329
      %v4022 = vsel %vm2020, %v3990, %v3331
      %v4023 = vsel %vm2020, %v3991, %v3333
      %v4024 = vsel %vm2020, %v3992, %v3335
      %v4025 = vsel %vm2020, %v3993, %v3337
      %v4026 = vsel %vm2020, %v3994, %v3339
      %v4027 = vsel %vm2020, %v3995, %v3341
      %v4028 = vsel %vm2020, %v3996, %v3343
      %v4029 = vsel %vm2020, %v3997, %v3345
      %v4030 = vsel %vm2020, %v3998, %v3347
      %v4031 = vsel %vm2020, %v3999, %v3349
      %v4032 = vsel %vm2020, %v4000, %v3351
      %v4033 = vsel %vm2020, %v4001, %v3353
      %v4034 = vsel %vm2020, %v4002, %v3355
      %v4035 = vsel %vm2020, %v4003, %v3357
      %v4036 = vsel %vm2020, %v4004, %v3359
      %v4037 = vsel %vm2020, %v4005, %v3361
      %v4038 = vsel %vm2020, %v4006, %v3363
      %v4039 = vsel %vm2020, %v4007, %v3365
      %v4040 = vsel %vm2020, %v4008, %v3367
      %v4041 = vsel %vm2020, %v4009, %v3369
      %vm4042 = vcmask 326656
      %v4043 = vsel %vm4042, %v4010, %v3435
      %v4044 = vsel %vm4042, %v4011, %v3437
      %v4045 = vsel %vm4042, %v4012, %v3439
      %v4046 = vsel %vm4042, %v4013, %v3441
      %v4047 = vsel %vm4042, %v4014, %v3443
      %v4048 = vsel %vm4042, %v4015, %v3445
      %v4049 = vsel %vm4042, %v4016, %v3447
      %v4050 = vsel %vm4042, %v4017, %v3449
      %v4051 = vsel %vm4042, %v4018, %v3451
      %v4052 = vsel %vm4042, %v4019, %v3453
      %v4053 = vsel %vm4042, %v4020, %v3455
      %v4054 = vsel %vm4042, %v4021, %v3457
      %v4055 = vsel %vm4042, %v4022, %v3459
      %v4056 = vsel %vm4042, %v4023, %v3461
      %v4057 = vsel %vm4042, %v4024, %v3463
      %v4058 = vsel %vm4042, %v4025, %v3465
      %v4059 = vsel %vm4042, %v4026, %v3467
      %v4060 = vsel %vm4042, %v4027, %v3469
      %v4061 = vsel %vm4042, %v4028, %v3471
      %v4062 = vsel %vm4042, %v4029, %v3473
      %v4063 = vsel %vm4042, %v4030, %v3475
      %v4064 = vsel %vm4042, %v4031, %v3477
      %v4065 = vsel %vm4042, %v4032, %v3479
      %v4066 = vsel %vm4042, %v4033, %v3481
      %v4067 = vsel %vm4042, %v4034, %v3483
      %v4068 = vsel %vm4042, %v4035, %v3485
      %v4069 = vsel %vm4042, %v4036, %v3487
      %v4070 = vsel %vm4042, %v4037, %v3489
      %v4071 = vsel %vm4042, %v4038, %v3491
      %v4072 = vsel %vm4042, %v4039, %v3493
      %v4073 = vsel %vm4042, %v4040, %v3495
      %v4074 = vsel %vm4042, %v4041, %v3497
      %vm4075 = vcmask 392192
      %v4076 = vsel %vm4075, %v4043, %v3563
      %v4077 = vsel %vm4075, %v4044, %v3565
      %v4078 = vsel %vm4075, %v4045, %v3567
      %v4079 = vsel %vm4075, %v4046, %v3569
      %v4080 = vsel %vm4075, %v4047, %v3571
      %v4081 = vsel %vm4075, %v4048, %v3573
      %v4082 = vsel %vm4075, %v4049, %v3575
      %v4083 = vsel %vm4075, %v4050, %v3577
      %v4084 = vsel %vm4075, %v4051, %v3579
      %v4085 = vsel %vm4075, %v4052, %v3581
      %v4086 = vsel %vm4075, %v4053, %v3583
      %v4087 = vsel %vm4075, %v4054, %v3585
      %v4088 = vsel %vm4075, %v4055, %v3587
      %v4089 = vsel %vm4075, %v4056, %v3589
      %v4090 = vsel %vm4075, %v4057, %v3591
      %v4091 = vsel %vm4075, %v4058, %v3593
      %v4092 = vsel %vm4075, %v4059, %v3595
      %v4093 = vsel %vm4075, %v4060, %v3597
      %v4094 = vsel %vm4075, %v4061, %v3599
      %v4095 = vsel %vm4075, %v4062, %v3601
      %v4096 = vsel %vm4075, %v4063, %v3603
      %v4097 = vsel %vm4075, %v4064, %v3605
      %v4098 = vsel %vm4075, %v4065, %v3607
      %v4099 = vsel %vm4075, %v4066, %v3609
      %v4100 = vsel %vm4075, %v4067, %v3611
      %v4101 = vsel %vm4075, %v4068, %v3613
      %v4102 = vsel %vm4075, %v4069, %v3615
      %v4103 = vsel %vm4075, %v4070, %v3617
      %v4104 = vsel %vm4075, %v4071, %v3619
      %v4105 = vsel %vm4075, %v4072, %v3621
      %v4106 = vsel %vm4075, %v4073, %v3623
      %v4107 = vsel %vm4075, %v4074, %v3625
      %vm4108 = vcmask 457728
      %v4109 = vsel %vm4108, %v4076, %v3691
      %v4110 = vsel %vm4108, %v4077, %v3693
      %v4111 = vsel %vm4108, %v4078, %v3695
      %v4112 = vsel %vm4108, %v4079, %v3697
      %v4113 = vsel %vm4108, %v4080, %v3699
      %v4114 = vsel %vm4108, %v4081, %v3701
      %v4115 = vsel %vm4108, %v4082, %v3703
      %v4116 = vsel %vm4108, %v4083, %v3705
      %v4117 = vsel %vm4108, %v4084, %v3707
      %v4118 = vsel %vm4108, %v4085, %v3709
      %v4119 = vsel %vm4108, %v4086, %v3711
      %v4120 = vsel %vm4108, %v4087, %v3713
      %v4121 = vsel %vm4108, %v4088, %v3715
      %v4122 = vsel %vm4108, %v4089, %v3717
      %v4123 = vsel %vm4108, %v4090, %v3719
      %v4124 = vsel %vm4108, %v4091, %v3721
      %v4125 = vsel %vm4108, %v4092, %v3723
      %v4126 = vsel %vm4108, %v4093, %v3725
      %v4127 = vsel %vm4108, %v4094, %v3727
      %v4128 = vsel %vm4108, %v4095, %v3729
      %v4129 = vsel %vm4108, %v4096, %v3731
      %v4130 = vsel %vm4108, %v4097, %v3733
      %v4131 = vsel %vm4108, %v4098, %v3735
      %v4132 = vsel %vm4108, %v4099, %v3737
      %v4133 = vsel %vm4108, %v4100, %v3739
      %v4134 = vsel %vm4108, %v4101, %v3741
      %v4135 = vsel %vm4108, %v4102, %v3743
      %v4136 = vsel %vm4108, %v4103, %v3745
      %v4137 = vsel %vm4108, %v4104, %v3747
      %v4138 = vsel %vm4108, %v4105, %v3749
      %v4139 = vsel %vm4108, %v4106, %v3751
      %v4140 = vsel %vm4108, %v4107, %v3753
      %vm4141 = vcmask 523264
      %v4142 = vsel %vm4141, %v4109, %v3819
      %v4143 = vsel %vm4141, %v4110, %v3821
      %v4144 = vsel %vm4141, %v4111, %v3823
      %v4145 = vsel %vm4141, %v4112, %v3825
      %v4146 = vsel %vm4141, %v4113, %v3827
      %v4147 = vsel %vm4141, %v4114, %v3829
      %v4148 = vsel %vm4141, %v4115, %v3831
      %v4149 = vsel %vm4141, %v4116, %v3833
      %v4150 = vsel %vm4141, %v4117, %v3835
      %v4151 = vsel %vm4141, %v4118, %v3837
      %v4152 = vsel %vm4141, %v4119, %v3839
      %v4153 = vsel %vm4141, %v4120, %v3841
      %v4154 = vsel %vm4141, %v4121, %v3843
      %v4155 = vsel %vm4141, %v4122, %v3845
      %v4156 = vsel %vm4141, %v4123, %v3847
      %v4157 = vsel %vm4141, %v4124, %v3849
      %v4158 = vsel %vm4141, %v4125, %v3851
      %v4159 = vsel %vm4141, %v4126, %v3853
      %v4160 = vsel %vm4141, %v4127, %v3855
      %v4161 = vsel %vm4141, %v4128, %v3857
      %v4162 = vsel %vm4141, %v4129, %v3859
      %v4163 = vsel %vm4141, %v4130, %v3861
      %v4164 = vsel %vm4141, %v4131, %v3863
      %v4165 = vsel %vm4141, %v4132, %v3865
      %v4166 = vsel %vm4141, %v4133, %v3867
      %v4167 = vsel %vm4141, %v4134, %v3869
      %v4168 = vsel %vm4141, %v4135, %v3871
      %v4169 = vsel %vm4141, %v4136, %v3873
      %v4170 = vsel %vm4141, %v4137, %v3875
      %v4171 = vsel %vm4141, %v4138, %v3877
      %v4172 = vsel %vm4141, %v4139, %v3879
      %v4173 = vsel %vm4141, %v4140, %v3881
      %v4174 = vld [vmem:[%s2] sm:$0xff]
      %v4175 = vld [vmem:[%s2 + $0x8] sm:$0xff]
      %v4176 = vld [vmem:[%s2 + $0x10] sm:$0xff]
      %v4177 = vld [vmem:[%s2 + $0x18] sm:$0xff]
      %v4178 = vld [vmem:[%s2 + $0x20] sm:$0xff]
      %v4179 = vld [vmem:[%s2 + $0x28] sm:$0xff]
      %v4180 = vld [vmem:[%s2 + $0x30] sm:$0xff]
      %v4181 = vld [vmem:[%s2 + $0x38] sm:$0xff]
      %v4182 = vld [vmem:[%s2 + $0x40] sm:$0xff]
      %vm4183 = vcmask 588800
      %v4185 = vsel %vm4183, %v4142, 0
      %v4188 = vsel %vm4183, %v4143, 0
      %v4191 = vsel %vm4183, %v4144, 0
      %v4194 = vsel %vm4183, %v4145, 0
      %v4197 = vsel %vm4183, %v4146, 0
      %v4200 = vsel %vm4183, %v4147, 0
      %v4203 = vsel %vm4183, %v4148, 0
      %v4206 = vsel %vm4183, %v4149, 0
      %v4209 = vsel %vm4183, %v4150, 0
      %v4212 = vsel %vm4183, %v4151, 0
      %v4215 = vsel %vm4183, %v4152, 0
      %v4218 = vsel %vm4183, %v4153, 0
      %v4221 = vsel %vm4183, %v4154, 0
      %v4224 = vsel %vm4183, %v4155, 0
      %v4227 = vsel %vm4183, %v4156, 0
      %v4230 = vsel %vm4183, %v4157, 0
      %v4233 = vsel %vm4183, %v4158, 0
      %v4236 = vsel %vm4183, %v4159, 0
      %v4239 = vsel %vm4183, %v4160, 0
      %v4242 = vsel %vm4183, %v4161, 0
      %v4245 = vsel %vm4183, %v4162, 0
      %v4248 = vsel %vm4183, %v4163, 0
      %v4251 = vsel %vm4183, %v4164, 0
      %v4254 = vsel %vm4183, %v4165, 0
      %v4257 = vsel %vm4183, %v4166, 0
      %v4260 = vsel %vm4183, %v4167, 0
      %v4263 = vsel %vm4183, %v4168, 0
      %v4266 = vsel %vm4183, %v4169, 0
      %v4269 = vsel %vm4183, %v4170, 0
      %v4272 = vsel %vm4183, %v4171, 0
      %v4275 = vsel %vm4183, %v4172, 0
      %v4278 = vsel %vm4183, %v4173, 0
      %4280 = vmatprep.subr.mxu0 0.0
      %4281 = vmatpush1.msra.mxu0 0.0
      %4282 = vmatprep.subr.mxu0 0.0
      %4283 = vmatpush1.msra.mxu0 0.0
      %4284 = vmatprep.subr.mxu0 0.0
      %4285 = vmatpush1.msra.mxu0 0.0
      %4286 = vmatprep.subr.mxu0 0.0
      %4287 = vmatpush1.msra.mxu0 0.0
      %4288 = vmatprep.subr.mxu0 0.0
      %4289 = vmatpush1.msra.mxu0 0.0
      %4290 = vmatprep.subr.mxu0 0.0
      %4291 = vmatpush1.msra.mxu0 0.0
      %4292 = vmatprep.subr.mxu0 0.0
      %4293 = vmatpush1.msra.mxu0 0.0
      %4294 = vmatprep.subr.mxu0 0.0
      %4295 = vmatpush1.msra.mxu0 %v4182
      %4296 = vmatprep.subr.mxu0 0.0
      %4297 = vmatpush1.msra.mxu0 %v4181
      %4298 = vmatprep.subr.mxu0 0.0
      %4299 = vmatpush1.msra.mxu0 %v4180
      %4300 = vmatprep.subr.mxu0 0.0
      %4301 = vmatpush1.msra.mxu0 %v4179
      %4302 = vmatprep.subr.mxu0 0.0
      %4303 = vmatpush1.msra.mxu0 %v4178
      %4304 = vmatprep.subr.mxu0 0.0
      %4305 = vmatpush1.msra.mxu0 %v4177
      %4306 = vmatprep.subr.mxu0 0.0
      %4307 = vmatpush1.msra.mxu0 %v4176
      %4308 = vmatprep.subr.mxu0 0.0
      %4309 = vmatpush1.msra.mxu0 %v4175
      %4310 = vmatprep.subr.mxu0 0.0
      %4311 = vmatpush1.msra.mxu0 %v4174
      %4312 = vmatprep.subr.mxu0 0.0
      %4313 = vmatpush2.msra.mxu0 0.0
      %4314 = vmatprep.subr.mxu0 0.0
      %4315 = vmatpush2.msra.mxu0 0.0
      %4316 = vmatprep.subr.mxu0 0.0
      %4317 = vmatpush2.msra.mxu0 0.0
      %4318 = vmatprep.subr.mxu0 0.0
      %4319 = vmatpush2.msra.mxu0 0.0
      %4320 = vmatprep.subr.mxu0 0.0
      %4321 = vmatpush2.msra.mxu0 0.0
      %4322 = vmatprep.subr.mxu0 0.0
      %4323 = vmatpush2.msra.mxu0 0.0
      %4324 = vmatprep.subr.mxu0 0.0
      %4325 = vmatpush2.msra.mxu0 0.0
      %4326 = vmatprep.subr.mxu0 0.0
      %4327 = vmatpush2.msra.mxu0 0.0
      %4328 = vmatprep.subr.mxu0 0.0
      %4329 = vmatpush2.msra.mxu0 0.0
      %4330 = vmatprep.subr.mxu0 0.0
      %4331 = vmatpush2.msra.mxu0 0.0
      %4332 = vmatprep.subr.mxu0 0.0
      %4333 = vmatpush2.msra.mxu0 0.0
      %4334 = vmatprep.subr.mxu0 0.0
      %4335 = vmatpush2.msra.mxu0 0.0
      %4336 = vmatprep.subr.mxu0 0.0
      %4337 = vmatpush2.msra.mxu0 0.0
      %4338 = vmatprep.subr.mxu0 0.0
      %4339 = vmatpush2.msra.mxu0 0.0
      %4340 = vmatprep.subr.mxu0 0.0
      %4341 = vmatpush2.msra.mxu0 0.0
      %4342 = vmatprep.subr.mxu0 0.0
      %4343 = vmatpush2.msra.mxu0 0.0
      %4344 = vmatprep.mubr.f32.mxu0 0.0
      %4345 = vmatmul.mubr.f32.gmra.mxu0 %v4185
      %v4346 = vpop.f32.mrf.mxu0
      %v4347 = vadd.f32 0.0, %v4346
      %v4348 = vpop.f32.mrf.mxu0
      %4349 = vmatprep.mubr.f32.mxu0 0.0
      %4350 = vmatmul.mubr.f32.gmra.mxu0 %v4188
      %v4351 = vpop.f32.mrf.mxu0
      %v4352 = vadd.f32 0.0, %v4351
      %v4353 = vpop.f32.mrf.mxu0
      %4354 = vmatprep.mubr.f32.mxu0 0.0
      %4355 = vmatmul.mubr.f32.gmra.mxu0 %v4191
      %v4356 = vpop.f32.mrf.mxu0
      %v4357 = vadd.f32 0.0, %v4356
      %v4358 = vpop.f32.mrf.mxu0
      %4359 = vmatprep.mubr.f32.mxu0 0.0
      %4360 = vmatmul.mubr.f32.gmra.mxu0 %v4194
      %v4361 = vpop.f32.mrf.mxu0
      %v4362 = vadd.f32 0.0, %v4361
      %v4363 = vpop.f32.mrf.mxu0
      %4364 = vmatprep.mubr.f32.mxu0 0.0
      %4365 = vmatmul.mubr.f32.gmra.mxu0 %v4197
      %v4366 = vpop.f32.mrf.mxu0
      %v4367 = vadd.f32 0.0, %v4366
      %v4368 = vpop.f32.mrf.mxu0
      %4369 = vmatprep.mubr.f32.mxu0 0.0
      %4370 = vmatmul.mubr.f32.gmra.mxu0 %v4200
      %v4371 = vpop.f32.mrf.mxu0
      %v4372 = vadd.f32 0.0, %v4371
      %v4373 = vpop.f32.mrf.mxu0
      %4374 = vmatprep.mubr.f32.mxu0 0.0
      %4375 = vmatmul.mubr.f32.gmra.mxu0 %v4203
      %v4376 = vpop.f32.mrf.mxu0
      %v4377 = vadd.f32 0.0, %v4376
      %v4378 = vpop.f32.mrf.mxu0
      %4379 = vmatprep.mubr.f32.mxu0 0.0
      %4380 = vmatmul.mubr.f32.gmra.mxu0 %v4206
      %v4381 = vpop.f32.mrf.mxu0
      %v4382 = vadd.f32 0.0, %v4381
      %v4383 = vpop.f32.mrf.mxu0
      %4384 = vmatprep.mubr.f32.mxu0 0.0
      %4385 = vmatmul.mubr.f32.gmra.mxu0 %v4209
      %v4386 = vpop.f32.mrf.mxu0
      %v4387 = vadd.f32 0.0, %v4386
      %v4388 = vpop.f32.mrf.mxu0
      %4389 = vmatprep.mubr.f32.mxu0 0.0
      %4390 = vmatmul.mubr.f32.gmra.mxu0 %v4212
      %v4391 = vpop.f32.mrf.mxu0
      %v4392 = vadd.f32 0.0, %v4391
      %v4393 = vpop.f32.mrf.mxu0
      %4394 = vmatprep.mubr.f32.mxu0 0.0
      %4395 = vmatmul.mubr.f32.gmra.mxu0 %v4215
      %v4396 = vpop.f32.mrf.mxu0
      %v4397 = vadd.f32 0.0, %v4396
      %v4398 = vpop.f32.mrf.mxu0
      %4399 = vmatprep.mubr.f32.mxu0 0.0
      %4400 = vmatmul.mubr.f32.gmra.mxu0 %v4218
      %v4401 = vpop.f32.mrf.mxu0
      %v4402 = vadd.f32 0.0, %v4401
      %v4403 = vpop.f32.mrf.mxu0
      %4404 = vmatprep.mubr.f32.mxu0 0.0
      %4405 = vmatmul.mubr.f32.gmra.mxu0 %v4221
      %v4406 = vpop.f32.mrf.mxu0
      %v4407 = vadd.f32 0.0, %v4406
      %v4408 = vpop.f32.mrf.mxu0
      %4409 = vmatprep.mubr.f32.mxu0 0.0
      %4410 = vmatmul.mubr.f32.gmra.mxu0 %v4224
      %v4411 = vpop.f32.mrf.mxu0
      %v4412 = vadd.f32 0.0, %v4411
      %v4413 = vpop.f32.mrf.mxu0
      %4414 = vmatprep.mubr.f32.mxu0 0.0
      %4415 = vmatmul.mubr.f32.gmra.mxu0 %v4227
      %v4416 = vpop.f32.mrf.mxu0
      %v4417 = vadd.f32 0.0, %v4416
      %v4418 = vpop.f32.mrf.mxu0
      %4419 = vmatprep.mubr.f32.mxu0 0.0
      %4420 = vmatmul.mubr.f32.gmra.mxu0 %v4230
      %v4421 = vpop.f32.mrf.mxu0
      %v4422 = vadd.f32 0.0, %v4421
      %v4423 = vpop.f32.mrf.mxu0
      %4424 = vmatprep.mubr.f32.mxu0 0.0
      %4425 = vmatmul.mubr.f32.gmra.mxu0 %v4233
      %v4426 = vpop.f32.mrf.mxu0
      %v4427 = vadd.f32 0.0, %v4426
      %v4428 = vpop.f32.mrf.mxu0
      %4429 = vmatprep.mubr.f32.mxu0 0.0
      %4430 = vmatmul.mubr.f32.gmra.mxu0 %v4236
      %v4431 = vpop.f32.mrf.mxu0
      %v4432 = vadd.f32 0.0, %v4431
      %v4433 = vpop.f32.mrf.mxu0
      %4434 = vmatprep.mubr.f32.mxu0 0.0
      %4435 = vmatmul.mubr.f32.gmra.mxu0 %v4239
      %v4436 = vpop.f32.mrf.mxu0
      %v4437 = vadd.f32 0.0, %v4436
      %v4438 = vpop.f32.mrf.mxu0
      %4439 = vmatprep.mubr.f32.mxu0 0.0
      %4440 = vmatmul.mubr.f32.gmra.mxu0 %v4242
      %v4441 = vpop.f32.mrf.mxu0
      %v4442 = vadd.f32 0.0, %v4441
      %v4443 = vpop.f32.mrf.mxu0
      %4444 = vmatprep.mubr.f32.mxu0 0.0
      %4445 = vmatmul.mubr.f32.gmra.mxu0 %v4245
      %v4446 = vpop.f32.mrf.mxu0
      %v4447 = vadd.f32 0.0, %v4446
      %v4448 = vpop.f32.mrf.mxu0
      %4449 = vmatprep.mubr.f32.mxu0 0.0
      %4450 = vmatmul.mubr.f32.gmra.mxu0 %v4248
      %v4451 = vpop.f32.mrf.mxu0
      %v4452 = vadd.f32 0.0, %v4451
      %v4453 = vpop.f32.mrf.mxu0
      %4454 = vmatprep.mubr.f32.mxu0 0.0
      %4455 = vmatmul.mubr.f32.gmra.mxu0 %v4251
      %v4456 = vpop.f32.mrf.mxu0
      %v4457 = vadd.f32 0.0, %v4456
      %v4458 = vpop.f32.mrf.mxu0
      %4459 = vmatprep.mubr.f32.mxu0 0.0
      %4460 = vmatmul.mubr.f32.gmra.mxu0 %v4254
      %v4461 = vpop.f32.mrf.mxu0
      %v4462 = vadd.f32 0.0, %v4461
      %v4463 = vpop.f32.mrf.mxu0
      %4464 = vmatprep.mubr.f32.mxu0 0.0
      %4465 = vmatmul.mubr.f32.gmra.mxu0 %v4257
      %v4466 = vpop.f32.mrf.mxu0
      %v4467 = vadd.f32 0.0, %v4466
      %v4468 = vpop.f32.mrf.mxu0
      %4469 = vmatprep.mubr.f32.mxu0 0.0
      %4470 = vmatmul.mubr.f32.gmra.mxu0 %v4260
      %v4471 = vpop.f32.mrf.mxu0
      %v4472 = vadd.f32 0.0, %v4471
      %v4473 = vpop.f32.mrf.mxu0
      %4474 = vmatprep.mubr.f32.mxu0 0.0
      %4475 = vmatmul.mubr.f32.gmra.mxu0 %v4263
      %v4476 = vpop.f32.mrf.mxu0
      %v4477 = vadd.f32 0.0, %v4476
      %v4478 = vpop.f32.mrf.mxu0
      %4479 = vmatprep.mubr.f32.mxu0 0.0
      %4480 = vmatmul.mubr.f32.gmra.mxu0 %v4266
      %v4481 = vpop.f32.mrf.mxu0
      %v4482 = vadd.f32 0.0, %v4481
      %v4483 = vpop.f32.mrf.mxu0
      %4484 = vmatprep.mubr.f32.mxu0 0.0
      %4485 = vmatmul.mubr.f32.gmra.mxu0 %v4269
      %v4486 = vpop.f32.mrf.mxu0
      %v4487 = vadd.f32 0.0, %v4486
      %v4488 = vpop.f32.mrf.mxu0
      %4489 = vmatprep.mubr.f32.mxu0 0.0
      %4490 = vmatmul.mubr.f32.gmra.mxu0 %v4272
      %v4491 = vpop.f32.mrf.mxu0
      %v4492 = vadd.f32 0.0, %v4491
      %v4493 = vpop.f32.mrf.mxu0
      %4494 = vmatprep.mubr.f32.mxu0 0.0
      %4495 = vmatmul.mubr.f32.gmra.mxu0 %v4275
      %v4496 = vpop.f32.mrf.mxu0
      %v4497 = vadd.f32 0.0, %v4496
      %v4498 = vpop.f32.mrf.mxu0
      %4499 = vmatprep.mubr.f32.mxu0 0.0
      %4500 = vmatmul.mubr.f32.gmra.mxu0 %v4278
      %v4501 = vpop.f32.mrf.mxu0
      %v4502 = vadd.f32 0.0, %v4501
      %v4503 = vpop.f32.mrf.mxu0
      %4504 = vdwg.mxu0
      %v4505 = vld [vmem:[%s3 + $0x2] sm:$0x1]
      %v4506 = vlaneseq
      %v4507 = vshrl.u32 %v4506, 7
      %v4508 = vsub.s32 0, %v4507
      %v4509 = vrot.slane %v4505, %v4508
      %v4510 = vmul.f32 %v4347, %v4509
      %v4511 = vmul.f32 %v4352, %v4509
      %v4512 = vmul.f32 %v4357, %v4509
      %v4513 = vmul.f32 %v4362, %v4509
      %v4514 = vmul.f32 %v4367, %v4509
      %v4515 = vmul.f32 %v4372, %v4509
      %v4516 = vmul.f32 %v4377, %v4509
      %v4517 = vmul.f32 %v4382, %v4509
      %v4518 = vmul.f32 %v4387, %v4509
      %v4519 = vmul.f32 %v4392, %v4509
      %v4520 = vmul.f32 %v4397, %v4509
      %v4521 = vmul.f32 %v4402, %v4509
      %v4522 = vmul.f32 %v4407, %v4509
      %v4523 = vmul.f32 %v4412, %v4509
      %v4524 = vmul.f32 %v4417, %v4509
      %v4525 = vmul.f32 %v4422, %v4509
      %v4526 = vmul.f32 %v4427, %v4509
      %v4527 = vmul.f32 %v4432, %v4509
      %v4528 = vmul.f32 %v4437, %v4509
      %v4529 = vmul.f32 %v4442, %v4509
      %v4530 = vmul.f32 %v4447, %v4509
      %v4531 = vmul.f32 %v4452, %v4509
      %v4532 = vmul.f32 %v4457, %v4509
      %v4533 = vmul.f32 %v4462, %v4509
      %v4534 = vmul.f32 %v4467, %v4509
      %v4535 = vmul.f32 %v4472, %v4509
      %v4536 = vmul.f32 %v4477, %v4509
      %v4537 = vmul.f32 %v4482, %v4509
      %v4538 = vmul.f32 %v4487, %v4509
      %v4539 = vmul.f32 %v4492, %v4509
      %v4540 = vmul.f32 %v4497, %v4509
      %v4541 = vmul.f32 %v4502, %v4509
      %v4542 = vld [vmem:[%s3 + $0x3] sm:$0x1]
      %v4543 = vlaneseq
      %v4544 = vshrl.u32 %v4543, 7
      %v4545 = vsub.s32 0, %v4544
      %v4546 = vrot.slane %v4542, %v4545
      %v4547 = vadd.f32 %v4510, %v4546
      %v4548 = vadd.f32 %v4511, %v4546
      %v4549 = vadd.f32 %v4512, %v4546
      %v4550 = vadd.f32 %v4513, %v4546
      %v4551 = vadd.f32 %v4514, %v4546
      %v4552 = vadd.f32 %v4515, %v4546
      %v4553 = vadd.f32 %v4516, %v4546
      %v4554 = vadd.f32 %v4517, %v4546
      %v4555 = vadd.f32 %v4518, %v4546
      %v4556 = vadd.f32 %v4519, %v4546
      %v4557 = vadd.f32 %v4520, %v4546
      %v4558 = vadd.f32 %v4521, %v4546
      %v4559 = vadd.f32 %v4522, %v4546
      %v4560 = vadd.f32 %v4523, %v4546
      %v4561 = vadd.f32 %v4524, %v4546
      %v4562 = vadd.f32 %v4525, %v4546
      %v4563 = vadd.f32 %v4526, %v4546
      %v4564 = vadd.f32 %v4527, %v4546
      %v4565 = vadd.f32 %v4528, %v4546
      %v4566 = vadd.f32 %v4529, %v4546
      %v4567 = vadd.f32 %v4530, %v4546
      %v4568 = vadd.f32 %v4531, %v4546
      %v4569 = vadd.f32 %v4532, %v4546
      %v4570 = vadd.f32 %v4533, %v4546
      %v4571 = vadd.f32 %v4534, %v4546
      %v4572 = vadd.f32 %v4535, %v4546
      %v4573 = vadd.f32 %v4536, %v4546
      %v4574 = vadd.f32 %v4537, %v4546
      %v4575 = vadd.f32 %v4538, %v4546
      %v4576 = vadd.f32 %v4539, %v4546
      %v4577 = vadd.f32 %v4540, %v4546
      %v4578 = vadd.f32 %v4541, %v4546
      %v4579 = vmax.f32 %v4547, 0.0
      %v4580 = vmax.f32 %v4548, 0.0
      %v4581 = vmax.f32 %v4549, 0.0
      %v4582 = vmax.f32 %v4550, 0.0
      %v4583 = vmax.f32 %v4551, 0.0
      %v4584 = vmax.f32 %v4552, 0.0
      %v4585 = vmax.f32 %v4553, 0.0
      %v4586 = vmax.f32 %v4554, 0.0
      %v4587 = vmax.f32 %v4555, 0.0
      %v4588 = vmax.f32 %v4556, 0.0
      %v4589 = vmax.f32 %v4557, 0.0
      %v4590 = vmax.f32 %v4558, 0.0
      %v4591 = vmax.f32 %v4559, 0.0
      %v4592 = vmax.f32 %v4560, 0.0
      %v4593 = vmax.f32 %v4561, 0.0
      %v4594 = vmax.f32 %v4562, 0.0
      %v4595 = vmax.f32 %v4563, 0.0
      %v4596 = vmax.f32 %v4564, 0.0
      %v4597 = vmax.f32 %v4565, 0.0
      %v4598 = vmax.f32 %v4566, 0.0
      %v4599 = vmax.f32 %v4567, 0.0
      %v4600 = vmax.f32 %v4568, 0.0
      %v4601 = vmax.f32 %v4569, 0.0
      %v4602 = vmax.f32 %v4570, 0.0
      %v4603 = vmax.f32 %v4571, 0.0
      %v4604 = vmax.f32 %v4572, 0.0
      %v4605 = vmax.f32 %v4573, 0.0
      %v4606 = vmax.f32 %v4574, 0.0
      %v4607 = vmax.f32 %v4575, 0.0
      %v4608 = vmax.f32 %v4576, 0.0
      %v4609 = vmax.f32 %v4577, 0.0
      %v4610 = vmax.f32 %v4578, 0.0
      %4611 = vst.msk [vmem:[%s232] sm:$0xff] %vm311, %v4579
      %4612 = vst.msk [vmem:[%s232 + $0x8] sm:$0xff] %vm311, %v4580
      %4613 = vst.msk [vmem:[%s232 + $0x10] sm:$0xff] %vm311, %v4581
      %4614 = vst.msk [vmem:[%s232 + $0x18] sm:$0xff] %vm311, %v4582
      %4615 = vst.msk [vmem:[%s232 + $0x20] sm:$0xff] %vm311, %v4583
      %4616 = vst.msk [vmem:[%s232 + $0x28] sm:$0xff] %vm311, %v4584
      %4617 = vst.msk [vmem:[%s232 + $0x30] sm:$0xff] %vm311, %v4585
      %4618 = vst.msk [vmem:[%s232 + $0x38] sm:$0xff] %vm311, %v4586
      %4619 = vst.msk [vmem:[%s232 + $0x40] sm:$0xff] %vm311, %v4587
      %4620 = vst.msk [vmem:[%s232 + $0x48] sm:$0xff] %vm311, %v4588
      %4621 = vst.msk [vmem:[%s232 + $0x50] sm:$0xff] %vm311, %v4589
      %4622 = vst.msk [vmem:[%s232 + $0x58] sm:$0xff] %vm311, %v4590
      %4623 = vst.msk [vmem:[%s232 + $0x60] sm:$0xff] %vm311, %v4591
      %4624 = vst.msk [vmem:[%s232 + $0x68] sm:$0xff] %vm311, %v4592
      %4625 = vst.msk [vmem:[%s232 + $0x70] sm:$0xff] %vm311, %v4593
      %4626 = vst.msk [vmem:[%s232 + $0x78] sm:$0xff] %vm311, %v4594
      %4627 = vst.msk [vmem:[%s232 + $0x80] sm:$0xff] %vm311, %v4595
      %4628 = vst.msk [vmem:[%s232 + $0x88] sm:$0xff] %vm311, %v4596
      %4629 = vst.msk [vmem:[%s232 + $0x90] sm:$0xff] %vm311, %v4597
      %4630 = vst.msk [vmem:[%s232 + $0x98] sm:$0xff] %vm311, %v4598
      %4631 = vst.msk [vmem:[%s232 + $0xa0] sm:$0xff] %vm311, %v4599
      %4632 = vst.msk [vmem:[%s232 + $0xa8] sm:$0xff] %vm311, %v4600
      %4633 = vst.msk [vmem:[%s232 + $0xb0] sm:$0xff] %vm311, %v4601
      %4634 = vst.msk [vmem:[%s232 + $0xb8] sm:$0xff] %vm311, %v4602
      %4635 = vst.msk [vmem:[%s232 + $0xc0] sm:$0xff] %vm311, %v4603
      %4636 = vst.msk [vmem:[%s232 + $0xc8] sm:$0xff] %vm311, %v4604
      %4637 = vst.msk [vmem:[%s232 + $0xd0] sm:$0xff] %vm311, %v4605
      %4638 = vst.msk [vmem:[%s232 + $0xd8] sm:$0xff] %vm311, %v4606
      %4639 = vst.msk [vmem:[%s232 + $0xe0] sm:$0xff] %vm311, %v4607
      %4640 = vst.msk [vmem:[%s232 + $0xe8] sm:$0xff] %vm311, %v4608
      %4641 = vst.msk [vmem:[%s232 + $0xf0] sm:$0xff] %vm311, %v4609
      %4642 = vst.msk [vmem:[%s232 + $0xf8] sm:$0xff] %vm311, %v4610
      %v4643 = vld [vmem:[%s232] sm:$0xff]
      %v4644 = vld [vmem:[%s232 + $0x8] sm:$0xff]
      %v4645 = vld [vmem:[%s232 + $0x10] sm:$0xff]
      %v4646 = vld [vmem:[%s232 + $0x18] sm:$0xff]
      %v4647 = vmax.f32 %v4643, %v4645
      %v4648 = vmax.f32 %v4644, %v4646
      %4649 = vst.msk [vmem:[#allocation5] sm:$0xff] %vm311, %v4647
      %4650 = vst.msk [vmem:[#allocation5 + $0x8] sm:$0xff] %vm311, %v4648
      %v4651 = vld [vmem:[%s232 + $0x20] sm:$0xff]
      %v4652 = vld [vmem:[%s232 + $0x28] sm:$0xff]
      %v4653 = vld [vmem:[%s232 + $0x30] sm:$0xff]
      %v4654 = vld [vmem:[%s232 + $0x38] sm:$0xff]
      %v4655 = vmax.f32 %v4651, %v4653
      %v4656 = vmax.f32 %v4652, %v4654
      %s4657 = scalar_lea.vmem [#allocation5], 16
      %4658 = vst.msk [vmem:[%s4657] sm:$0xff] %vm311, %v4655
      %4659 = vst.msk [vmem:[%s4657 + $0x8] sm:$0xff] %vm311, %v4656
      %v4660 = vld [vmem:[%s232 + $0x40] sm:$0xff]
      %v4661 = vld [vmem:[%s232 + $0x48] sm:$0xff]
      %v4662 = vld [vmem:[%s232 + $0x50] sm:$0xff]
      %v4663 = vld [vmem:[%s232 + $0x58] sm:$0xff]
      %v4664 = vmax.f32 %v4660, %v4662
      %v4665 = vmax.f32 %v4661, %v4663
      %s4666 = scalar_lea.vmem [#allocation5], 32
      %4667 = vst.msk [vmem:[%s4666] sm:$0xff] %vm311, %v4664
      %4668 = vst.msk [vmem:[%s4666 + $0x8] sm:$0xff] %vm311, %v4665
      %v4669 = vld [vmem:[%s232 + $0x60] sm:$0xff]
      %v4670 = vld [vmem:[%s232 + $0x68] sm:$0xff]
      %v4671 = vld [vmem:[%s232 + $0x70] sm:$0xff]
      %v4672 = vld [vmem:[%s232 + $0x78] sm:$0xff]
      %v4673 = vmax.f32 %v4669, %v4671
      %v4674 = vmax.f32 %v4670, %v4672
      %s4675 = scalar_lea.vmem [#allocation5], 48
      %4676 = vst.msk [vmem:[%s4675] sm:$0xff] %vm311, %v4673
      %4677 = vst.msk [vmem:[%s4675 + $0x8] sm:$0xff] %vm311, %v4674
      %v4678 = vld [vmem:[%s232 + $0x80] sm:$0xff]
      %v4679 = vld [vmem:[%s232 + $0x88] sm:$0xff]
      %v4680 = vld [vmem:[%s232 + $0x90] sm:$0xff]
      %v4681 = vld [vmem:[%s232 + $0x98] sm:$0xff]
      %v4682 = vmax.f32 %v4678, %v4680
      %v4683 = vmax.f32 %v4679, %v4681
      %s4684 = scalar_lea.vmem [#allocation5], 64
      %4685 = vst.msk [vmem:[%s4684] sm:$0xff] %vm311, %v4682
      %4686 = vst.msk [vmem:[%s4684 + $0x8] sm:$0xff] %vm311, %v4683
      %v4687 = vld [vmem:[%s232 + $0xa0] sm:$0xff]
      %v4688 = vld [vmem:[%s232 + $0xa8] sm:$0xff]
      %v4689 = vld [vmem:[%s232 + $0xb0] sm:$0xff]
      %v4690 = vld [vmem:[%s232 + $0xb8] sm:$0xff]
      %v4691 = vmax.f32 %v4687, %v4689
      %v4692 = vmax.f32 %v4688, %v4690
      %s4693 = scalar_lea.vmem [#allocation5], 80
      %4694 = vst.msk [vmem:[%s4693] sm:$0xff] %vm311, %v4691
      %4695 = vst.msk [vmem:[%s4693 + $0x8] sm:$0xff] %vm311, %v4692
      %v4696 = vld [vmem:[%s232 + $0xc0] sm:$0xff]
      %v4697 = vld [vmem:[%s232 + $0xc8] sm:$0xff]
      %v4698 = vld [vmem:[%s232 + $0xd0] sm:$0xff]
      %v4699 = vld [vmem:[%s232 + $0xd8] sm:$0xff]
      %v4700 = vmax.f32 %v4696, %v4698
      %v4701 = vmax.f32 %v4697, %v4699
      %s4702 = scalar_lea.vmem [#allocation5], 96
      %4703 = vst.msk [vmem:[%s4702] sm:$0xff] %vm311, %v4700
      %4704 = vst.msk [vmem:[%s4702 + $0x8] sm:$0xff] %vm311, %v4701
      %v4705 = vld [vmem:[%s232 + $0xe0] sm:$0xff]
      %v4706 = vld [vmem:[%s232 + $0xe8] sm:$0xff]
      %v4707 = vld [vmem:[%s232 + $0xf0] sm:$0xff]
      %v4708 = vld [vmem:[%s232 + $0xf8] sm:$0xff]
      %v4709 = vmax.f32 %v4705, %v4707
      %v4710 = vmax.f32 %v4706, %v4708
      %s4711 = scalar_lea.vmem [#allocation5], 112
      %4712 = vst.msk [vmem:[%s4711] sm:$0xff] %vm311, %v4709
      %4713 = vst.msk [vmem:[%s4711 + $0x8] sm:$0xff] %vm311, %v4710
      %v4714 = vld [vmem:[#allocation5] sm:$0x1]
      %v4715 = vld [vmem:[#allocation5 + $0x10] sm:$0x1]
      %v4716 = vld [vmem:[#allocation5 + $0x20] sm:$0x1]
      %v4717 = vld [vmem:[#allocation5 + $0x30] sm:$0x1]
      %v4718 = vld [vmem:[#allocation5 + $0x40] sm:$0x1]
      %v4719 = vld [vmem:[#allocation5 + $0x50] sm:$0x1]
      %v4720 = vld [vmem:[#allocation5 + $0x60] sm:$0x1]
      %v4721 = vld [vmem:[#allocation5 + $0x70] sm:$0x1]
      %v4722 = vld [vmem:[#allocation5 + $0x1] sm:$0x1]
      %v4723 = vld [vmem:[#allocation5 + $0x11] sm:$0x1]
      %v4724 = vld [vmem:[#allocation5 + $0x21] sm:$0x1]
      %v4725 = vld [vmem:[#allocation5 + $0x31] sm:$0x1]
      %v4726 = vld [vmem:[#allocation5 + $0x41] sm:$0x1]
      %v4727 = vld [vmem:[#allocation5 + $0x51] sm:$0x1]
      %v4728 = vld [vmem:[#allocation5 + $0x61] sm:$0x1]
      %v4729 = vld [vmem:[#allocation5 + $0x71] sm:$0x1]
      %v4730 = vmax.f32 %v4714, %v4722
      %v4731 = vmax.f32 %v4715, %v4723
      %v4732 = vmax.f32 %v4716, %v4724
      %v4733 = vmax.f32 %v4717, %v4725
      %v4734 = vmax.f32 %v4718, %v4726
      %v4735 = vmax.f32 %v4719, %v4727
      %v4736 = vmax.f32 %v4720, %v4728
      %v4737 = vmax.f32 %v4721, %v4729
      %vm4738 = vcmask 57344
      %4739 = vst.msk [vmem:[%s237] sm:$0x1] %vm4738, %v4730
      %4740 = vst.msk [vmem:[%s237 + $0x8] sm:$0x1] %vm4738, %v4731
      %4741 = vst.msk [vmem:[%s237 + $0x10] sm:$0x1] %vm4738, %v4732
      %4742 = vst.msk [vmem:[%s237 + $0x18] sm:$0x1] %vm4738, %v4733
      %4743 = vst.msk [vmem:[%s237 + $0x20] sm:$0x1] %vm4738, %v4734
      %4744 = vst.msk [vmem:[%s237 + $0x28] sm:$0x1] %vm4738, %v4735
      %4745 = vst.msk [vmem:[%s237 + $0x30] sm:$0x1] %vm4738, %v4736
      %4746 = vst.msk [vmem:[%s237 + $0x38] sm:$0x1] %vm4738, %v4737
      %v4747 = vld [vmem:[#allocation5 + $0x2] sm:$0x1]
      %v4748 = vld [vmem:[#allocation5 + $0x12] sm:$0x1]
      %v4749 = vld [vmem:[#allocation5 + $0x22] sm:$0x1]
      %v4750 = vld [vmem:[#allocation5 + $0x32] sm:$0x1]
      %v4751 = vld [vmem:[#allocation5 + $0x42] sm:$0x1]
      %v4752 = vld [vmem:[#allocation5 + $0x52] sm:$0x1]
      %v4753 = vld [vmem:[#allocation5 + $0x62] sm:$0x1]
      %v4754 = vld [vmem:[#allocation5 + $0x72] sm:$0x1]
      %v4755 = vld [vmem:[#allocation5 + $0x3] sm:$0x1]
      %v4756 = vld [vmem:[#allocation5 + $0x13] sm:$0x1]
      %v4757 = vld [vmem:[#allocation5 + $0x23] sm:$0x1]
      %v4758 = vld [vmem:[#allocation5 + $0x33] sm:$0x1]
      %v4759 = vld [vmem:[#allocation5 + $0x43] sm:$0x1]
      %v4760 = vld [vmem:[#allocation5 + $0x53] sm:$0x1]
      %v4761 = vld [vmem:[#allocation5 + $0x63] sm:$0x1]
      %v4762 = vld [vmem:[#allocation5 + $0x73] sm:$0x1]
      %v4763 = vmax.f32 %v4747, %v4755
      %v4764 = vmax.f32 %v4748, %v4756
      %v4765 = vmax.f32 %v4749, %v4757
      %v4766 = vmax.f32 %v4750, %v4758
      %v4767 = vmax.f32 %v4751, %v4759
      %v4768 = vmax.f32 %v4752, %v4760
      %v4769 = vmax.f32 %v4753, %v4761
      %v4770 = vmax.f32 %v4754, %v4762
      %4771 = vst.msk [vmem:[%s237 + $0x1] sm:$0x1] %vm4738, %v4763
      %4772 = vst.msk [vmem:[%s237 + $0x9] sm:$0x1] %vm4738, %v4764
      %4773 = vst.msk [vmem:[%s237 + $0x11] sm:$0x1] %vm4738, %v4765
      %4774 = vst.msk [vmem:[%s237 + $0x19] sm:$0x1] %vm4738, %v4766
      %4775 = vst.msk [vmem:[%s237 + $0x21] sm:$0x1] %vm4738, %v4767
      %4776 = vst.msk [vmem:[%s237 + $0x29] sm:$0x1] %vm4738, %v4768
      %4777 = vst.msk [vmem:[%s237 + $0x31] sm:$0x1] %vm4738, %v4769
      %4778 = vst.msk [vmem:[%s237 + $0x39] sm:$0x1] %vm4738, %v4770
      %v4779 = vld [vmem:[#allocation5 + $0x4] sm:$0x1]
      %v4780 = vld [vmem:[#allocation5 + $0x14] sm:$0x1]
      %v4781 = vld [vmem:[#allocation5 + $0x24] sm:$0x1]
      %v4782 = vld [vmem:[#allocation5 + $0x34] sm:$0x1]
      %v4783 = vld [vmem:[#allocation5 + $0x44] sm:$0x1]
      %v4784 = vld [vmem:[#allocation5 + $0x54] sm:$0x1]
      %v4785 = vld [vmem:[#allocation5 + $0x64] sm:$0x1]
      %v4786 = vld [vmem:[#allocation5 + $0x74] sm:$0x1]
      %v4787 = vld [vmem:[#allocation5 + $0x5] sm:$0x1]
      %v4788 = vld [vmem:[#allocation5 + $0x15] sm:$0x1]
      %v4789 = vld [vmem:[#allocation5 + $0x25] sm:$0x1]
      %v4790 = vld [vmem:[#allocation5 + $0x35] sm:$0x1]
      %v4791 = vld [vmem:[#allocation5 + $0x45] sm:$0x1]
      %v4792 = vld [vmem:[#allocation5 + $0x55] sm:$0x1]
      %v4793 = vld [vmem:[#allocation5 + $0x65] sm:$0x1]
      %v4794 = vld [vmem:[#allocation5 + $0x75] sm:$0x1]
      %v4795 = vmax.f32 %v4779, %v4787
      %v4796 = vmax.f32 %v4780, %v4788
      %v4797 = vmax.f32 %v4781, %v4789
      %v4798 = vmax.f32 %v4782, %v4790
      %v4799 = vmax.f32 %v4783, %v4791
      %v4800 = vmax.f32 %v4784, %v4792
      %v4801 = vmax.f32 %v4785, %v4793
      %v4802 = vmax.f32 %v4786, %v4794
      %4803 = vst.msk [vmem:[%s237 + $0x2] sm:$0x1] %vm4738, %v4795
      %4804 = vst.msk [vmem:[%s237 + $0xa] sm:$0x1] %vm4738, %v4796
      %4805 = vst.msk [vmem:[%s237 + $0x12] sm:$0x1] %vm4738, %v4797
      %4806 = vst.msk [vmem:[%s237 + $0x1a] sm:$0x1] %vm4738, %v4798
      %4807 = vst.msk [vmem:[%s237 + $0x22] sm:$0x1] %vm4738, %v4799
      %4808 = vst.msk [vmem:[%s237 + $0x2a] sm:$0x1] %vm4738, %v4800
      %4809 = vst.msk [vmem:[%s237 + $0x32] sm:$0x1] %vm4738, %v4801
      %4810 = vst.msk [vmem:[%s237 + $0x3a] sm:$0x1] %vm4738, %v4802
      %v4811 = vld [vmem:[#allocation5 + $0x6] sm:$0x1]
      %v4812 = vld [vmem:[#allocation5 + $0x16] sm:$0x1]
      %v4813 = vld [vmem:[#allocation5 + $0x26] sm:$0x1]
      %v4814 = vld [vmem:[#allocation5 + $0x36] sm:$0x1]
      %v4815 = vld [vmem:[#allocation5 + $0x46] sm:$0x1]
      %v4816 = vld [vmem:[#allocation5 + $0x56] sm:$0x1]
      %v4817 = vld [vmem:[#allocation5 + $0x66] sm:$0x1]
      %v4818 = vld [vmem:[#allocation5 + $0x76] sm:$0x1]
      %v4819 = vld [vmem:[#allocation5 + $0x7] sm:$0x1]
      %v4820 = vld [vmem:[#allocation5 + $0x17] sm:$0x1]
      %v4821 = vld [vmem:[#allocation5 + $0x27] sm:$0x1]
      %v4822 = vld [vmem:[#allocation5 + $0x37] sm:$0x1]
      %v4823 = vld [vmem:[#allocation5 + $0x47] sm:$0x1]
      %v4824 = vld [vmem:[#allocation5 + $0x57] sm:$0x1]
      %v4825 = vld [vmem:[#allocation5 + $0x67] sm:$0x1]
      %v4826 = vld [vmem:[#allocation5 + $0x77] sm:$0x1]
      %v4827 = vmax.f32 %v4811, %v4819
      %v4828 = vmax.f32 %v4812, %v4820
      %v4829 = vmax.f32 %v4813, %v4821
      %v4830 = vmax.f32 %v4814, %v4822
      %v4831 = vmax.f32 %v4815, %v4823
      %v4832 = vmax.f32 %v4816, %v4824
      %v4833 = vmax.f32 %v4817, %v4825
      %v4834 = vmax.f32 %v4818, %v4826
      %4835 = vst.msk [vmem:[%s237 + $0x3] sm:$0x1] %vm4738, %v4827
      %4836 = vst.msk [vmem:[%s237 + $0xb] sm:$0x1] %vm4738, %v4828
      %4837 = vst.msk [vmem:[%s237 + $0x13] sm:$0x1] %vm4738, %v4829
      %4838 = vst.msk [vmem:[%s237 + $0x1b] sm:$0x1] %vm4738, %v4830
      %4839 = vst.msk [vmem:[%s237 + $0x23] sm:$0x1] %vm4738, %v4831
      %4840 = vst.msk [vmem:[%s237 + $0x2b] sm:$0x1] %vm4738, %v4832
      %4841 = vst.msk [vmem:[%s237 + $0x33] sm:$0x1] %vm4738, %v4833
      %4842 = vst.msk [vmem:[%s237 + $0x3b] sm:$0x1] %vm4738, %v4834
      %v4843 = vld [vmem:[#allocation5 + $0x8] sm:$0x1]
      %v4844 = vld [vmem:[#allocation5 + $0x18] sm:$0x1]
      %v4845 = vld [vmem:[#allocation5 + $0x28] sm:$0x1]
      %v4846 = vld [vmem:[#allocation5 + $0x38] sm:$0x1]
      %v4847 = vld [vmem:[#allocation5 + $0x48] sm:$0x1]
      %v4848 = vld [vmem:[#allocation5 + $0x58] sm:$0x1]
      %v4849 = vld [vmem:[#allocation5 + $0x68] sm:$0x1]
      %v4850 = vld [vmem:[#allocation5 + $0x78] sm:$0x1]
      %v4851 = vld [vmem:[#allocation5 + $0x9] sm:$0x1]
      %v4852 = vld [vmem:[#allocation5 + $0x19] sm:$0x1]
      %v4853 = vld [vmem:[#allocation5 + $0x29] sm:$0x1]
      %v4854 = vld [vmem:[#allocation5 + $0x39] sm:$0x1]
      %v4855 = vld [vmem:[#allocation5 + $0x49] sm:$0x1]
      %v4856 = vld [vmem:[#allocation5 + $0x59] sm:$0x1]
      %v4857 = vld [vmem:[#allocation5 + $0x69] sm:$0x1]
      %v4858 = vld [vmem:[#allocation5 + $0x79] sm:$0x1]
      %v4859 = vmax.f32 %v4843, %v4851
      %v4860 = vmax.f32 %v4844, %v4852
      %v4861 = vmax.f32 %v4845, %v4853
      %v4862 = vmax.f32 %v4846, %v4854
      %v4863 = vmax.f32 %v4847, %v4855
      %v4864 = vmax.f32 %v4848, %v4856
      %v4865 = vmax.f32 %v4849, %v4857
      %v4866 = vmax.f32 %v4850, %v4858
      %4867 = vst.msk [vmem:[%s237 + $0x4] sm:$0x1] %vm4738, %v4859
      %4868 = vst.msk [vmem:[%s237 + $0xc] sm:$0x1] %vm4738, %v4860
      %4869 = vst.msk [vmem:[%s237 + $0x14] sm:$0x1] %vm4738, %v4861
      %4870 = vst.msk [vmem:[%s237 + $0x1c] sm:$0x1] %vm4738, %v4862
      %4871 = vst.msk [vmem:[%s237 + $0x24] sm:$0x1] %vm4738, %v4863
      %4872 = vst.msk [vmem:[%s237 + $0x2c] sm:$0x1] %vm4738, %v4864
      %4873 = vst.msk [vmem:[%s237 + $0x34] sm:$0x1] %vm4738, %v4865
      %4874 = vst.msk [vmem:[%s237 + $0x3c] sm:$0x1] %vm4738, %v4866
      %v4875 = vld [vmem:[#allocation5 + $0xa] sm:$0x1]
      %v4876 = vld [vmem:[#allocation5 + $0x1a] sm:$0x1]
      %v4877 = vld [vmem:[#allocation5 + $0x2a] sm:$0x1]
      %v4878 = vld [vmem:[#allocation5 + $0x3a] sm:$0x1]
      %v4879 = vld [vmem:[#allocation5 + $0x4a] sm:$0x1]
      %v4880 = vld [vmem:[#allocation5 + $0x5a] sm:$0x1]
      %v4881 = vld [vmem:[#allocation5 + $0x6a] sm:$0x1]
      %v4882 = vld [vmem:[#allocation5 + $0x7a] sm:$0x1]
      %v4883 = vld [vmem:[#allocation5 + $0xb] sm:$0x1]
      %v4884 = vld [vmem:[#allocation5 + $0x1b] sm:$0x1]
      %v4885 = vld [vmem:[#allocation5 + $0x2b] sm:$0x1]
      %v4886 = vld [vmem:[#allocation5 + $0x3b] sm:$0x1]
      %v4887 = vld [vmem:[#allocation5 + $0x4b] sm:$0x1]
      %v4888 = vld [vmem:[#allocation5 + $0x5b] sm:$0x1]
      %v4889 = vld [vmem:[#allocation5 + $0x6b] sm:$0x1]
      %v4890 = vld [vmem:[#allocation5 + $0x7b] sm:$0x1]
      %v4891 = vmax.f32 %v4875, %v4883
      %v4892 = vmax.f32 %v4876, %v4884
      %v4893 = vmax.f32 %v4877, %v4885
      %v4894 = vmax.f32 %v4878, %v4886
      %v4895 = vmax.f32 %v4879, %v4887
      %v4896 = vmax.f32 %v4880, %v4888
      %v4897 = vmax.f32 %v4881, %v4889
      %v4898 = vmax.f32 %v4882, %v4890
      %4899 = vst.msk [vmem:[%s237 + $0x5] sm:$0x1] %vm4738, %v4891
      %4900 = vst.msk [vmem:[%s237 + $0xd] sm:$0x1] %vm4738, %v4892
      %4901 = vst.msk [vmem:[%s237 + $0x15] sm:$0x1] %vm4738, %v4893
      %4902 = vst.msk [vmem:[%s237 + $0x1d] sm:$0x1] %vm4738, %v4894
      %4903 = vst.msk [vmem:[%s237 + $0x25] sm:$0x1] %vm4738, %v4895
      %4904 = vst.msk [vmem:[%s237 + $0x2d] sm:$0x1] %vm4738, %v4896
      %4905 = vst.msk [vmem:[%s237 + $0x35] sm:$0x1] %vm4738, %v4897
      %4906 = vst.msk [vmem:[%s237 + $0x3d] sm:$0x1] %vm4738, %v4898
      %v4907 = vld [vmem:[#allocation5 + $0xc] sm:$0x1]
      %v4908 = vld [vmem:[#allocation5 + $0x1c] sm:$0x1]
      %v4909 = vld [vmem:[#allocation5 + $0x2c] sm:$0x1]
      %v4910 = vld [vmem:[#allocation5 + $0x3c] sm:$0x1]
      %v4911 = vld [vmem:[#allocation5 + $0x4c] sm:$0x1]
      %v4912 = vld [vmem:[#allocation5 + $0x5c] sm:$0x1]
      %v4913 = vld [vmem:[#allocation5 + $0x6c] sm:$0x1]
      %v4914 = vld [vmem:[#allocation5 + $0x7c] sm:$0x1]
      %v4915 = vld [vmem:[#allocation5 + $0xd] sm:$0x1]
      %v4916 = vld [vmem:[#allocation5 + $0x1d] sm:$0x1]
      %v4917 = vld [vmem:[#allocation5 + $0x2d] sm:$0x1]
      %v4918 = vld [vmem:[#allocation5 + $0x3d] sm:$0x1]
      %v4919 = vld [vmem:[#allocation5 + $0x4d] sm:$0x1]
      %v4920 = vld [vmem:[#allocation5 + $0x5d] sm:$0x1]
      %v4921 = vld [vmem:[#allocation5 + $0x6d] sm:$0x1]
      %v4922 = vld [vmem:[#allocation5 + $0x7d] sm:$0x1]
      %v4923 = vmax.f32 %v4907, %v4915
      %v4924 = vmax.f32 %v4908, %v4916
      %v4925 = vmax.f32 %v4909, %v4917
      %v4926 = vmax.f32 %v4910, %v4918
      %v4927 = vmax.f32 %v4911, %v4919
      %v4928 = vmax.f32 %v4912, %v4920
      %v4929 = vmax.f32 %v4913, %v4921
      %v4930 = vmax.f32 %v4914, %v4922
      %4931 = vst.msk [vmem:[%s237 + $0x6] sm:$0x1] %vm4738, %v4923
      %4932 = vst.msk [vmem:[%s237 + $0xe] sm:$0x1] %vm4738, %v4924
      %4933 = vst.msk [vmem:[%s237 + $0x16] sm:$0x1] %vm4738, %v4925
      %4934 = vst.msk [vmem:[%s237 + $0x1e] sm:$0x1] %vm4738, %v4926
      %4935 = vst.msk [vmem:[%s237 + $0x26] sm:$0x1] %vm4738, %v4927
      %4936 = vst.msk [vmem:[%s237 + $0x2e] sm:$0x1] %vm4738, %v4928
      %4937 = vst.msk [vmem:[%s237 + $0x36] sm:$0x1] %vm4738, %v4929
      %4938 = vst.msk [vmem:[%s237 + $0x3e] sm:$0x1] %vm4738, %v4930
      %v4939 = vld [vmem:[#allocation5 + $0xe] sm:$0x1]
      %v4940 = vld [vmem:[#allocation5 + $0x1e] sm:$0x1]
      %v4941 = vld [vmem:[#allocation5 + $0x2e] sm:$0x1]
      %v4942 = vld [vmem:[#allocation5 + $0x3e] sm:$0x1]
      %v4943 = vld [vmem:[#allocation5 + $0x4e] sm:$0x1]
      %v4944 = vld [vmem:[#allocation5 + $0x5e] sm:$0x1]
      %v4945 = vld [vmem:[#allocation5 + $0x6e] sm:$0x1]
      %v4946 = vld [vmem:[#allocation5 + $0x7e] sm:$0x1]
      %v4947 = vld [vmem:[#allocation5 + $0xf] sm:$0x1]
      %v4948 = vld [vmem:[#allocation5 + $0x1f] sm:$0x1]
      %v4949 = vld [vmem:[#allocation5 + $0x2f] sm:$0x1]
      %v4950 = vld [vmem:[#allocation5 + $0x3f] sm:$0x1]
      %v4951 = vld [vmem:[#allocation5 + $0x4f] sm:$0x1]
      %v4952 = vld [vmem:[#allocation5 + $0x5f] sm:$0x1]
      %v4953 = vld [vmem:[#allocation5 + $0x6f] sm:$0x1]
      %v4954 = vld [vmem:[#allocation5 + $0x7f] sm:$0x1]
      %v4955 = vmax.f32 %v4939, %v4947
      %v4956 = vmax.f32 %v4940, %v4948
      %v4957 = vmax.f32 %v4941, %v4949
      %v4958 = vmax.f32 %v4942, %v4950
      %v4959 = vmax.f32 %v4943, %v4951
      %v4960 = vmax.f32 %v4944, %v4952
      %v4961 = vmax.f32 %v4945, %v4953
      %v4962 = vmax.f32 %v4946, %v4954
      %4963 = vst.msk [vmem:[%s237 + $0x7] sm:$0x1] %vm4738, %v4955
      %4964 = vst.msk [vmem:[%s237 + $0xf] sm:$0x1] %vm4738, %v4956
      %4965 = vst.msk [vmem:[%s237 + $0x17] sm:$0x1] %vm4738, %v4957
      %4966 = vst.msk [vmem:[%s237 + $0x1f] sm:$0x1] %vm4738, %v4958
      %4967 = vst.msk [vmem:[%s237 + $0x27] sm:$0x1] %vm4738, %v4959
      %4968 = vst.msk [vmem:[%s237 + $0x2f] sm:$0x1] %vm4738, %v4960
      %4969 = vst.msk [vmem:[%s237 + $0x37] sm:$0x1] %vm4738, %v4961
      %4970 = vst.msk [vmem:[%s237 + $0x3f] sm:$0x1] %vm4738, %v4962
      %p4971 = scmp.lt.s32.totalorder %s17, 1
      %s4972 = scalar_select %p4971, %s17, 1
      %s4973 = smul.addr %s4972, 32
      %s4974 = smul.addr %s4973, 8
      %s4975 = scalar_lea.vmem %s4, %s4974
      %p4976 = scmp.lt.s32.totalorder %s17, 1
      %s4977 = scalar_select %p4976, %s17, 1
      %s4978 = smul.addr %s4977, 8
      %s4979 = smul.addr %s4978, 8
      %s4980 = scalar_lea.vmem %s5, %s4979
      // Predicated region
      $region37: #{down_block_forward.1} parent=35 // pred_check
        %p4981 = pneg %p124
      $region38: #{down_block_forward.1} parent=35 // pred_check_branch
        %4983 = sbr.rel (%p4981) target = $region40
      $region39: #{down_block_forward.1} parent=35 // pred_region
        _
      $region40: #{down_block_forward.1} parent=35 // pred_fallthru
        _
      // Predicated region
      $region41: #{down_block_forward.1} parent=35 // pred_check
        %p4984 = pneg %p150
      $region42: #{down_block_forward.1} parent=35 // pred_check_branch
        %4986 = sbr.rel (%p4984) target = $region44
      $region43: #{down_block_forward.1} parent=35 // pred_region
        _
      $region44: #{down_block_forward.1} parent=35 // pred_fallthru
        _
    $region36: #{down_block_forward.1} parent=5 // pred_fallthru
      _
    %p4987 = scmp.le.s32.totalorder 2, %s12
    // Predicated region
    $region45: #{down_block_forward.1} parent=5 // pred_check
      %p4988 = pneg %p4987
    $region46: #{down_block_forward.1} parent=5 // pred_check_branch
      %4990 = sbr.rel (%p4988) target = $region48
    $region47: #{down_block_forward.1} parent=5 // pred_region
      %s4991 = ssub.s32 %s12, 2
      // Predicated region
      $region49: #{down_block_forward.1} parent=47 // pred_check
        %p4992 = pneg %p130
      $region50: #{down_block_forward.1} parent=47 // pred_check_branch
        %4994 = sbr.rel (%p4992) target = $region52
      $region51: #{down_block_forward.1} parent=47 // pred_region
        %p4995 = scmp.lt.s32.totalorder %s18, 1
        %s4996 = scalar_select %p4995, %s18, 1
        %s4997 = smul.addr %s4996, 32
        %s4998 = smul.addr %s4997, 8
        %s4999 = scalar_lea.vmem %s4, %s4998
      $region52: #{down_block_forward.1} parent=47 // pred_fallthru
        _
      // Predicated region
      $region53: #{down_block_forward.1} parent=47 // pred_check
        %p5000 = pneg %p156
      $region54: #{down_block_forward.1} parent=47 // pred_check_branch
        %5002 = sbr.rel (%p5000) target = $region56
      $region55: #{down_block_forward.1} parent=47 // pred_region
        %p5003 = scmp.lt.s32.totalorder %s18, 1
        %s5004 = scalar_select %p5003, %s18, 1
        %s5005 = smul.addr %s5004, 8
        %s5006 = smul.addr %s5005, 8
        %s5007 = scalar_lea.vmem %s5, %s5006
      $region56: #{down_block_forward.1} parent=47 // pred_fallthru
        _
    $region48: #{down_block_forward.1} parent=5 // pred_fallthru
      _
  $region6: #{down_block_forward.1} parent=0 // loop_footer
    %s16 = sadd.s32 1, %s12
  $region7: #{down_block_forward.1} parent=0 // loop_footer_branch
    %11 = sbr.rel target = $region3
  $region8: #{down_block_forward.1} parent=0 // loop_exit
    _

</llo_original>
